<compile_context>
chip_gen: v5e
topology: v5e:2x2
jax: 0.10.0
libtpu: 0.0.40
codegen_flags: <defaults>
</compile_context>

<pallas_src>
import functools

import jax
import jax.numpy as jnp
from jax.experimental import pallas as pl
from jax.experimental.pallas import tpu as pltpu

# Shared-MLP / FC hidden widths of the synthetic PointNet trunk.
H1, H2, H3, H4 = 32, 64, 128, 64
OUT_LANES = 128          # lane-dense output slab width


# ---------------------------------------------------------------------------
# In-kernel helpers
# ---------------------------------------------------------------------------
def _mm(a, b):
    return jnp.dot(a, b, preferred_element_type=jnp.float32)


def _relu(v):
    return jnp.maximum(v, 0.0)


def _blockdiag_transform_fix(xfeat, y9, w1geo):
    """sum_g (x_g @ dT) @ W1[3g:3g+3, :]  with dT rows = y9[:, 3i:3i+3].

    Pure VPU broadcast FMAs: the (1, H1) fix rows depend only on y9 and W1 (so
    they overlap the main x @ W1 matmul) and no K<=3 MXU passes sit on the
    serial chain.
    """
    fix = None
    for g in range(4):                         # 4 geometric 3-vector groups
        for i in range(3):
            # row_{g,i} = dT[i, :] @ W1_g = sum_j y9[3i+j] * W1[3g+j, :]
            row = (y9[:, 3 * i + 0:3 * i + 1] * w1geo[3 * g + 0:3 * g + 1, :]
                   + y9[:, 3 * i + 1:3 * i + 2] * w1geo[3 * g + 1:3 * g + 2, :]
                   + y9[:, 3 * i + 2:3 * i + 3] * w1geo[3 * g + 2:3 * g + 3, :])
            term = xfeat[:, 3 * g + i:3 * g + i + 1] * row
            fix = term if fix is None else fix + term
    return fix


# ---------------------------------------------------------------------------
# The fused kernel: one grid step == one object (batch element).
# ---------------------------------------------------------------------------
def _gnp_kernel(mesh_ref, ctx_ref, tgt_ref, eps_ref, wmain_ref, wdec_ref,
                y_ref, lat_ref, *, lm, ld, d_latents):
    def gm(name, n=None):
        off, k, nn = lm[name]
        return wmain_ref[off:off + k, 0:(nn if n is None else n)]

    def gd(name, n=None):
        off, k, nn = ld[name]
        return wdec_ref[off:off + k, 0:(nn if n is None else n)]

    def pointnet_head(x, p):
        """Shared per-point MLP + global max-pool + FC head (linear out)."""
        h = _relu(_mm(x, gm(p + "_w1")) + gm(p + "_b1"))
        h = _relu(_mm(h, gm(p + "_w2")) + gm(p + "_b2"))
        h = _relu(_mm(h, gm(p + "_w3")) + gm(p + "_b3"))
        g = jnp.max(h, axis=0, keepdims=True)
        g = _relu(_mm(g, gm(p + "_w4")) + gm(p + "_b4"))
        return _mm(g, gm(p + "_w5")) + gm(p + "_b5")

    # ------------------------- mesh encoder (with STN) ---------------------
    x = mesh_ref[...]                                   # (N_mesh, 3)
    y9 = pointnet_head(x, "stn")                        # (1, 9) == dT rows

    # x @ (I + dT) via VPU broadcast FMAs (dT never materialized).
    xt = x + (x[:, 0:1] * y9[:, 0:3]
              + x[:, 1:2] * y9[:, 3:6]
              + x[:, 2:3] * y9[:, 6:9])

    menc = pointnet_head(xt, "mesh")                    # (1, d_object_mesh_enc)

    # ------------------------- context encoder -> q(z) ---------------------
    ctx = ctx_ref[...]                                  # (n_grasp, 15)
    w1a = gm("enc_w1a")                                 # (15, H1)
    h = _mm(ctx, w1a) + _mm(menc, gm("enc_w1b")) + gm("enc_b1")
    h = _relu(h + _blockdiag_transform_fix(ctx, y9, w1a))
    h = _relu(_mm(h, gm("enc_w2")) + gm("enc_b2"))
    h = _relu(_mm(h, gm("enc_w3")) + gm("enc_b3"))
    g = jnp.max(h, axis=0, keepdims=True)               # pool over grasps
    g = _relu(_mm(g, gm("enc_w4")) + gm("enc_b4"))
    # final layer zero-padded to 128 lanes in the slab -> (1, 128), extra = 0
    eo = _mm(g, gm("enc_w5", OUT_LANES)) + gm("enc_b5", OUT_LANES)

    eps = eps_ref[...]                                  # (1, d_latents)
    mu = eo[:, 0:d_latents]
    sigma = 1e-4 + jnp.exp(eo[:, d_latents:2 * d_latents])   # matches torch ref
    z = mu + sigma * eps                                # rsample in-kernel

    lane = jax.lax.broadcasted_iota(jnp.int32, eo.shape, 1)
    lat_ref[...] = jnp.where(lane < d_latents, eo,
                             jnp.where(lane < 2 * d_latents,
                                       1e-4 + jnp.exp(eo), 0.0))

    # ------------------------- decoder ensemble (merged) -------------------
    tgt = tgt_ref[...]                                  # (n_grasp, 13)
    w1a_d = gd("dec_w1a")                               # (13, n_dec*H1)
    h = (_mm(tgt, w1a_d) + _mm(z, gd("dec_w1z")) + _mm(menc, gd("dec_w1m"))
         + gd("dec_b1"))
    h = _relu(h + _blockdiag_transform_fix(tgt, y9, w1a_d))
    h = _relu(_mm(h, gd("dec_w2")) + gd("dec_b2"))
    h = _relu(_mm(h, gd("dec_w3")) + gd("dec_b3"))
    # each grasp is its own 1-point cloud -> global max-pool is the identity
    h = _relu(_mm(h, gd("dec_w4")) + gd("dec_b4"))
    # final merged layer zero-padded to 128 lanes -> one unmasked full store
    y_ref[...] = jax.nn.sigmoid(_mm(h, gd("dec_w5", OUT_LANES))
                                + gd("dec_b5", OUT_LANES))


# ---------------------------------------------------------------------------
# Weight packing (wrapper side, done once)
# ---------------------------------------------------------------------------
def _pack_slab(entries, width):
    """Pack (name, (K, N)) arrays into one (rows, width) slab, 8-row aligned,
    lanes zero-padded.  Returns (slab, {name: (row_off, K, N)})."""
    rows, layout, off = [], {}, 0
    for name, a in entries:
        a = jnp.asarray(a, jnp.float32)
        k, n = a.shape
        kpad = ((k + 7) // 8) * 8
        buf = jnp.zeros((kpad, width), jnp.float32).at[:k, :n].set(a)
        rows.append(buf)
        layout[name] = (off, k, n)
        off += kpad
    return jnp.concatenate(rows, axis=0), layout


def _block_diag(mats):
    n = len(mats)
    k, m = mats[0].shape
    out = jnp.zeros((n * k, n * m), jnp.float32)
    for i, w in enumerate(mats):
        out = out.at[i * k:(i + 1) * k, i * m:(i + 1) * m].set(w)
    return out


def pack_params(stn, mesh, enc, dec_list, *, d_latents, d_object_mesh_enc):
    names = ["w1", "b1", "w2", "b2", "w3", "b3", "w4", "b4", "w5", "b5"]
    entries = []
    for prefix, net in (("stn", stn), ("mesh", mesh)):
        entries += [(f"{prefix}_{n}", p) for n, p in zip(names, net)]

    # Encoder: split W1 rows into per-grasp features (gp6,norm6,f,l,s = 15)
    # and the mesh-encoding rows so the mesh_enc contribution is a single
    # broadcast row in-kernel.
    enc_w1 = enc[0]
    n_pg = enc_w1.shape[0] - d_object_mesh_enc
    entries += [("enc_w1a", enc_w1[:n_pg]), ("enc_w1b", enc_w1[n_pg:]),
                ("enc_b1", enc[1])]
    entries += [(f"enc_{n}", p) for n, p in zip(names[2:], enc[2:])]
    wmain, lm = _pack_slab(entries, OUT_LANES)

    # Merged decoder ensemble: layer 1 concatenated along N, layers 2..5
    # block-diagonal so one matmul per layer serves all heads.
    n_dec = len(dec_list)
    w1 = jnp.concatenate([d[0] for d in dec_list], axis=1)      # (29, n_dec*H1)
    b1 = jnp.concatenate([d[1] for d in dec_list], axis=1)
    n_pg_d = w1.shape[0] - d_latents - d_object_mesh_enc        # 13
    dentries = [
        ("dec_w1a", w1[:n_pg_d]),
        ("dec_w1z", w1[n_pg_d:n_pg_d + d_latents]),
        ("dec_w1m", w1[n_pg_d + d_latents:]),
        ("dec_b1", b1),
        ("dec_w2", _block_diag([d[2] for d in dec_list])),
        ("dec_b2", jnp.concatenate([d[3] for d in dec_list], axis=1)),
        ("dec_w3", _block_diag([d[4] for d in dec_list])),
        ("dec_b3", jnp.concatenate([d[5] for d in dec_list], axis=1)),
        ("dec_w4", _block_diag([d[6] for d in dec_list])),
        ("dec_b4", jnp.concatenate([d[7] for d in dec_list], axis=1)),
        ("dec_w5", _block_diag([d[8] for d in dec_list])),
        ("dec_b5", jnp.concatenate([d[9] for d in dec_list], axis=1)),
    ]
    dec_width = max(OUT_LANES, ((n_dec * H3 + 127) // 128) * 128)
    wdec, ld = _pack_slab(dentries, dec_width)
    return wmain, wdec, lm, ld


# ---------------------------------------------------------------------------
# Forward builder (single fused pallas_call)
# ---------------------------------------------------------------------------
def build_forward(layout_main, layout_dec, *, d_latents, n_decoders):
    kernel = functools.partial(_gnp_kernel, lm=layout_main, ld=layout_dec,
                               d_latents=d_latents)

    @jax.jit
    def forward(wmain, wdec, meshes, contexts, target_xs, eps):
        (c_geoms, c_gp, c_curv, c_norm, c_mid, c_forces,
         c_labels, c_sizes) = contexts
        (t_geoms, t_gp, t_curv, t_norm, t_mid, t_forces) = target_xs
        n_batch, n_grasp = c_labels.shape

        mesh_pts = jnp.transpose(meshes, (0, 2, 1))              # (B, N_mesh, 3)
        n_mesh = mesh_pts.shape[1]

        # raw per-grasp features (mesh_enc / z contributions are added in-kernel)
        ctx = jnp.concatenate([
            c_gp.reshape(n_batch, n_grasp, -1),                  # 6
            c_norm.reshape(n_batch, n_grasp, -1),                # 6
            c_forces[..., None], c_labels[..., None], c_sizes[..., None],
        ], axis=2)                                               # (B, ng, 15)
        tgt = jnp.concatenate([
            t_gp.reshape(n_batch, n_grasp, -1),                  # 6
            t_norm.reshape(n_batch, n_grasp, -1),                # 6
            t_forces[..., None],                                 # 1
        ], axis=2)                                               # (B, ng, 13)
        n_ctx, n_tgt = ctx.shape[2], tgt.shape[2]

        y_slab, lat_slab = pl.pallas_call(
            kernel,
            out_shape=(
                jax.ShapeDtypeStruct((n_batch, n_grasp, OUT_LANES), jnp.float32),
                jax.ShapeDtypeStruct((n_batch, 1, OUT_LANES), jnp.float32),
            ),
            grid=(n_batch,),
            in_specs=[
                pl.BlockSpec((pl.Squeezed(), n_mesh, 3), lambda b: (b, 0, 0)),
                pl.BlockSpec((pl.Squeezed(), n_grasp, n_ctx), lambda b: (b, 0, 0)),
                pl.BlockSpec((pl.Squeezed(), n_grasp, n_tgt), lambda b: (b, 0, 0)),
                pl.BlockSpec((pl.Squeezed(), 1, d_latents), lambda b: (b, 0, 0)),
                pl.BlockSpec(wmain.shape, lambda b: (0, 0)),     # constant index
                pl.BlockSpec(wdec.shape, lambda b: (0, 0)),      # constant index
            ],
            out_specs=(
                pl.BlockSpec((pl.Squeezed(), n_grasp, OUT_LANES), lambda b: (b, 0, 0)),
                pl.BlockSpec((pl.Squeezed(), 1, OUT_LANES), lambda b: (b, 0, 0)),
            ),
            compiler_params=pltpu.CompilerParams(
                dimension_semantics=("parallel",)),
        )(mesh_pts, ctx, tgt, eps, wmain, wdec)

        y_pred = y_slab[:, :, :n_decoders]
        mu = lat_slab[:, 0, :d_latents]
        sigma = lat_slab[:, 0, d_latents:2 * d_latents]
        return y_pred, (mu, sigma)

    return forward


# ---------------------------------------------------------------------------
# Parameter construction (deterministic, in-script).
# ---------------------------------------------------------------------------
def init_pointnet(key, c_in, n_out):
    dims = [(c_in, H1), (H1, H2), (H2, H3), (H3, H4), (H4, n_out)]
    params = []
    for fi, fo in dims:
        key, kw, kb = jax.random.split(key, 3)
        params.append(jax.random.normal(kw, (fi, fo), jnp.float32) / jnp.sqrt(fi))
        params.append(0.1 * jax.random.normal(kb, (1, fo), jnp.float32))
    return tuple(params), key


# ---------------------------------------------------------------------------
# Main
# ---------------------------------------------------------------------------
if __name__ == "__main__":
    d_latents = 8
    d_object_mesh_enc = 8
    n_decoders = 2
    n_batch, n_grasp = 2, 8
    n_mesh_points = 64
    n_geom_points = 16

    n_mesh_features = 3
    n_in_encoder = 6 + 1 + 1 + 1 + d_object_mesh_enc + 6          # 23
    n_in_decoder = 6 + 1 + d_object_mesh_enc + 6 + d_latents      # 29

    # ---- deterministic parameters ----
    pkey = jax.random.PRNGKey(42)
    stn_params, pkey = init_pointnet(pkey, n_mesh_features, 9)
    mesh_params, pkey = init_pointnet(pkey, n_mesh_features, d_object_mesh_enc)
    enc_params, pkey = init_pointnet(pkey, n_in_encoder, 2 * d_latents)
    dec_list = []
    for _ in range(n_decoders):
        dp, pkey = init_pointnet(pkey, n_in_decoder, 1)
        dec_list.append(dp)

    wmain, wdec, lmain, ldec = pack_params(
        stn_params, mesh_params, enc_params, dec_list,
        d_latents=d_latents, d_object_mesh_enc=d_object_mesh_enc)

    forward = build_forward(lmain, ldec, d_latents=d_latents,
                            n_decoders=n_decoders)

    # ---- deterministic example inputs (PyTorch-style layouts) ----
    key = jax.random.PRNGKey(0)
    ks = jax.random.split(key, 16)
    meshes = jax.random.normal(ks[0], (n_batch, n_mesh_features, n_mesh_points), jnp.float32)
    object_properties = jax.random.normal(ks[1], (n_batch, 5), jnp.float32)  # unused branch

    contexts = (
        jax.random.normal(ks[2], (n_batch, n_grasp, 3, n_geom_points), jnp.float32),  # geoms (unused: grasp_mesh=False)
        jax.random.normal(ks[3], (n_batch, n_grasp, 2, 3), jnp.float32),               # grasp_points
        jax.random.normal(ks[4], (n_batch, n_grasp, 2, 6), jnp.float32),               # curvatures (unused)
        jax.random.normal(ks[5], (n_batch, n_grasp, 2, 3), jnp.float32),               # normals
        jax.random.normal(ks[6], (n_batch, n_grasp, 3), jnp.float32),                  # midpoints (unused)
        jax.random.normal(ks[7], (n_batch, n_grasp), jnp.float32),                     # forces
        jax.random.uniform(ks[8], (n_batch, n_grasp), jnp.float32),                    # labels
        jax.random.uniform(ks[9], (n_batch, n_grasp), jnp.float32),                    # sizes
    )
    target_xs = (
        jax.random.normal(ks[10], (n_batch, n_grasp, 3, n_geom_points), jnp.float32),  # geoms
        jax.random.normal(ks[11], (n_batch, n_grasp, 2, 3), jnp.float32),              # grasp_points
        jax.random.normal(ks[12], (n_batch, n_grasp, 2, 6), jnp.float32),              # curvatures (unused)
        jax.random.normal(ks[13], (n_batch, n_grasp, 2, 3), jnp.float32),              # normals
        jax.random.normal(ks[14], (n_batch, n_grasp, 3), jnp.float32),                 # mids (unused)
        jax.random.normal(ks[15], (n_batch, n_grasp), jnp.float32),                    # forces
    )

    # Reparameterization noise for z = mu + sigma * eps (q_z.rsample()).
    eps = jax.random.normal(jax.random.PRNGKey(7), (n_batch, 1, d_latents), jnp.float32)

    y_pred, (mu, sigma) = forward(wmain, wdec, meshes, contexts, target_xs, eps)
    jax.block_until_ready((y_pred, mu, sigma))

    assert y_pred.shape == (n_batch, n_grasp, n_decoders)
    assert mu.shape == (n_batch, d_latents) and sigma.shape == (n_batch, d_latents)
    assert bool(jnp.all(jnp.isfinite(y_pred))) and bool(jnp.all(jnp.isfinite(mu)))
    assert bool(jnp.all(jnp.isfinite(sigma))) and bool(jnp.all(sigma > 0))
    print("KERNEL_OK")
</pallas_src>

<mosaic_0001>
module attributes {stable_mosaic.version = 11 : i64} {
  func.func @_gnp_kernel(%arg0: i32, %arg1: memref<1x64x3xf32, #tpu.memory_space<vmem>>, %arg2: memref<1x8x15xf32, #tpu.memory_space<vmem>>, %arg3: memref<1x8x13xf32, #tpu.memory_space<vmem>>, %arg4: memref<1x1x8xf32, #tpu.memory_space<vmem>>, %arg5: memref<1024x128xf32, #tpu.memory_space<vmem>>, %arg6: memref<648x256xf32, #tpu.memory_space<vmem>>, %arg7: memref<1x8x128xf32, #tpu.memory_space<vmem>>, %arg8: memref<1x1x128xf32, #tpu.memory_space<vmem>>) attributes {dimension_semantics = [#tpu.dimension_semantics<parallel>], iteration_bounds = array<i64: 2>, scalar_prefetch = 0 : i64, scratch_operands = 0 : i64, tpu.core_type = #tpu.core_type<tc>, window_params = [{transform_indices = @transform_0, window_bounds = array<i64: 1, 64, 3>}, {transform_indices = @transform_1, window_bounds = array<i64: 1, 8, 15>}, {transform_indices = @transform_2, window_bounds = array<i64: 1, 8, 13>}, {transform_indices = @transform_3, window_bounds = array<i64: 1, 1, 8>}, {pipeline_mode = #tpu.pipeline_mode<synchronous>, transform_indices = @transform_4, window_bounds = array<i64: 1024, 128>}, {pipeline_mode = #tpu.pipeline_mode<synchronous>, transform_indices = @transform_5, window_bounds = array<i64: 648, 256>}, {transform_indices = @transform_6, window_bounds = array<i64: 1, 8, 128>}, {transform_indices = @transform_7, window_bounds = array<i64: 1, 1, 128>}]} {
    %c0 = arith.constant 0 : index
    %c0_0 = arith.constant 0 : index
    %c0_1 = arith.constant 0 : index
    %0 = vector.load %arg1[%c0, %c0_0, %c0_1] : memref<1x64x3xf32, #tpu.memory_space<vmem>>, vector<1x64x3xf32>
    %1 = vector.shape_cast %0 : vector<1x64x3xf32> to vector<64x3xf32>
    %c0_2 = arith.constant 0 : index
    %c0_3 = arith.constant 0 : index
    %2 = vector.load %arg5[%c0_2, %c0_3] : memref<1024x128xf32, #tpu.memory_space<vmem>>, vector<3x32xf32>
    %cst = arith.constant dense<0.000000e+00> : vector<64x32xf32>
    %3 = tpu.matmul %1, %2, %cst {dimension_numbers = #tpu.dot_dimension_numbers<[1], [0], [0], [1], [0, 0, 1, 1], [], []>} : vector<64x3xf32>, vector<3x32xf32>, vector<64x32xf32> -> vector<64x32xf32>
    %c8 = arith.constant 8 : index
    %c0_4 = arith.constant 0 : index
    %4 = vector.load %arg5[%c8, %c0_4] : memref<1024x128xf32, #tpu.memory_space<vmem>>, vector<1x32xf32>
    %5 = vector.broadcast %4 : vector<1x32xf32> to vector<64x32xf32>
    %6 = arith.addf %3, %5 : vector<64x32xf32>
    %cst_5 = arith.constant 0.000000e+00 : f32
    %7 = vector.broadcast %cst_5 : f32 to vector<64x32xf32>
    %8 = arith.maximumf %6, %7 : vector<64x32xf32>
    %c16 = arith.constant 16 : index
    %c0_6 = arith.constant 0 : index
    %9 = vector.load %arg5[%c16, %c0_6] : memref<1024x128xf32, #tpu.memory_space<vmem>>, vector<32x64xf32>
    %cst_7 = arith.constant dense<0.000000e+00> : vector<64x64xf32>
    %10 = tpu.matmul %8, %9, %cst_7 {dimension_numbers = #tpu.dot_dimension_numbers<[1], [0], [0], [1], [0, 0, 1, 1], [], []>} : vector<64x32xf32>, vector<32x64xf32>, vector<64x64xf32> -> vector<64x64xf32>
    %c48 = arith.constant 48 : index
    %c0_8 = arith.constant 0 : index
    %11 = vector.load %arg5[%c48, %c0_8] : memref<1024x128xf32, #tpu.memory_space<vmem>>, vector<1x64xf32>
    %12 = vector.broadcast %11 : vector<1x64xf32> to vector<64x64xf32>
    %13 = arith.addf %10, %12 : vector<64x64xf32>
    %cst_9 = arith.constant 0.000000e+00 : f32
    %14 = vector.broadcast %cst_9 : f32 to vector<64x64xf32>
    %15 = arith.maximumf %13, %14 : vector<64x64xf32>
    %c56 = arith.constant 56 : index
    %c0_10 = arith.constant 0 : index
    %16 = vector.load %arg5[%c56, %c0_10] : memref<1024x128xf32, #tpu.memory_space<vmem>>, vector<64x128xf32>
    %cst_11 = arith.constant dense<0.000000e+00> : vector<64x128xf32>
    %17 = tpu.matmul %15, %16, %cst_11 {dimension_numbers = #tpu.dot_dimension_numbers<[1], [0], [0], [1], [0, 0, 1, 1], [], []>} : vector<64x64xf32>, vector<64x128xf32>, vector<64x128xf32> -> vector<64x128xf32>
    %c120 = arith.constant 120 : index
    %c0_12 = arith.constant 0 : index
    %18 = vector.load %arg5[%c120, %c0_12] : memref<1024x128xf32, #tpu.memory_space<vmem>>, vector<1x128xf32>
    %19 = vector.broadcast %18 : vector<1x128xf32> to vector<64x128xf32>
    %20 = arith.addf %17, %19 : vector<64x128xf32>
    %cst_13 = arith.constant 0.000000e+00 : f32
    %21 = vector.broadcast %cst_13 : f32 to vector<64x128xf32>
    %22 = arith.maximumf %20, %21 : vector<64x128xf32>
    %cst_14 = arith.constant dense<0xFF800000> : vector<128xf32>
    %23 = vector.multi_reduction <maximumf>, %22, %cst_14 [0] : vector<64x128xf32> to vector<128xf32>
    %24 = vector.shape_cast %23 : vector<128xf32> to vector<1x128xf32>
    %c128 = arith.constant 128 : index
    %c0_15 = arith.constant 0 : index
    %25 = vector.load %arg5[%c128, %c0_15] : memref<1024x128xf32, #tpu.memory_space<vmem>>, vector<128x64xf32>
    %cst_16 = arith.constant dense<0.000000e+00> : vector<1x64xf32>
    %26 = tpu.matmul %24, %25, %cst_16 {dimension_numbers = #tpu.dot_dimension_numbers<[1], [0], [0], [1], [0, 0, 1, 1], [], []>} : vector<1x128xf32>, vector<128x64xf32>, vector<1x64xf32> -> vector<1x64xf32>
    %c256 = arith.constant 256 : index
    %c0_17 = arith.constant 0 : index
    %27 = vector.load %arg5[%c256, %c0_17] : memref<1024x128xf32, #tpu.memory_space<vmem>>, vector<1x64xf32>
    %28 = arith.addf %26, %27 : vector<1x64xf32>
    %cst_18 = arith.constant 0.000000e+00 : f32
    %29 = vector.broadcast %cst_18 : f32 to vector<1x64xf32>
    %30 = arith.maximumf %28, %29 : vector<1x64xf32>
    %c264 = arith.constant 264 : index
    %c0_19 = arith.constant 0 : index
    %31 = vector.load %arg5[%c264, %c0_19] : memref<1024x128xf32, #tpu.memory_space<vmem>>, vector<64x9xf32>
    %cst_20 = arith.constant dense<0.000000e+00> : vector<1x9xf32>
    %32 = tpu.matmul %30, %31, %cst_20 {dimension_numbers = #tpu.dot_dimension_numbers<[1], [0], [0], [1], [0, 0, 1, 1], [], []>} : vector<1x64xf32>, vector<64x9xf32>, vector<1x9xf32> -> vector<1x9xf32>
    %c328 = arith.constant 328 : index
    %c0_21 = arith.constant 0 : index
    %33 = vector.load %arg5[%c328, %c0_21] : memref<1024x128xf32, #tpu.memory_space<vmem>>, vector<1x9xf32>
    %34 = arith.addf %32, %33 : vector<1x9xf32>
    %35 = vector.extract_strided_slice %1 {offsets = [0, 0], sizes = [64, 1], strides = [1, 1]} : vector<64x3xf32> to vector<64x1xf32>
    %36 = vector.extract_strided_slice %34 {offsets = [0, 0], sizes = [1, 3], strides = [1, 1]} : vector<1x9xf32> to vector<1x3xf32>
    %37 = vector.broadcast %35 : vector<64x1xf32> to vector<64x3xf32>
    %38 = vector.broadcast %36 : vector<1x3xf32> to vector<64x3xf32>
    %39 = arith.mulf %37, %38 : vector<64x3xf32>
    %40 = vector.extract_strided_slice %1 {offsets = [0, 1], sizes = [64, 1], strides = [1, 1]} : vector<64x3xf32> to vector<64x1xf32>
    %41 = vector.extract_strided_slice %34 {offsets = [0, 3], sizes = [1, 3], strides = [1, 1]} : vector<1x9xf32> to vector<1x3xf32>
    %42 = vector.broadcast %40 : vector<64x1xf32> to vector<64x3xf32>
    %43 = vector.broadcast %41 : vector<1x3xf32> to vector<64x3xf32>
    %44 = arith.mulf %42, %43 : vector<64x3xf32>
    %45 = arith.addf %39, %44 : vector<64x3xf32>
    %46 = vector.extract_strided_slice %1 {offsets = [0, 2], sizes = [64, 1], strides = [1, 1]} : vector<64x3xf32> to vector<64x1xf32>
    %47 = vector.extract_strided_slice %34 {offsets = [0, 6], sizes = [1, 3], strides = [1, 1]} : vector<1x9xf32> to vector<1x3xf32>
    %48 = vector.broadcast %46 : vector<64x1xf32> to vector<64x3xf32>
    %49 = vector.broadcast %47 : vector<1x3xf32> to vector<64x3xf32>
    %50 = arith.mulf %48, %49 : vector<64x3xf32>
    %51 = arith.addf %45, %50 : vector<64x3xf32>
    %52 = arith.addf %1, %51 : vector<64x3xf32>
    %c336 = arith.constant 336 : index
    %c0_22 = arith.constant 0 : index
    %53 = vector.load %arg5[%c336, %c0_22] : memref<1024x128xf32, #tpu.memory_space<vmem>>, vector<3x32xf32>
    %cst_23 = arith.constant dense<0.000000e+00> : vector<64x32xf32>
    %54 = tpu.matmul %52, %53, %cst_23 {dimension_numbers = #tpu.dot_dimension_numbers<[1], [0], [0], [1], [0, 0, 1, 1], [], []>} : vector<64x3xf32>, vector<3x32xf32>, vector<64x32xf32> -> vector<64x32xf32>
    %c344 = arith.constant 344 : index
    %c0_24 = arith.constant 0 : index
    %55 = vector.load %arg5[%c344, %c0_24] : memref<1024x128xf32, #tpu.memory_space<vmem>>, vector<1x32xf32>
    %56 = vector.broadcast %55 : vector<1x32xf32> to vector<64x32xf32>
    %57 = arith.addf %54, %56 : vector<64x32xf32>
    %cst_25 = arith.constant 0.000000e+00 : f32
    %58 = vector.broadcast %cst_25 : f32 to vector<64x32xf32>
    %59 = arith.maximumf %57, %58 : vector<64x32xf32>
    %c352 = arith.constant 352 : index
    %c0_26 = arith.constant 0 : index
    %60 = vector.load %arg5[%c352, %c0_26] : memref<1024x128xf32, #tpu.memory_space<vmem>>, vector<32x64xf32>
    %cst_27 = arith.constant dense<0.000000e+00> : vector<64x64xf32>
    %61 = tpu.matmul %59, %60, %cst_27 {dimension_numbers = #tpu.dot_dimension_numbers<[1], [0], [0], [1], [0, 0, 1, 1], [], []>} : vector<64x32xf32>, vector<32x64xf32>, vector<64x64xf32> -> vector<64x64xf32>
    %c384 = arith.constant 384 : index
    %c0_28 = arith.constant 0 : index
    %62 = vector.load %arg5[%c384, %c0_28] : memref<1024x128xf32, #tpu.memory_space<vmem>>, vector<1x64xf32>
    %63 = vector.broadcast %62 : vector<1x64xf32> to vector<64x64xf32>
    %64 = arith.addf %61, %63 : vector<64x64xf32>
    %cst_29 = arith.constant 0.000000e+00 : f32
    %65 = vector.broadcast %cst_29 : f32 to vector<64x64xf32>
    %66 = arith.maximumf %64, %65 : vector<64x64xf32>
    %c392 = arith.constant 392 : index
    %c0_30 = arith.constant 0 : index
    %67 = vector.load %arg5[%c392, %c0_30] : memref<1024x128xf32, #tpu.memory_space<vmem>>, vector<64x128xf32>
    %cst_31 = arith.constant dense<0.000000e+00> : vector<64x128xf32>
    %68 = tpu.matmul %66, %67, %cst_31 {dimension_numbers = #tpu.dot_dimension_numbers<[1], [0], [0], [1], [0, 0, 1, 1], [], []>} : vector<64x64xf32>, vector<64x128xf32>, vector<64x128xf32> -> vector<64x128xf32>
    %c456 = arith.constant 456 : index
    %c0_32 = arith.constant 0 : index
    %69 = vector.load %arg5[%c456, %c0_32] : memref<1024x128xf32, #tpu.memory_space<vmem>>, vector<1x128xf32>
    %70 = vector.broadcast %69 : vector<1x128xf32> to vector<64x128xf32>
    %71 = arith.addf %68, %70 : vector<64x128xf32>
    %cst_33 = arith.constant 0.000000e+00 : f32
    %72 = vector.broadcast %cst_33 : f32 to vector<64x128xf32>
    %73 = arith.maximumf %71, %72 : vector<64x128xf32>
    %cst_34 = arith.constant dense<0xFF800000> : vector<128xf32>
    %74 = vector.multi_reduction <maximumf>, %73, %cst_34 [0] : vector<64x128xf32> to vector<128xf32>
    %75 = vector.shape_cast %74 : vector<128xf32> to vector<1x128xf32>
    %c464 = arith.constant 464 : index
    %c0_35 = arith.constant 0 : index
    %76 = vector.load %arg5[%c464, %c0_35] : memref<1024x128xf32, #tpu.memory_space<vmem>>, vector<128x64xf32>
    %cst_36 = arith.constant dense<0.000000e+00> : vector<1x64xf32>
    %77 = tpu.matmul %75, %76, %cst_36 {dimension_numbers = #tpu.dot_dimension_numbers<[1], [0], [0], [1], [0, 0, 1, 1], [], []>} : vector<1x128xf32>, vector<128x64xf32>, vector<1x64xf32> -> vector<1x64xf32>
    %c592 = arith.constant 592 : index
    %c0_37 = arith.constant 0 : index
    %78 = vector.load %arg5[%c592, %c0_37] : memref<1024x128xf32, #tpu.memory_space<vmem>>, vector<1x64xf32>
    %79 = arith.addf %77, %78 : vector<1x64xf32>
    %cst_38 = arith.constant 0.000000e+00 : f32
    %80 = vector.broadcast %cst_38 : f32 to vector<1x64xf32>
    %81 = arith.maximumf %79, %80 : vector<1x64xf32>
    %c600 = arith.constant 600 : index
    %c0_39 = arith.constant 0 : index
    %82 = vector.load %arg5[%c600, %c0_39] : memref<1024x128xf32, #tpu.memory_space<vmem>>, vector<64x8xf32>
    %cst_40 = arith.constant dense<0.000000e+00> : vector<1x8xf32>
    %83 = tpu.matmul %81, %82, %cst_40 {dimension_numbers = #tpu.dot_dimension_numbers<[1], [0], [0], [1], [0, 0, 1, 1], [], []>} : vector<1x64xf32>, vector<64x8xf32>, vector<1x8xf32> -> vector<1x8xf32>
    %c664 = arith.constant 664 : index
    %c0_41 = arith.constant 0 : index
    %84 = vector.load %arg5[%c664, %c0_41] : memref<1024x128xf32, #tpu.memory_space<vmem>>, vector<1x8xf32>
    %85 = arith.addf %83, %84 : vector<1x8xf32>
    %c0_42 = arith.constant 0 : index
    %c0_43 = arith.constant 0 : index
    %c0_44 = arith.constant 0 : index
    %86 = vector.load %arg2[%c0_42, %c0_43, %c0_44] : memref<1x8x15xf32, #tpu.memory_space<vmem>>, vector<1x8x15xf32>
    %87 = vector.shape_cast %86 : vector<1x8x15xf32> to vector<8x15xf32>
    %c672 = arith.constant 672 : index
    %c0_45 = arith.constant 0 : index
    %88 = vector.load %arg5[%c672, %c0_45] : memref<1024x128xf32, #tpu.memory_space<vmem>>, vector<15x32xf32>
    %cst_46 = arith.constant dense<0.000000e+00> : vector<8x32xf32>
    %89 = tpu.matmul %87, %88, %cst_46 {dimension_numbers = #tpu.dot_dimension_numbers<[1], [0], [0], [1], [0, 0, 1, 1], [], []>} : vector<8x15xf32>, vector<15x32xf32>, vector<8x32xf32> -> vector<8x32xf32>
    %c688 = arith.constant 688 : index
    %c0_47 = arith.constant 0 : index
    %90 = vector.load %arg5[%c688, %c0_47] : memref<1024x128xf32, #tpu.memory_space<vmem>>, vector<8x32xf32>
    %cst_48 = arith.constant dense<0.000000e+00> : vector<1x32xf32>
    %91 = tpu.matmul %85, %90, %cst_48 {dimension_numbers = #tpu.dot_dimension_numbers<[1], [0], [0], [1], [0, 0, 1, 1], [], []>} : vector<1x8xf32>, vector<8x32xf32>, vector<1x32xf32> -> vector<1x32xf32>
    %92 = vector.broadcast %91 : vector<1x32xf32> to vector<8x32xf32>
    %93 = arith.addf %89, %92 : vector<8x32xf32>
    %c696 = arith.constant 696 : index
    %c0_49 = arith.constant 0 : index
    %94 = vector.load %arg5[%c696, %c0_49] : memref<1024x128xf32, #tpu.memory_space<vmem>>, vector<1x32xf32>
    %95 = vector.broadcast %94 : vector<1x32xf32> to vector<8x32xf32>
    %96 = arith.addf %93, %95 : vector<8x32xf32>
    %97 = vector.extract_strided_slice %34 {offsets = [0, 0], sizes = [1, 1], strides = [1, 1]} : vector<1x9xf32> to vector<1x1xf32>
    %98 = vector.extract_strided_slice %88 {offsets = [0, 0], sizes = [1, 32], strides = [1, 1]} : vector<15x32xf32> to vector<1x32xf32>
    %99 = vector.broadcast %97 : vector<1x1xf32> to vector<1x32xf32>
    %100 = arith.mulf %99, %98 : vector<1x32xf32>
    %101 = vector.extract_strided_slice %34 {offsets = [0, 1], sizes = [1, 1], strides = [1, 1]} : vector<1x9xf32> to vector<1x1xf32>
    %102 = vector.extract_strided_slice %88 {offsets = [1, 0], sizes = [1, 32], strides = [1, 1]} : vector<15x32xf32> to vector<1x32xf32>
    %103 = vector.broadcast %101 : vector<1x1xf32> to vector<1x32xf32>
    %104 = arith.mulf %103, %102 : vector<1x32xf32>
    %105 = arith.addf %100, %104 : vector<1x32xf32>
    %106 = vector.extract_strided_slice %34 {offsets = [0, 2], sizes = [1, 1], strides = [1, 1]} : vector<1x9xf32> to vector<1x1xf32>
    %107 = vector.extract_strided_slice %88 {offsets = [2, 0], sizes = [1, 32], strides = [1, 1]} : vector<15x32xf32> to vector<1x32xf32>
    %108 = vector.broadcast %106 : vector<1x1xf32> to vector<1x32xf32>
    %109 = arith.mulf %108, %107 : vector<1x32xf32>
    %110 = arith.addf %105, %109 : vector<1x32xf32>
    %111 = vector.extract_strided_slice %87 {offsets = [0, 0], sizes = [8, 1], strides = [1, 1]} : vector<8x15xf32> to vector<8x1xf32>
    %112 = vector.broadcast %111 : vector<8x1xf32> to vector<8x32xf32>
    %113 = vector.broadcast %110 : vector<1x32xf32> to vector<8x32xf32>
    %114 = arith.mulf %112, %113 : vector<8x32xf32>
    %115 = vector.extract_strided_slice %34 {offsets = [0, 3], sizes = [1, 1], strides = [1, 1]} : vector<1x9xf32> to vector<1x1xf32>
    %116 = vector.extract_strided_slice %88 {offsets = [0, 0], sizes = [1, 32], strides = [1, 1]} : vector<15x32xf32> to vector<1x32xf32>
    %117 = vector.broadcast %115 : vector<1x1xf32> to vector<1x32xf32>
    %118 = arith.mulf %117, %116 : vector<1x32xf32>
    %119 = vector.extract_strided_slice %34 {offsets = [0, 4], sizes = [1, 1], strides = [1, 1]} : vector<1x9xf32> to vector<1x1xf32>
    %120 = vector.extract_strided_slice %88 {offsets = [1, 0], sizes = [1, 32], strides = [1, 1]} : vector<15x32xf32> to vector<1x32xf32>
    %121 = vector.broadcast %119 : vector<1x1xf32> to vector<1x32xf32>
    %122 = arith.mulf %121, %120 : vector<1x32xf32>
    %123 = arith.addf %118, %122 : vector<1x32xf32>
    %124 = vector.extract_strided_slice %34 {offsets = [0, 5], sizes = [1, 1], strides = [1, 1]} : vector<1x9xf32> to vector<1x1xf32>
    %125 = vector.extract_strided_slice %88 {offsets = [2, 0], sizes = [1, 32], strides = [1, 1]} : vector<15x32xf32> to vector<1x32xf32>
    %126 = vector.broadcast %124 : vector<1x1xf32> to vector<1x32xf32>
    %127 = arith.mulf %126, %125 : vector<1x32xf32>
    %128 = arith.addf %123, %127 : vector<1x32xf32>
    %129 = vector.extract_strided_slice %87 {offsets = [0, 1], sizes = [8, 1], strides = [1, 1]} : vector<8x15xf32> to vector<8x1xf32>
    %130 = vector.broadcast %129 : vector<8x1xf32> to vector<8x32xf32>
    %131 = vector.broadcast %128 : vector<1x32xf32> to vector<8x32xf32>
    %132 = arith.mulf %130, %131 : vector<8x32xf32>
    %133 = arith.addf %114, %132 : vector<8x32xf32>
    %134 = vector.extract_strided_slice %34 {offsets = [0, 6], sizes = [1, 1], strides = [1, 1]} : vector<1x9xf32> to vector<1x1xf32>
    %135 = vector.extract_strided_slice %88 {offsets = [0, 0], sizes = [1, 32], strides = [1, 1]} : vector<15x32xf32> to vector<1x32xf32>
    %136 = vector.broadcast %134 : vector<1x1xf32> to vector<1x32xf32>
    %137 = arith.mulf %136, %135 : vector<1x32xf32>
    %138 = vector.extract_strided_slice %34 {offsets = [0, 7], sizes = [1, 1], strides = [1, 1]} : vector<1x9xf32> to vector<1x1xf32>
    %139 = vector.extract_strided_slice %88 {offsets = [1, 0], sizes = [1, 32], strides = [1, 1]} : vector<15x32xf32> to vector<1x32xf32>
    %140 = vector.broadcast %138 : vector<1x1xf32> to vector<1x32xf32>
    %141 = arith.mulf %140, %139 : vector<1x32xf32>
    %142 = arith.addf %137, %141 : vector<1x32xf32>
    %143 = vector.extract_strided_slice %34 {offsets = [0, 8], sizes = [1, 1], strides = [1, 1]} : vector<1x9xf32> to vector<1x1xf32>
    %144 = vector.extract_strided_slice %88 {offsets = [2, 0], sizes = [1, 32], strides = [1, 1]} : vector<15x32xf32> to vector<1x32xf32>
    %145 = vector.broadcast %143 : vector<1x1xf32> to vector<1x32xf32>
    %146 = arith.mulf %145, %144 : vector<1x32xf32>
    %147 = arith.addf %142, %146 : vector<1x32xf32>
    %148 = vector.extract_strided_slice %87 {offsets = [0, 2], sizes = [8, 1], strides = [1, 1]} : vector<8x15xf32> to vector<8x1xf32>
    %149 = vector.broadcast %148 : vector<8x1xf32> to vector<8x32xf32>
    %150 = vector.broadcast %147 : vector<1x32xf32> to vector<8x32xf32>
    %151 = arith.mulf %149, %150 : vector<8x32xf32>
    %152 = arith.addf %133, %151 : vector<8x32xf32>
    %153 = vector.extract_strided_slice %34 {offsets = [0, 0], sizes = [1, 1], strides = [1, 1]} : vector<1x9xf32> to vector<1x1xf32>
    %154 = vector.extract_strided_slice %88 {offsets = [3, 0], sizes = [1, 32], strides = [1, 1]} : vector<15x32xf32> to vector<1x32xf32>
    %155 = vector.broadcast %153 : vector<1x1xf32> to vector<1x32xf32>
    %156 = arith.mulf %155, %154 : vector<1x32xf32>
    %157 = vector.extract_strided_slice %34 {offsets = [0, 1], sizes = [1, 1], strides = [1, 1]} : vector<1x9xf32> to vector<1x1xf32>
    %158 = vector.extract_strided_slice %88 {offsets = [4, 0], sizes = [1, 32], strides = [1, 1]} : vector<15x32xf32> to vector<1x32xf32>
    %159 = vector.broadcast %157 : vector<1x1xf32> to vector<1x32xf32>
    %160 = arith.mulf %159, %158 : vector<1x32xf32>
    %161 = arith.addf %156, %160 : vector<1x32xf32>
    %162 = vector.extract_strided_slice %34 {offsets = [0, 2], sizes = [1, 1], strides = [1, 1]} : vector<1x9xf32> to vector<1x1xf32>
    %163 = vector.extract_strided_slice %88 {offsets = [5, 0], sizes = [1, 32], strides = [1, 1]} : vector<15x32xf32> to vector<1x32xf32>
    %164 = vector.broadcast %162 : vector<1x1xf32> to vector<1x32xf32>
    %165 = arith.mulf %164, %163 : vector<1x32xf32>
    %166 = arith.addf %161, %165 : vector<1x32xf32>
    %167 = vector.extract_strided_slice %87 {offsets = [0, 3], sizes = [8, 1], strides = [1, 1]} : vector<8x15xf32> to vector<8x1xf32>
    %168 = vector.broadcast %167 : vector<8x1xf32> to vector<8x32xf32>
    %169 = vector.broadcast %166 : vector<1x32xf32> to vector<8x32xf32>
    %170 = arith.mulf %168, %169 : vector<8x32xf32>
    %171 = arith.addf %152, %170 : vector<8x32xf32>
    %172 = vector.extract_strided_slice %34 {offsets = [0, 3], sizes = [1, 1], strides = [1, 1]} : vector<1x9xf32> to vector<1x1xf32>
    %173 = vector.extract_strided_slice %88 {offsets = [3, 0], sizes = [1, 32], strides = [1, 1]} : vector<15x32xf32> to vector<1x32xf32>
    %174 = vector.broadcast %172 : vector<1x1xf32> to vector<1x32xf32>
    %175 = arith.mulf %174, %173 : vector<1x32xf32>
    %176 = vector.extract_strided_slice %34 {offsets = [0, 4], sizes = [1, 1], strides = [1, 1]} : vector<1x9xf32> to vector<1x1xf32>
    %177 = vector.extract_strided_slice %88 {offsets = [4, 0], sizes = [1, 32], strides = [1, 1]} : vector<15x32xf32> to vector<1x32xf32>
    %178 = vector.broadcast %176 : vector<1x1xf32> to vector<1x32xf32>
    %179 = arith.mulf %178, %177 : vector<1x32xf32>
    %180 = arith.addf %175, %179 : vector<1x32xf32>
    %181 = vector.extract_strided_slice %34 {offsets = [0, 5], sizes = [1, 1], strides = [1, 1]} : vector<1x9xf32> to vector<1x1xf32>
    %182 = vector.extract_strided_slice %88 {offsets = [5, 0], sizes = [1, 32], strides = [1, 1]} : vector<15x32xf32> to vector<1x32xf32>
    %183 = vector.broadcast %181 : vector<1x1xf32> to vector<1x32xf32>
    %184 = arith.mulf %183, %182 : vector<1x32xf32>
    %185 = arith.addf %180, %184 : vector<1x32xf32>
    %186 = vector.extract_strided_slice %87 {offsets = [0, 4], sizes = [8, 1], strides = [1, 1]} : vector<8x15xf32> to vector<8x1xf32>
    %187 = vector.broadcast %186 : vector<8x1xf32> to vector<8x32xf32>
    %188 = vector.broadcast %185 : vector<1x32xf32> to vector<8x32xf32>
    %189 = arith.mulf %187, %188 : vector<8x32xf32>
    %190 = arith.addf %171, %189 : vector<8x32xf32>
    %191 = vector.extract_strided_slice %34 {offsets = [0, 6], sizes = [1, 1], strides = [1, 1]} : vector<1x9xf32> to vector<1x1xf32>
    %192 = vector.extract_strided_slice %88 {offsets = [3, 0], sizes = [1, 32], strides = [1, 1]} : vector<15x32xf32> to vector<1x32xf32>
    %193 = vector.broadcast %191 : vector<1x1xf32> to vector<1x32xf32>
    %194 = arith.mulf %193, %192 : vector<1x32xf32>
    %195 = vector.extract_strided_slice %34 {offsets = [0, 7], sizes = [1, 1], strides = [1, 1]} : vector<1x9xf32> to vector<1x1xf32>
    %196 = vector.extract_strided_slice %88 {offsets = [4, 0], sizes = [1, 32], strides = [1, 1]} : vector<15x32xf32> to vector<1x32xf32>
    %197 = vector.broadcast %195 : vector<1x1xf32> to vector<1x32xf32>
    %198 = arith.mulf %197, %196 : vector<1x32xf32>
    %199 = arith.addf %194, %198 : vector<1x32xf32>
    %200 = vector.extract_strided_slice %34 {offsets = [0, 8], sizes = [1, 1], strides = [1, 1]} : vector<1x9xf32> to vector<1x1xf32>
    %201 = vector.extract_strided_slice %88 {offsets = [5, 0], sizes = [1, 32], strides = [1, 1]} : vector<15x32xf32> to vector<1x32xf32>
    %202 = vector.broadcast %200 : vector<1x1xf32> to vector<1x32xf32>
    %203 = arith.mulf %202, %201 : vector<1x32xf32>
    %204 = arith.addf %199, %203 : vector<1x32xf32>
    %205 = vector.extract_strided_slice %87 {offsets = [0, 5], sizes = [8, 1], strides = [1, 1]} : vector<8x15xf32> to vector<8x1xf32>
    %206 = vector.broadcast %205 : vector<8x1xf32> to vector<8x32xf32>
    %207 = vector.broadcast %204 : vector<1x32xf32> to vector<8x32xf32>
    %208 = arith.mulf %206, %207 : vector<8x32xf32>
    %209 = arith.addf %190, %208 : vector<8x32xf32>
    %210 = vector.extract_strided_slice %34 {offsets = [0, 0], sizes = [1, 1], strides = [1, 1]} : vector<1x9xf32> to vector<1x1xf32>
    %211 = vector.extract_strided_slice %88 {offsets = [6, 0], sizes = [1, 32], strides = [1, 1]} : vector<15x32xf32> to vector<1x32xf32>
    %212 = vector.broadcast %210 : vector<1x1xf32> to vector<1x32xf32>
    %213 = arith.mulf %212, %211 : vector<1x32xf32>
    %214 = vector.extract_strided_slice %34 {offsets = [0, 1], sizes = [1, 1], strides = [1, 1]} : vector<1x9xf32> to vector<1x1xf32>
    %215 = vector.extract_strided_slice %88 {offsets = [7, 0], sizes = [1, 32], strides = [1, 1]} : vector<15x32xf32> to vector<1x32xf32>
    %216 = vector.broadcast %214 : vector<1x1xf32> to vector<1x32xf32>
    %217 = arith.mulf %216, %215 : vector<1x32xf32>
    %218 = arith.addf %213, %217 : vector<1x32xf32>
    %219 = vector.extract_strided_slice %34 {offsets = [0, 2], sizes = [1, 1], strides = [1, 1]} : vector<1x9xf32> to vector<1x1xf32>
    %220 = vector.extract_strided_slice %88 {offsets = [8, 0], sizes = [1, 32], strides = [1, 1]} : vector<15x32xf32> to vector<1x32xf32>
    %221 = vector.broadcast %219 : vector<1x1xf32> to vector<1x32xf32>
    %222 = arith.mulf %221, %220 : vector<1x32xf32>
    %223 = arith.addf %218, %222 : vector<1x32xf32>
    %224 = vector.extract_strided_slice %87 {offsets = [0, 6], sizes = [8, 1], strides = [1, 1]} : vector<8x15xf32> to vector<8x1xf32>
    %225 = vector.broadcast %224 : vector<8x1xf32> to vector<8x32xf32>
    %226 = vector.broadcast %223 : vector<1x32xf32> to vector<8x32xf32>
    %227 = arith.mulf %225, %226 : vector<8x32xf32>
    %228 = arith.addf %209, %227 : vector<8x32xf32>
    %229 = vector.extract_strided_slice %34 {offsets = [0, 3], sizes = [1, 1], strides = [1, 1]} : vector<1x9xf32> to vector<1x1xf32>
    %230 = vector.extract_strided_slice %88 {offsets = [6, 0], sizes = [1, 32], strides = [1, 1]} : vector<15x32xf32> to vector<1x32xf32>
    %231 = vector.broadcast %229 : vector<1x1xf32> to vector<1x32xf32>
    %232 = arith.mulf %231, %230 : vector<1x32xf32>
    %233 = vector.extract_strided_slice %34 {offsets = [0, 4], sizes = [1, 1], strides = [1, 1]} : vector<1x9xf32> to vector<1x1xf32>
    %234 = vector.extract_strided_slice %88 {offsets = [7, 0], sizes = [1, 32], strides = [1, 1]} : vector<15x32xf32> to vector<1x32xf32>
    %235 = vector.broadcast %233 : vector<1x1xf32> to vector<1x32xf32>
    %236 = arith.mulf %235, %234 : vector<1x32xf32>
    %237 = arith.addf %232, %236 : vector<1x32xf32>
    %238 = vector.extract_strided_slice %34 {offsets = [0, 5], sizes = [1, 1], strides = [1, 1]} : vector<1x9xf32> to vector<1x1xf32>
    %239 = vector.extract_strided_slice %88 {offsets = [8, 0], sizes = [1, 32], strides = [1, 1]} : vector<15x32xf32> to vector<1x32xf32>
    %240 = vector.broadcast %238 : vector<1x1xf32> to vector<1x32xf32>
    %241 = arith.mulf %240, %239 : vector<1x32xf32>
    %242 = arith.addf %237, %241 : vector<1x32xf32>
    %243 = vector.extract_strided_slice %87 {offsets = [0, 7], sizes = [8, 1], strides = [1, 1]} : vector<8x15xf32> to vector<8x1xf32>
    %244 = vector.broadcast %243 : vector<8x1xf32> to vector<8x32xf32>
    %245 = vector.broadcast %242 : vector<1x32xf32> to vector<8x32xf32>
    %246 = arith.mulf %244, %245 : vector<8x32xf32>
    %247 = arith.addf %228, %246 : vector<8x32xf32>
    %248 = vector.extract_strided_slice %34 {offsets = [0, 6], sizes = [1, 1], strides = [1, 1]} : vector<1x9xf32> to vector<1x1xf32>
    %249 = vector.extract_strided_slice %88 {offsets = [6, 0], sizes = [1, 32], strides = [1, 1]} : vector<15x32xf32> to vector<1x32xf32>
    %250 = vector.broadcast %248 : vector<1x1xf32> to vector<1x32xf32>
    %251 = arith.mulf %250, %249 : vector<1x32xf32>
    %252 = vector.extract_strided_slice %34 {offsets = [0, 7], sizes = [1, 1], strides = [1, 1]} : vector<1x9xf32> to vector<1x1xf32>
    %253 = vector.extract_strided_slice %88 {offsets = [7, 0], sizes = [1, 32], strides = [1, 1]} : vector<15x32xf32> to vector<1x32xf32>
    %254 = vector.broadcast %252 : vector<1x1xf32> to vector<1x32xf32>
    %255 = arith.mulf %254, %253 : vector<1x32xf32>
    %256 = arith.addf %251, %255 : vector<1x32xf32>
    %257 = vector.extract_strided_slice %34 {offsets = [0, 8], sizes = [1, 1], strides = [1, 1]} : vector<1x9xf32> to vector<1x1xf32>
    %258 = vector.extract_strided_slice %88 {offsets = [8, 0], sizes = [1, 32], strides = [1, 1]} : vector<15x32xf32> to vector<1x32xf32>
    %259 = vector.broadcast %257 : vector<1x1xf32> to vector<1x32xf32>
    %260 = arith.mulf %259, %258 : vector<1x32xf32>
    %261 = arith.addf %256, %260 : vector<1x32xf32>
    %262 = vector.extract_strided_slice %87 {offsets = [0, 8], sizes = [8, 1], strides = [1, 1]} : vector<8x15xf32> to vector<8x1xf32>
    %263 = vector.broadcast %262 : vector<8x1xf32> to vector<8x32xf32>
    %264 = vector.broadcast %261 : vector<1x32xf32> to vector<8x32xf32>
    %265 = arith.mulf %263, %264 : vector<8x32xf32>
    %266 = arith.addf %247, %265 : vector<8x32xf32>
    %267 = vector.extract_strided_slice %34 {offsets = [0, 0], sizes = [1, 1], strides = [1, 1]} : vector<1x9xf32> to vector<1x1xf32>
    %268 = vector.extract_strided_slice %88 {offsets = [9, 0], sizes = [1, 32], strides = [1, 1]} : vector<15x32xf32> to vector<1x32xf32>
    %269 = vector.broadcast %267 : vector<1x1xf32> to vector<1x32xf32>
    %270 = arith.mulf %269, %268 : vector<1x32xf32>
    %271 = vector.extract_strided_slice %34 {offsets = [0, 1], sizes = [1, 1], strides = [1, 1]} : vector<1x9xf32> to vector<1x1xf32>
    %272 = vector.extract_strided_slice %88 {offsets = [10, 0], sizes = [1, 32], strides = [1, 1]} : vector<15x32xf32> to vector<1x32xf32>
    %273 = vector.broadcast %271 : vector<1x1xf32> to vector<1x32xf32>
    %274 = arith.mulf %273, %272 : vector<1x32xf32>
    %275 = arith.addf %270, %274 : vector<1x32xf32>
    %276 = vector.extract_strided_slice %34 {offsets = [0, 2], sizes = [1, 1], strides = [1, 1]} : vector<1x9xf32> to vector<1x1xf32>
    %277 = vector.extract_strided_slice %88 {offsets = [11, 0], sizes = [1, 32], strides = [1, 1]} : vector<15x32xf32> to vector<1x32xf32>
    %278 = vector.broadcast %276 : vector<1x1xf32> to vector<1x32xf32>
    %279 = arith.mulf %278, %277 : vector<1x32xf32>
    %280 = arith.addf %275, %279 : vector<1x32xf32>
    %281 = vector.extract_strided_slice %87 {offsets = [0, 9], sizes = [8, 1], strides = [1, 1]} : vector<8x15xf32> to vector<8x1xf32>
    %282 = vector.broadcast %281 : vector<8x1xf32> to vector<8x32xf32>
    %283 = vector.broadcast %280 : vector<1x32xf32> to vector<8x32xf32>
    %284 = arith.mulf %282, %283 : vector<8x32xf32>
    %285 = arith.addf %266, %284 : vector<8x32xf32>
    %286 = vector.extract_strided_slice %34 {offsets = [0, 3], sizes = [1, 1], strides = [1, 1]} : vector<1x9xf32> to vector<1x1xf32>
    %287 = vector.extract_strided_slice %88 {offsets = [9, 0], sizes = [1, 32], strides = [1, 1]} : vector<15x32xf32> to vector<1x32xf32>
    %288 = vector.broadcast %286 : vector<1x1xf32> to vector<1x32xf32>
    %289 = arith.mulf %288, %287 : vector<1x32xf32>
    %290 = vector.extract_strided_slice %34 {offsets = [0, 4], sizes = [1, 1], strides = [1, 1]} : vector<1x9xf32> to vector<1x1xf32>
    %291 = vector.extract_strided_slice %88 {offsets = [10, 0], sizes = [1, 32], strides = [1, 1]} : vector<15x32xf32> to vector<1x32xf32>
    %292 = vector.broadcast %290 : vector<1x1xf32> to vector<1x32xf32>
    %293 = arith.mulf %292, %291 : vector<1x32xf32>
    %294 = arith.addf %289, %293 : vector<1x32xf32>
    %295 = vector.extract_strided_slice %34 {offsets = [0, 5], sizes = [1, 1], strides = [1, 1]} : vector<1x9xf32> to vector<1x1xf32>
    %296 = vector.extract_strided_slice %88 {offsets = [11, 0], sizes = [1, 32], strides = [1, 1]} : vector<15x32xf32> to vector<1x32xf32>
    %297 = vector.broadcast %295 : vector<1x1xf32> to vector<1x32xf32>
    %298 = arith.mulf %297, %296 : vector<1x32xf32>
    %299 = arith.addf %294, %298 : vector<1x32xf32>
    %300 = vector.extract_strided_slice %87 {offsets = [0, 10], sizes = [8, 1], strides = [1, 1]} : vector<8x15xf32> to vector<8x1xf32>
    %301 = vector.broadcast %300 : vector<8x1xf32> to vector<8x32xf32>
    %302 = vector.broadcast %299 : vector<1x32xf32> to vector<8x32xf32>
    %303 = arith.mulf %301, %302 : vector<8x32xf32>
    %304 = arith.addf %285, %303 : vector<8x32xf32>
    %305 = vector.extract_strided_slice %34 {offsets = [0, 6], sizes = [1, 1], strides = [1, 1]} : vector<1x9xf32> to vector<1x1xf32>
    %306 = vector.extract_strided_slice %88 {offsets = [9, 0], sizes = [1, 32], strides = [1, 1]} : vector<15x32xf32> to vector<1x32xf32>
    %307 = vector.broadcast %305 : vector<1x1xf32> to vector<1x32xf32>
    %308 = arith.mulf %307, %306 : vector<1x32xf32>
    %309 = vector.extract_strided_slice %34 {offsets = [0, 7], sizes = [1, 1], strides = [1, 1]} : vector<1x9xf32> to vector<1x1xf32>
    %310 = vector.extract_strided_slice %88 {offsets = [10, 0], sizes = [1, 32], strides = [1, 1]} : vector<15x32xf32> to vector<1x32xf32>
    %311 = vector.broadcast %309 : vector<1x1xf32> to vector<1x32xf32>
    %312 = arith.mulf %311, %310 : vector<1x32xf32>
    %313 = arith.addf %308, %312 : vector<1x32xf32>
    %314 = vector.extract_strided_slice %34 {offsets = [0, 8], sizes = [1, 1], strides = [1, 1]} : vector<1x9xf32> to vector<1x1xf32>
    %315 = vector.extract_strided_slice %88 {offsets = [11, 0], sizes = [1, 32], strides = [1, 1]} : vector<15x32xf32> to vector<1x32xf32>
    %316 = vector.broadcast %314 : vector<1x1xf32> to vector<1x32xf32>
    %317 = arith.mulf %316, %315 : vector<1x32xf32>
    %318 = arith.addf %313, %317 : vector<1x32xf32>
    %319 = vector.extract_strided_slice %87 {offsets = [0, 11], sizes = [8, 1], strides = [1, 1]} : vector<8x15xf32> to vector<8x1xf32>
    %320 = vector.broadcast %319 : vector<8x1xf32> to vector<8x32xf32>
    %321 = vector.broadcast %318 : vector<1x32xf32> to vector<8x32xf32>
    %322 = arith.mulf %320, %321 : vector<8x32xf32>
    %323 = arith.addf %304, %322 : vector<8x32xf32>
    %324 = arith.addf %96, %323 : vector<8x32xf32>
    %cst_50 = arith.constant 0.000000e+00 : f32
    %325 = vector.broadcast %cst_50 : f32 to vector<8x32xf32>
    %326 = arith.maximumf %324, %325 : vector<8x32xf32>
    %c704 = arith.constant 704 : index
    %c0_51 = arith.constant 0 : index
    %327 = vector.load %arg5[%c704, %c0_51] : memref<1024x128xf32, #tpu.memory_space<vmem>>, vector<32x64xf32>
    %cst_52 = arith.constant dense<0.000000e+00> : vector<8x64xf32>
    %328 = tpu.matmul %326, %327, %cst_52 {dimension_numbers = #tpu.dot_dimension_numbers<[1], [0], [0], [1], [0, 0, 1, 1], [], []>} : vector<8x32xf32>, vector<32x64xf32>, vector<8x64xf32> -> vector<8x64xf32>
    %c736 = arith.constant 736 : index
    %c0_53 = arith.constant 0 : index
    %329 = vector.load %arg5[%c736, %c0_53] : memref<1024x128xf32, #tpu.memory_space<vmem>>, vector<1x64xf32>
    %330 = vector.broadcast %329 : vector<1x64xf32> to vector<8x64xf32>
    %331 = arith.addf %328, %330 : vector<8x64xf32>
    %cst_54 = arith.constant 0.000000e+00 : f32
    %332 = vector.broadcast %cst_54 : f32 to vector<8x64xf32>
    %333 = arith.maximumf %331, %332 : vector<8x64xf32>
    %c744 = arith.constant 744 : index
    %c0_55 = arith.constant 0 : index
    %334 = vector.load %arg5[%c744, %c0_55] : memref<1024x128xf32, #tpu.memory_space<vmem>>, vector<64x128xf32>
    %cst_56 = arith.constant dense<0.000000e+00> : vector<8x128xf32>
    %335 = tpu.matmul %333, %334, %cst_56 {dimension_numbers = #tpu.dot_dimension_numbers<[1], [0], [0], [1], [0, 0, 1, 1], [], []>} : vector<8x64xf32>, vector<64x128xf32>, vector<8x128xf32> -> vector<8x128xf32>
    %c808 = arith.constant 808 : index
    %c0_57 = arith.constant 0 : index
    %336 = vector.load %arg5[%c808, %c0_57] : memref<1024x128xf32, #tpu.memory_space<vmem>>, vector<1x128xf32>
    %337 = vector.broadcast %336 : vector<1x128xf32> to vector<8x128xf32>
    %338 = arith.addf %335, %337 : vector<8x128xf32>
    %cst_58 = arith.constant 0.000000e+00 : f32
    %339 = vector.broadcast %cst_58 : f32 to vector<8x128xf32>
    %340 = arith.maximumf %338, %339 : vector<8x128xf32>
    %cst_59 = arith.constant dense<0xFF800000> : vector<128xf32>
    %341 = vector.multi_reduction <maximumf>, %340, %cst_59 [0] : vector<8x128xf32> to vector<128xf32>
    %342 = vector.shape_cast %341 : vector<128xf32> to vector<1x128xf32>
    %c816 = arith.constant 816 : index
    %c0_60 = arith.constant 0 : index
    %343 = vector.load %arg5[%c816, %c0_60] : memref<1024x128xf32, #tpu.memory_space<vmem>>, vector<128x64xf32>
    %cst_61 = arith.constant dense<0.000000e+00> : vector<1x64xf32>
    %344 = tpu.matmul %342, %343, %cst_61 {dimension_numbers = #tpu.dot_dimension_numbers<[1], [0], [0], [1], [0, 0, 1, 1], [], []>} : vector<1x128xf32>, vector<128x64xf32>, vector<1x64xf32> -> vector<1x64xf32>
    %c944 = arith.constant 944 : index
    %c0_62 = arith.constant 0 : index
    %345 = vector.load %arg5[%c944, %c0_62] : memref<1024x128xf32, #tpu.memory_space<vmem>>, vector<1x64xf32>
    %346 = arith.addf %344, %345 : vector<1x64xf32>
    %cst_63 = arith.constant 0.000000e+00 : f32
    %347 = vector.broadcast %cst_63 : f32 to vector<1x64xf32>
    %348 = arith.maximumf %346, %347 : vector<1x64xf32>
    %c952 = arith.constant 952 : index
    %c0_64 = arith.constant 0 : index
    %349 = vector.load %arg5[%c952, %c0_64] : memref<1024x128xf32, #tpu.memory_space<vmem>>, vector<64x128xf32>
    %cst_65 = arith.constant dense<0.000000e+00> : vector<1x128xf32>
    %350 = tpu.matmul %348, %349, %cst_65 {dimension_numbers = #tpu.dot_dimension_numbers<[1], [0], [0], [1], [0, 0, 1, 1], [], []>} : vector<1x64xf32>, vector<64x128xf32>, vector<1x128xf32> -> vector<1x128xf32>
    %c1016 = arith.constant 1016 : index
    %c0_66 = arith.constant 0 : index
    %351 = vector.load %arg5[%c1016, %c0_66] : memref<1024x128xf32, #tpu.memory_space<vmem>>, vector<1x128xf32>
    %352 = arith.addf %350, %351 : vector<1x128xf32>
    %c0_67 = arith.constant 0 : index
    %c0_68 = arith.constant 0 : index
    %c0_69 = arith.constant 0 : index
    %353 = vector.load %arg4[%c0_67, %c0_68, %c0_69] : memref<1x1x8xf32, #tpu.memory_space<vmem>>, vector<1x1x8xf32>
    %354 = vector.shape_cast %353 : vector<1x1x8xf32> to vector<1x8xf32>
    %355 = vector.extract_strided_slice %352 {offsets = [0, 0], sizes = [1, 8], strides = [1, 1]} : vector<1x128xf32> to vector<1x8xf32>
    %356 = vector.extract_strided_slice %352 {offsets = [0, 8], sizes = [1, 8], strides = [1, 1]} : vector<1x128xf32> to vector<1x8xf32>
    %357 = math.exp %356 : vector<1x8xf32>
    %cst_70 = arith.constant 9.99999974E-5 : f32
    %358 = vector.broadcast %cst_70 : f32 to vector<1x8xf32>
    %359 = arith.addf %358, %357 : vector<1x8xf32>
    %360 = arith.mulf %359, %354 : vector<1x8xf32>
    %361 = arith.addf %355, %360 : vector<1x8xf32>
    %362 = tpu.iota {dimensions = array<i32: 1>} : vector<1x128xi32>
    %c8_i32 = arith.constant 8 : i32
    %363 = vector.broadcast %c8_i32 : i32 to vector<1x128xi32>
    %364 = arith.cmpi slt, %362, %363 : vector<1x128xi32>
    %c16_i32 = arith.constant 16 : i32
    %365 = vector.broadcast %c16_i32 : i32 to vector<1x128xi32>
    %366 = arith.cmpi slt, %362, %365 : vector<1x128xi32>
    %367 = math.exp %352 : vector<1x128xf32>
    %cst_71 = arith.constant 9.99999974E-5 : f32
    %368 = vector.broadcast %cst_71 : f32 to vector<1x128xf32>
    %369 = arith.addf %368, %367 : vector<1x128xf32>
    %cst_72 = arith.constant 0.000000e+00 : f32
    %370 = vector.broadcast %cst_72 : f32 to vector<1x128xf32>
    %371 = arith.select %366, %369, %370 : vector<1x128xi1>, vector<1x128xf32>
    %372 = arith.select %364, %352, %371 : vector<1x128xi1>, vector<1x128xf32>
    %c0_73 = arith.constant 0 : index
    %c0_74 = arith.constant 0 : index
    %c0_75 = arith.constant 0 : index
    %373 = vector.load %arg8[%c0_73, %c0_74, %c0_75] : memref<1x1x128xf32, #tpu.memory_space<vmem>>, vector<1x1x128xf32>
    %374 = vector.shape_cast %373 : vector<1x1x128xf32> to vector<1x128xf32>
    %375 = vector.shape_cast %372 : vector<1x128xf32> to vector<1x1x128xf32>
    tpu.vector_store %arg8[%c0_73, %c0_74, %c0_75], %375 {strides = array<i32>} : memref<1x1x128xf32, #tpu.memory_space<vmem>>, vector<1x1x128xf32>,
    %c0_76 = arith.constant 0 : index
    %c0_77 = arith.constant 0 : index
    %c0_78 = arith.constant 0 : index
    %376 = vector.load %arg3[%c0_76, %c0_77, %c0_78] : memref<1x8x13xf32, #tpu.memory_space<vmem>>, vector<1x8x13xf32>
    %377 = vector.shape_cast %376 : vector<1x8x13xf32> to vector<8x13xf32>
    %c0_79 = arith.constant 0 : index
    %c0_80 = arith.constant 0 : index
    %378 = vector.load %arg6[%c0_79, %c0_80] : memref<648x256xf32, #tpu.memory_space<vmem>>, vector<13x64xf32>
    %cst_81 = arith.constant dense<0.000000e+00> : vector<8x64xf32>
    %379 = tpu.matmul %377, %378, %cst_81 {dimension_numbers = #tpu.dot_dimension_numbers<[1], [0], [0], [1], [0, 0, 1, 1], [], []>} : vector<8x13xf32>, vector<13x64xf32>, vector<8x64xf32> -> vector<8x64xf32>
    %c16_82 = arith.constant 16 : index
    %c0_83 = arith.constant 0 : index
    %380 = vector.load %arg6[%c16_82, %c0_83] : memref<648x256xf32, #tpu.memory_space<vmem>>, vector<8x64xf32>
    %cst_84 = arith.constant dense<0.000000e+00> : vector<1x64xf32>
    %381 = tpu.matmul %361, %380, %cst_84 {dimension_numbers = #tpu.dot_dimension_numbers<[1], [0], [0], [1], [0, 0, 1, 1], [], []>} : vector<1x8xf32>, vector<8x64xf32>, vector<1x64xf32> -> vector<1x64xf32>
    %382 = vector.broadcast %381 : vector<1x64xf32> to vector<8x64xf32>
    %383 = arith.addf %379, %382 : vector<8x64xf32>
    %c24 = arith.constant 24 : index
    %c0_85 = arith.constant 0 : index
    %384 = vector.load %arg6[%c24, %c0_85] : memref<648x256xf32, #tpu.memory_space<vmem>>, vector<8x64xf32>
    %cst_86 = arith.constant dense<0.000000e+00> : vector<1x64xf32>
    %385 = tpu.matmul %85, %384, %cst_86 {dimension_numbers = #tpu.dot_dimension_numbers<[1], [0], [0], [1], [0, 0, 1, 1], [], []>} : vector<1x8xf32>, vector<8x64xf32>, vector<1x64xf32> -> vector<1x64xf32>
    %386 = vector.broadcast %385 : vector<1x64xf32> to vector<8x64xf32>
    %387 = arith.addf %383, %386 : vector<8x64xf32>
    %c32 = arith.constant 32 : index
    %c0_87 = arith.constant 0 : index
    %388 = vector.load %arg6[%c32, %c0_87] : memref<648x256xf32, #tpu.memory_space<vmem>>, vector<1x64xf32>
    %389 = vector.broadcast %388 : vector<1x64xf32> to vector<8x64xf32>
    %390 = arith.addf %387, %389 : vector<8x64xf32>
    %391 = vector.extract_strided_slice %34 {offsets = [0, 0], sizes = [1, 1], strides = [1, 1]} : vector<1x9xf32> to vector<1x1xf32>
    %392 = vector.extract_strided_slice %378 {offsets = [0, 0], sizes = [1, 64], strides = [1, 1]} : vector<13x64xf32> to vector<1x64xf32>
    %393 = vector.broadcast %391 : vector<1x1xf32> to vector<1x64xf32>
    %394 = arith.mulf %393, %392 : vector<1x64xf32>
    %395 = vector.extract_strided_slice %34 {offsets = [0, 1], sizes = [1, 1], strides = [1, 1]} : vector<1x9xf32> to vector<1x1xf32>
    %396 = vector.extract_strided_slice %378 {offsets = [1, 0], sizes = [1, 64], strides = [1, 1]} : vector<13x64xf32> to vector<1x64xf32>
    %397 = vector.broadcast %395 : vector<1x1xf32> to vector<1x64xf32>
    %398 = arith.mulf %397, %396 : vector<1x64xf32>
    %399 = arith.addf %394, %398 : vector<1x64xf32>
    %400 = vector.extract_strided_slice %34 {offsets = [0, 2], sizes = [1, 1], strides = [1, 1]} : vector<1x9xf32> to vector<1x1xf32>
    %401 = vector.extract_strided_slice %378 {offsets = [2, 0], sizes = [1, 64], strides = [1, 1]} : vector<13x64xf32> to vector<1x64xf32>
    %402 = vector.broadcast %400 : vector<1x1xf32> to vector<1x64xf32>
    %403 = arith.mulf %402, %401 : vector<1x64xf32>
    %404 = arith.addf %399, %403 : vector<1x64xf32>
    %405 = vector.extract_strided_slice %377 {offsets = [0, 0], sizes = [8, 1], strides = [1, 1]} : vector<8x13xf32> to vector<8x1xf32>
    %406 = vector.broadcast %405 : vector<8x1xf32> to vector<8x64xf32>
    %407 = vector.broadcast %404 : vector<1x64xf32> to vector<8x64xf32>
    %408 = arith.mulf %406, %407 : vector<8x64xf32>
    %409 = vector.extract_strided_slice %34 {offsets = [0, 3], sizes = [1, 1], strides = [1, 1]} : vector<1x9xf32> to vector<1x1xf32>
    %410 = vector.extract_strided_slice %378 {offsets = [0, 0], sizes = [1, 64], strides = [1, 1]} : vector<13x64xf32> to vector<1x64xf32>
    %411 = vector.broadcast %409 : vector<1x1xf32> to vector<1x64xf32>
    %412 = arith.mulf %411, %410 : vector<1x64xf32>
    %413 = vector.extract_strided_slice %34 {offsets = [0, 4], sizes = [1, 1], strides = [1, 1]} : vector<1x9xf32> to vector<1x1xf32>
    %414 = vector.extract_strided_slice %378 {offsets = [1, 0], sizes = [1, 64], strides = [1, 1]} : vector<13x64xf32> to vector<1x64xf32>
    %415 = vector.broadcast %413 : vector<1x1xf32> to vector<1x64xf32>
    %416 = arith.mulf %415, %414 : vector<1x64xf32>
    %417 = arith.addf %412, %416 : vector<1x64xf32>
    %418 = vector.extract_strided_slice %34 {offsets = [0, 5], sizes = [1, 1], strides = [1, 1]} : vector<1x9xf32> to vector<1x1xf32>
    %419 = vector.extract_strided_slice %378 {offsets = [2, 0], sizes = [1, 64], strides = [1, 1]} : vector<13x64xf32> to vector<1x64xf32>
    %420 = vector.broadcast %418 : vector<1x1xf32> to vector<1x64xf32>
    %421 = arith.mulf %420, %419 : vector<1x64xf32>
    %422 = arith.addf %417, %421 : vector<1x64xf32>
    %423 = vector.extract_strided_slice %377 {offsets = [0, 1], sizes = [8, 1], strides = [1, 1]} : vector<8x13xf32> to vector<8x1xf32>
    %424 = vector.broadcast %423 : vector<8x1xf32> to vector<8x64xf32>
    %425 = vector.broadcast %422 : vector<1x64xf32> to vector<8x64xf32>
    %426 = arith.mulf %424, %425 : vector<8x64xf32>
    %427 = arith.addf %408, %426 : vector<8x64xf32>
    %428 = vector.extract_strided_slice %34 {offsets = [0, 6], sizes = [1, 1], strides = [1, 1]} : vector<1x9xf32> to vector<1x1xf32>
    %429 = vector.extract_strided_slice %378 {offsets = [0, 0], sizes = [1, 64], strides = [1, 1]} : vector<13x64xf32> to vector<1x64xf32>
    %430 = vector.broadcast %428 : vector<1x1xf32> to vector<1x64xf32>
    %431 = arith.mulf %430, %429 : vector<1x64xf32>
    %432 = vector.extract_strided_slice %34 {offsets = [0, 7], sizes = [1, 1], strides = [1, 1]} : vector<1x9xf32> to vector<1x1xf32>
    %433 = vector.extract_strided_slice %378 {offsets = [1, 0], sizes = [1, 64], strides = [1, 1]} : vector<13x64xf32> to vector<1x64xf32>
    %434 = vector.broadcast %432 : vector<1x1xf32> to vector<1x64xf32>
    %435 = arith.mulf %434, %433 : vector<1x64xf32>
    %436 = arith.addf %431, %435 : vector<1x64xf32>
    %437 = vector.extract_strided_slice %34 {offsets = [0, 8], sizes = [1, 1], strides = [1, 1]} : vector<1x9xf32> to vector<1x1xf32>
    %438 = vector.extract_strided_slice %378 {offsets = [2, 0], sizes = [1, 64], strides = [1, 1]} : vector<13x64xf32> to vector<1x64xf32>
    %439 = vector.broadcast %437 : vector<1x1xf32> to vector<1x64xf32>
    %440 = arith.mulf %439, %438 : vector<1x64xf32>
    %441 = arith.addf %436, %440 : vector<1x64xf32>
    %442 = vector.extract_strided_slice %377 {offsets = [0, 2], sizes = [8, 1], strides = [1, 1]} : vector<8x13xf32> to vector<8x1xf32>
    %443 = vector.broadcast %442 : vector<8x1xf32> to vector<8x64xf32>
    %444 = vector.broadcast %441 : vector<1x64xf32> to vector<8x64xf32>
    %445 = arith.mulf %443, %444 : vector<8x64xf32>
    %446 = arith.addf %427, %445 : vector<8x64xf32>
    %447 = vector.extract_strided_slice %34 {offsets = [0, 0], sizes = [1, 1], strides = [1, 1]} : vector<1x9xf32> to vector<1x1xf32>
    %448 = vector.extract_strided_slice %378 {offsets = [3, 0], sizes = [1, 64], strides = [1, 1]} : vector<13x64xf32> to vector<1x64xf32>
    %449 = vector.broadcast %447 : vector<1x1xf32> to vector<1x64xf32>
    %450 = arith.mulf %449, %448 : vector<1x64xf32>
    %451 = vector.extract_strided_slice %34 {offsets = [0, 1], sizes = [1, 1], strides = [1, 1]} : vector<1x9xf32> to vector<1x1xf32>
    %452 = vector.extract_strided_slice %378 {offsets = [4, 0], sizes = [1, 64], strides = [1, 1]} : vector<13x64xf32> to vector<1x64xf32>
    %453 = vector.broadcast %451 : vector<1x1xf32> to vector<1x64xf32>
    %454 = arith.mulf %453, %452 : vector<1x64xf32>
    %455 = arith.addf %450, %454 : vector<1x64xf32>
    %456 = vector.extract_strided_slice %34 {offsets = [0, 2], sizes = [1, 1], strides = [1, 1]} : vector<1x9xf32> to vector<1x1xf32>
    %457 = vector.extract_strided_slice %378 {offsets = [5, 0], sizes = [1, 64], strides = [1, 1]} : vector<13x64xf32> to vector<1x64xf32>
    %458 = vector.broadcast %456 : vector<1x1xf32> to vector<1x64xf32>
    %459 = arith.mulf %458, %457 : vector<1x64xf32>
    %460 = arith.addf %455, %459 : vector<1x64xf32>
    %461 = vector.extract_strided_slice %377 {offsets = [0, 3], sizes = [8, 1], strides = [1, 1]} : vector<8x13xf32> to vector<8x1xf32>
    %462 = vector.broadcast %461 : vector<8x1xf32> to vector<8x64xf32>
    %463 = vector.broadcast %460 : vector<1x64xf32> to vector<8x64xf32>
    %464 = arith.mulf %462, %463 : vector<8x64xf32>
    %465 = arith.addf %446, %464 : vector<8x64xf32>
    %466 = vector.extract_strided_slice %34 {offsets = [0, 3], sizes = [1, 1], strides = [1, 1]} : vector<1x9xf32> to vector<1x1xf32>
    %467 = vector.extract_strided_slice %378 {offsets = [3, 0], sizes = [1, 64], strides = [1, 1]} : vector<13x64xf32> to vector<1x64xf32>
    %468 = vector.broadcast %466 : vector<1x1xf32> to vector<1x64xf32>
    %469 = arith.mulf %468, %467 : vector<1x64xf32>
    %470 = vector.extract_strided_slice %34 {offsets = [0, 4], sizes = [1, 1], strides = [1, 1]} : vector<1x9xf32> to vector<1x1xf32>
    %471 = vector.extract_strided_slice %378 {offsets = [4, 0], sizes = [1, 64], strides = [1, 1]} : vector<13x64xf32> to vector<1x64xf32>
    %472 = vector.broadcast %470 : vector<1x1xf32> to vector<1x64xf32>
    %473 = arith.mulf %472, %471 : vector<1x64xf32>
    %474 = arith.addf %469, %473 : vector<1x64xf32>
    %475 = vector.extract_strided_slice %34 {offsets = [0, 5], sizes = [1, 1], strides = [1, 1]} : vector<1x9xf32> to vector<1x1xf32>
    %476 = vector.extract_strided_slice %378 {offsets = [5, 0], sizes = [1, 64], strides = [1, 1]} : vector<13x64xf32> to vector<1x64xf32>
    %477 = vector.broadcast %475 : vector<1x1xf32> to vector<1x64xf32>
    %478 = arith.mulf %477, %476 : vector<1x64xf32>
    %479 = arith.addf %474, %478 : vector<1x64xf32>
    %480 = vector.extract_strided_slice %377 {offsets = [0, 4], sizes = [8, 1], strides = [1, 1]} : vector<8x13xf32> to vector<8x1xf32>
    %481 = vector.broadcast %480 : vector<8x1xf32> to vector<8x64xf32>
    %482 = vector.broadcast %479 : vector<1x64xf32> to vector<8x64xf32>
    %483 = arith.mulf %481, %482 : vector<8x64xf32>
    %484 = arith.addf %465, %483 : vector<8x64xf32>
    %485 = vector.extract_strided_slice %34 {offsets = [0, 6], sizes = [1, 1], strides = [1, 1]} : vector<1x9xf32> to vector<1x1xf32>
    %486 = vector.extract_strided_slice %378 {offsets = [3, 0], sizes = [1, 64], strides = [1, 1]} : vector<13x64xf32> to vector<1x64xf32>
    %487 = vector.broadcast %485 : vector<1x1xf32> to vector<1x64xf32>
    %488 = arith.mulf %487, %486 : vector<1x64xf32>
    %489 = vector.extract_strided_slice %34 {offsets = [0, 7], sizes = [1, 1], strides = [1, 1]} : vector<1x9xf32> to vector<1x1xf32>
    %490 = vector.extract_strided_slice %378 {offsets = [4, 0], sizes = [1, 64], strides = [1, 1]} : vector<13x64xf32> to vector<1x64xf32>
    %491 = vector.broadcast %489 : vector<1x1xf32> to vector<1x64xf32>
    %492 = arith.mulf %491, %490 : vector<1x64xf32>
    %493 = arith.addf %488, %492 : vector<1x64xf32>
    %494 = vector.extract_strided_slice %34 {offsets = [0, 8], sizes = [1, 1], strides = [1, 1]} : vector<1x9xf32> to vector<1x1xf32>
    %495 = vector.extract_strided_slice %378 {offsets = [5, 0], sizes = [1, 64], strides = [1, 1]} : vector<13x64xf32> to vector<1x64xf32>
    %496 = vector.broadcast %494 : vector<1x1xf32> to vector<1x64xf32>
    %497 = arith.mulf %496, %495 : vector<1x64xf32>
    %498 = arith.addf %493, %497 : vector<1x64xf32>
    %499 = vector.extract_strided_slice %377 {offsets = [0, 5], sizes = [8, 1], strides = [1, 1]} : vector<8x13xf32> to vector<8x1xf32>
    %500 = vector.broadcast %499 : vector<8x1xf32> to vector<8x64xf32>
    %501 = vector.broadcast %498 : vector<1x64xf32> to vector<8x64xf32>
    %502 = arith.mulf %500, %501 : vector<8x64xf32>
    %503 = arith.addf %484, %502 : vector<8x64xf32>
    %504 = vector.extract_strided_slice %34 {offsets = [0, 0], sizes = [1, 1], strides = [1, 1]} : vector<1x9xf32> to vector<1x1xf32>
    %505 = vector.extract_strided_slice %378 {offsets = [6, 0], sizes = [1, 64], strides = [1, 1]} : vector<13x64xf32> to vector<1x64xf32>
    %506 = vector.broadcast %504 : vector<1x1xf32> to vector<1x64xf32>
    %507 = arith.mulf %506, %505 : vector<1x64xf32>
    %508 = vector.extract_strided_slice %34 {offsets = [0, 1], sizes = [1, 1], strides = [1, 1]} : vector<1x9xf32> to vector<1x1xf32>
    %509 = vector.extract_strided_slice %378 {offsets = [7, 0], sizes = [1, 64], strides = [1, 1]} : vector<13x64xf32> to vector<1x64xf32>
    %510 = vector.broadcast %508 : vector<1x1xf32> to vector<1x64xf32>
    %511 = arith.mulf %510, %509 : vector<1x64xf32>
    %512 = arith.addf %507, %511 : vector<1x64xf32>
    %513 = vector.extract_strided_slice %34 {offsets = [0, 2], sizes = [1, 1], strides = [1, 1]} : vector<1x9xf32> to vector<1x1xf32>
    %514 = vector.extract_strided_slice %378 {offsets = [8, 0], sizes = [1, 64], strides = [1, 1]} : vector<13x64xf32> to vector<1x64xf32>
    %515 = vector.broadcast %513 : vector<1x1xf32> to vector<1x64xf32>
    %516 = arith.mulf %515, %514 : vector<1x64xf32>
    %517 = arith.addf %512, %516 : vector<1x64xf32>
    %518 = vector.extract_strided_slice %377 {offsets = [0, 6], sizes = [8, 1], strides = [1, 1]} : vector<8x13xf32> to vector<8x1xf32>
    %519 = vector.broadcast %518 : vector<8x1xf32> to vector<8x64xf32>
    %520 = vector.broadcast %517 : vector<1x64xf32> to vector<8x64xf32>
    %521 = arith.mulf %519, %520 : vector<8x64xf32>
    %522 = arith.addf %503, %521 : vector<8x64xf32>
    %523 = vector.extract_strided_slice %34 {offsets = [0, 3], sizes = [1, 1], strides = [1, 1]} : vector<1x9xf32> to vector<1x1xf32>
    %524 = vector.extract_strided_slice %378 {offsets = [6, 0], sizes = [1, 64], strides = [1, 1]} : vector<13x64xf32> to vector<1x64xf32>
    %525 = vector.broadcast %523 : vector<1x1xf32> to vector<1x64xf32>
    %526 = arith.mulf %525, %524 : vector<1x64xf32>
    %527 = vector.extract_strided_slice %34 {offsets = [0, 4], sizes = [1, 1], strides = [1, 1]} : vector<1x9xf32> to vector<1x1xf32>
    %528 = vector.extract_strided_slice %378 {offsets = [7, 0], sizes = [1, 64], strides = [1, 1]} : vector<13x64xf32> to vector<1x64xf32>
    %529 = vector.broadcast %527 : vector<1x1xf32> to vector<1x64xf32>
    %530 = arith.mulf %529, %528 : vector<1x64xf32>
    %531 = arith.addf %526, %530 : vector<1x64xf32>
    %532 = vector.extract_strided_slice %34 {offsets = [0, 5], sizes = [1, 1], strides = [1, 1]} : vector<1x9xf32> to vector<1x1xf32>
    %533 = vector.extract_strided_slice %378 {offsets = [8, 0], sizes = [1, 64], strides = [1, 1]} : vector<13x64xf32> to vector<1x64xf32>
    %534 = vector.broadcast %532 : vector<1x1xf32> to vector<1x64xf32>
    %535 = arith.mulf %534, %533 : vector<1x64xf32>
    %536 = arith.addf %531, %535 : vector<1x64xf32>
    %537 = vector.extract_strided_slice %377 {offsets = [0, 7], sizes = [8, 1], strides = [1, 1]} : vector<8x13xf32> to vector<8x1xf32>
    %538 = vector.broadcast %537 : vector<8x1xf32> to vector<8x64xf32>
    %539 = vector.broadcast %536 : vector<1x64xf32> to vector<8x64xf32>
    %540 = arith.mulf %538, %539 : vector<8x64xf32>
    %541 = arith.addf %522, %540 : vector<8x64xf32>
    %542 = vector.extract_strided_slice %34 {offsets = [0, 6], sizes = [1, 1], strides = [1, 1]} : vector<1x9xf32> to vector<1x1xf32>
    %543 = vector.extract_strided_slice %378 {offsets = [6, 0], sizes = [1, 64], strides = [1, 1]} : vector<13x64xf32> to vector<1x64xf32>
    %544 = vector.broadcast %542 : vector<1x1xf32> to vector<1x64xf32>
    %545 = arith.mulf %544, %543 : vector<1x64xf32>
    %546 = vector.extract_strided_slice %34 {offsets = [0, 7], sizes = [1, 1], strides = [1, 1]} : vector<1x9xf32> to vector<1x1xf32>
    %547 = vector.extract_strided_slice %378 {offsets = [7, 0], sizes = [1, 64], strides = [1, 1]} : vector<13x64xf32> to vector<1x64xf32>
    %548 = vector.broadcast %546 : vector<1x1xf32> to vector<1x64xf32>
    %549 = arith.mulf %548, %547 : vector<1x64xf32>
    %550 = arith.addf %545, %549 : vector<1x64xf32>
    %551 = vector.extract_strided_slice %34 {offsets = [0, 8], sizes = [1, 1], strides = [1, 1]} : vector<1x9xf32> to vector<1x1xf32>
    %552 = vector.extract_strided_slice %378 {offsets = [8, 0], sizes = [1, 64], strides = [1, 1]} : vector<13x64xf32> to vector<1x64xf32>
    %553 = vector.broadcast %551 : vector<1x1xf32> to vector<1x64xf32>
    %554 = arith.mulf %553, %552 : vector<1x64xf32>
    %555 = arith.addf %550, %554 : vector<1x64xf32>
    %556 = vector.extract_strided_slice %377 {offsets = [0, 8], sizes = [8, 1], strides = [1, 1]} : vector<8x13xf32> to vector<8x1xf32>
    %557 = vector.broadcast %556 : vector<8x1xf32> to vector<8x64xf32>
    %558 = vector.broadcast %555 : vector<1x64xf32> to vector<8x64xf32>
    %559 = arith.mulf %557, %558 : vector<8x64xf32>
    %560 = arith.addf %541, %559 : vector<8x64xf32>
    %561 = vector.extract_strided_slice %34 {offsets = [0, 0], sizes = [1, 1], strides = [1, 1]} : vector<1x9xf32> to vector<1x1xf32>
    %562 = vector.extract_strided_slice %378 {offsets = [9, 0], sizes = [1, 64], strides = [1, 1]} : vector<13x64xf32> to vector<1x64xf32>
    %563 = vector.broadcast %561 : vector<1x1xf32> to vector<1x64xf32>
    %564 = arith.mulf %563, %562 : vector<1x64xf32>
    %565 = vector.extract_strided_slice %34 {offsets = [0, 1], sizes = [1, 1], strides = [1, 1]} : vector<1x9xf32> to vector<1x1xf32>
    %566 = vector.extract_strided_slice %378 {offsets = [10, 0], sizes = [1, 64], strides = [1, 1]} : vector<13x64xf32> to vector<1x64xf32>
    %567 = vector.broadcast %565 : vector<1x1xf32> to vector<1x64xf32>
    %568 = arith.mulf %567, %566 : vector<1x64xf32>
    %569 = arith.addf %564, %568 : vector<1x64xf32>
    %570 = vector.extract_strided_slice %34 {offsets = [0, 2], sizes = [1, 1], strides = [1, 1]} : vector<1x9xf32> to vector<1x1xf32>
    %571 = vector.extract_strided_slice %378 {offsets = [11, 0], sizes = [1, 64], strides = [1, 1]} : vector<13x64xf32> to vector<1x64xf32>
    %572 = vector.broadcast %570 : vector<1x1xf32> to vector<1x64xf32>
    %573 = arith.mulf %572, %571 : vector<1x64xf32>
    %574 = arith.addf %569, %573 : vector<1x64xf32>
    %575 = vector.extract_strided_slice %377 {offsets = [0, 9], sizes = [8, 1], strides = [1, 1]} : vector<8x13xf32> to vector<8x1xf32>
    %576 = vector.broadcast %575 : vector<8x1xf32> to vector<8x64xf32>
    %577 = vector.broadcast %574 : vector<1x64xf32> to vector<8x64xf32>
    %578 = arith.mulf %576, %577 : vector<8x64xf32>
    %579 = arith.addf %560, %578 : vector<8x64xf32>
    %580 = vector.extract_strided_slice %34 {offsets = [0, 3], sizes = [1, 1], strides = [1, 1]} : vector<1x9xf32> to vector<1x1xf32>
    %581 = vector.extract_strided_slice %378 {offsets = [9, 0], sizes = [1, 64], strides = [1, 1]} : vector<13x64xf32> to vector<1x64xf32>
    %582 = vector.broadcast %580 : vector<1x1xf32> to vector<1x64xf32>
    %583 = arith.mulf %582, %581 : vector<1x64xf32>
    %584 = vector.extract_strided_slice %34 {offsets = [0, 4], sizes = [1, 1], strides = [1, 1]} : vector<1x9xf32> to vector<1x1xf32>
    %585 = vector.extract_strided_slice %378 {offsets = [10, 0], sizes = [1, 64], strides = [1, 1]} : vector<13x64xf32> to vector<1x64xf32>
    %586 = vector.broadcast %584 : vector<1x1xf32> to vector<1x64xf32>
    %587 = arith.mulf %586, %585 : vector<1x64xf32>
    %588 = arith.addf %583, %587 : vector<1x64xf32>
    %589 = vector.extract_strided_slice %34 {offsets = [0, 5], sizes = [1, 1], strides = [1, 1]} : vector<1x9xf32> to vector<1x1xf32>
    %590 = vector.extract_strided_slice %378 {offsets = [11, 0], sizes = [1, 64], strides = [1, 1]} : vector<13x64xf32> to vector<1x64xf32>
    %591 = vector.broadcast %589 : vector<1x1xf32> to vector<1x64xf32>
    %592 = arith.mulf %591, %590 : vector<1x64xf32>
    %593 = arith.addf %588, %592 : vector<1x64xf32>
    %594 = vector.extract_strided_slice %377 {offsets = [0, 10], sizes = [8, 1], strides = [1, 1]} : vector<8x13xf32> to vector<8x1xf32>
    %595 = vector.broadcast %594 : vector<8x1xf32> to vector<8x64xf32>
    %596 = vector.broadcast %593 : vector<1x64xf32> to vector<8x64xf32>
    %597 = arith.mulf %595, %596 : vector<8x64xf32>
    %598 = arith.addf %579, %597 : vector<8x64xf32>
    %599 = vector.extract_strided_slice %34 {offsets = [0, 6], sizes = [1, 1], strides = [1, 1]} : vector<1x9xf32> to vector<1x1xf32>
    %600 = vector.extract_strided_slice %378 {offsets = [9, 0], sizes = [1, 64], strides = [1, 1]} : vector<13x64xf32> to vector<1x64xf32>
    %601 = vector.broadcast %599 : vector<1x1xf32> to vector<1x64xf32>
    %602 = arith.mulf %601, %600 : vector<1x64xf32>
    %603 = vector.extract_strided_slice %34 {offsets = [0, 7], sizes = [1, 1], strides = [1, 1]} : vector<1x9xf32> to vector<1x1xf32>
    %604 = vector.extract_strided_slice %378 {offsets = [10, 0], sizes = [1, 64], strides = [1, 1]} : vector<13x64xf32> to vector<1x64xf32>
    %605 = vector.broadcast %603 : vector<1x1xf32> to vector<1x64xf32>
    %606 = arith.mulf %605, %604 : vector<1x64xf32>
    %607 = arith.addf %602, %606 : vector<1x64xf32>
    %608 = vector.extract_strided_slice %34 {offsets = [0, 8], sizes = [1, 1], strides = [1, 1]} : vector<1x9xf32> to vector<1x1xf32>
    %609 = vector.extract_strided_slice %378 {offsets = [11, 0], sizes = [1, 64], strides = [1, 1]} : vector<13x64xf32> to vector<1x64xf32>
    %610 = vector.broadcast %608 : vector<1x1xf32> to vector<1x64xf32>
    %611 = arith.mulf %610, %609 : vector<1x64xf32>
    %612 = arith.addf %607, %611 : vector<1x64xf32>
    %613 = vector.extract_strided_slice %377 {offsets = [0, 11], sizes = [8, 1], strides = [1, 1]} : vector<8x13xf32> to vector<8x1xf32>
    %614 = vector.broadcast %613 : vector<8x1xf32> to vector<8x64xf32>
    %615 = vector.broadcast %612 : vector<1x64xf32> to vector<8x64xf32>
    %616 = arith.mulf %614, %615 : vector<8x64xf32>
    %617 = arith.addf %598, %616 : vector<8x64xf32>
    %618 = arith.addf %390, %617 : vector<8x64xf32>
    %cst_88 = arith.constant 0.000000e+00 : f32
    %619 = vector.broadcast %cst_88 : f32 to vector<8x64xf32>
    %620 = arith.maximumf %618, %619 : vector<8x64xf32>
    %c40 = arith.constant 40 : index
    %c0_89 = arith.constant 0 : index
    %621 = vector.load %arg6[%c40, %c0_89] : memref<648x256xf32, #tpu.memory_space<vmem>>, vector<64x128xf32>
    %cst_90 = arith.constant dense<0.000000e+00> : vector<8x128xf32>
    %622 = tpu.matmul %620, %621, %cst_90 {dimension_numbers = #tpu.dot_dimension_numbers<[1], [0], [0], [1], [0, 0, 1, 1], [], []>} : vector<8x64xf32>, vector<64x128xf32>, vector<8x128xf32> -> vector<8x128xf32>
    %c104 = arith.constant 104 : index
    %c0_91 = arith.constant 0 : index
    %623 = vector.load %arg6[%c104, %c0_91] : memref<648x256xf32, #tpu.memory_space<vmem>>, vector<1x128xf32>
    %624 = vector.broadcast %623 : vector<1x128xf32> to vector<8x128xf32>
    %625 = arith.addf %622, %624 : vector<8x128xf32>
    %cst_92 = arith.constant 0.000000e+00 : f32
    %626 = vector.broadcast %cst_92 : f32 to vector<8x128xf32>
    %627 = arith.maximumf %625, %626 : vector<8x128xf32>
    %c112 = arith.constant 112 : index
    %c0_93 = arith.constant 0 : index
    %628 = vector.load %arg6[%c112, %c0_93] : memref<648x256xf32, #tpu.memory_space<vmem>>, vector<128x256xf32>
    %cst_94 = arith.constant dense<0.000000e+00> : vector<8x256xf32>
    %629 = tpu.matmul %627, %628, %cst_94 {dimension_numbers = #tpu.dot_dimension_numbers<[1], [0], [0], [1], [0, 0, 1, 1], [], []>} : vector<8x128xf32>, vector<128x256xf32>, vector<8x256xf32> -> vector<8x256xf32>
    %c240 = arith.constant 240 : index
    %c0_95 = arith.constant 0 : index
    %630 = vector.load %arg6[%c240, %c0_95] : memref<648x256xf32, #tpu.memory_space<vmem>>, vector<1x256xf32>
    %631 = vector.broadcast %630 : vector<1x256xf32> to vector<8x256xf32>
    %632 = arith.addf %629, %631 : vector<8x256xf32>
    %cst_96 = arith.constant 0.000000e+00 : f32
    %633 = vector.broadcast %cst_96 : f32 to vector<8x256xf32>
    %634 = arith.maximumf %632, %633 : vector<8x256xf32>
    %c248 = arith.constant 248 : index
    %c0_97 = arith.constant 0 : index
    %635 = vector.load %arg6[%c248, %c0_97] : memref<648x256xf32, #tpu.memory_space<vmem>>, vector<256x128xf32>
    %cst_98 = arith.constant dense<0.000000e+00> : vector<8x128xf32>
    %636 = tpu.matmul %634, %635, %cst_98 {dimension_numbers = #tpu.dot_dimension_numbers<[1], [0], [0], [1], [0, 0, 1, 1], [], []>} : vector<8x256xf32>, vector<256x128xf32>, vector<8x128xf32> -> vector<8x128xf32>
    %c504 = arith.constant 504 : index
    %c0_99 = arith.constant 0 : index
    %637 = vector.load %arg6[%c504, %c0_99] : memref<648x256xf32, #tpu.memory_space<vmem>>, vector<1x128xf32>
    %638 = vector.broadcast %637 : vector<1x128xf32> to vector<8x128xf32>
    %639 = arith.addf %636, %638 : vector<8x128xf32>
    %cst_100 = arith.constant 0.000000e+00 : f32
    %640 = vector.broadcast %cst_100 : f32 to vector<8x128xf32>
    %641 = arith.maximumf %639, %640 : vector<8x128xf32>
    %c512 = arith.constant 512 : index
    %c0_101 = arith.constant 0 : index
    %642 = vector.load %arg6[%c512, %c0_101] : memref<648x256xf32, #tpu.memory_space<vmem>>, vector<128x128xf32>
    %cst_102 = arith.constant dense<0.000000e+00> : vector<8x128xf32>
    %643 = tpu.matmul %641, %642, %cst_102 {dimension_numbers = #tpu.dot_dimension_numbers<[1], [0], [0], [1], [0, 0, 1, 1], [], []>} : vector<8x128xf32>, vector<128x128xf32>, vector<8x128xf32> -> vector<8x128xf32>
    %c640 = arith.constant 640 : index
    %c0_103 = arith.constant 0 : index
    %644 = vector.load %arg6[%c640, %c0_103] : memref<648x256xf32, #tpu.memory_space<vmem>>, vector<1x128xf32>
    %645 = vector.broadcast %644 : vector<1x128xf32> to vector<8x128xf32>
    %646 = arith.addf %643, %645 : vector<8x128xf32>
    %647 = arith.negf %646 : vector<8x128xf32>
    %648 = math.exp %647 : vector<8x128xf32>
    %cst_104 = arith.constant 1.000000e+00 : f32
    %649 = vector.broadcast %cst_104 : f32 to vector<8x128xf32>
    %650 = arith.addf %649, %648 : vector<8x128xf32>
    %651 = arith.divf %649, %650 : vector<8x128xf32>
    %c0_105 = arith.constant 0 : index
    %c0_106 = arith.constant 0 : index
    %c0_107 = arith.constant 0 : index
    %652 = vector.load %arg7[%c0_105, %c0_106, %c0_107] : memref<1x8x128xf32, #tpu.memory_space<vmem>>, vector<1x8x128xf32>
    %653 = vector.shape_cast %652 : vector<1x8x128xf32> to vector<8x128xf32>
    %654 = vector.shape_cast %651 : vector<8x128xf32> to vector<1x8x128xf32>
    tpu.vector_store %arg7[%c0_105, %c0_106, %c0_107], %654 {strides = array<i32>} : memref<1x8x128xf32, #tpu.memory_space<vmem>>, vector<1x8x128xf32>,
    return
  }
  func.func @transform_0(%arg0: i32) -> (i32, i32, i32) {
    %c0_i32 = arith.constant 0 : i32
    %c0_i32_0 = arith.constant 0 : i32
    %c0_i32_1 = arith.constant 0 : i32
    return %arg0, %c0_i32, %c0_i32_0 : i32, i32, i32
  }
  func.func @transform_1(%arg0: i32) -> (i32, i32, i32) {
    %c0_i32 = arith.constant 0 : i32
    %c0_i32_0 = arith.constant 0 : i32
    %c0_i32_1 = arith.constant 0 : i32
    return %arg0, %c0_i32, %c0_i32_0 : i32, i32, i32
  }
  func.func @transform_2(%arg0: i32) -> (i32, i32, i32) {
    %c0_i32 = arith.constant 0 : i32
    %c0_i32_0 = arith.constant 0 : i32
    %c0_i32_1 = arith.constant 0 : i32
    return %arg0, %c0_i32, %c0_i32_0 : i32, i32, i32
  }
  func.func @transform_3(%arg0: i32) -> (i32, i32, i32) {
    %c0_i32 = arith.constant 0 : i32
    %c0_i32_0 = arith.constant 0 : i32
    %c0_i32_1 = arith.constant 0 : i32
    return %arg0, %c0_i32, %c0_i32_0 : i32, i32, i32
  }
  func.func @transform_4(%arg0: i32) -> (i32, i32) {
    %c0_i32 = arith.constant 0 : i32
    %c0_i32_0 = arith.constant 0 : i32
    %c0_i32_1 = arith.constant 0 : i32
    return %c0_i32, %c0_i32_0 : i32, i32
  }
  func.func @transform_5(%arg0: i32) -> (i32, i32) {
    %c0_i32 = arith.constant 0 : i32
    %c0_i32_0 = arith.constant 0 : i32
    %c0_i32_1 = arith.constant 0 : i32
    return %c0_i32, %c0_i32_0 : i32, i32
  }
  func.func @transform_6(%arg0: i32) -> (i32, i32, i32) {
    %c0_i32 = arith.constant 0 : i32
    %c0_i32_0 = arith.constant 0 : i32
    %c0_i32_1 = arith.constant 0 : i32
    return %arg0, %c0_i32, %c0_i32_0 : i32, i32, i32
  }
  func.func @transform_7(%arg0: i32) -> (i32, i32, i32) {
    %c0_i32 = arith.constant 0 : i32
    %c0_i32_0 = arith.constant 0 : i32
    %c0_i32_1 = arith.constant 0 : i32
    return %arg0, %c0_i32, %c0_i32_0 : i32, i32, i32
  }
}

</mosaic_0001>

<llo_original>
// kernel: forward.1
$region0: #{forward.1}
  #allocation0 [shape = 'u32[]', space=smem, size = 0x4, offset = 0x4, fixed_abs, tag = 'smem constant byte address 0x4 - core index']
  #allocation1 [shape = 'u32[72,128]{1,0:T(1,128)}', space=vmem, size = 0x9000, scoped, tag = 'internal scratch']
  %s0 = inlined_call_operand.vmem [shape: f32[2,64,3], index: 0, kind: input, shape index: {}]
  %s1 = inlined_call_operand.vmem [shape: f32[2,8,15], index: 1, kind: input, shape index: {}]
  %s2 = inlined_call_operand.vmem [shape: f32[2,8,13], index: 2, kind: input, shape index: {}]
  %s3 = inlined_call_operand.vmem [shape: f32[2,1,8], index: 3, kind: input, shape index: {}]
  %s4 = inlined_call_operand.hbm [shape: f32[1024,128], index: 4, kind: input, shape index: {}]
  %s5 = inlined_call_operand.hbm [shape: f32[648,256], index: 5, kind: input, shape index: {}]
  %s6 = inlined_call_operand.vmem [shape: f32[2,8,128], index: 6, kind: output, shape index: {0}]
  %s7 = inlined_call_operand.vmem [shape: f32[2,1,128], index: 7, kind: output, shape index: {1}]
  %8 = xla_tuple %s6, %s7
  %s9 = sld [smem:[#allocation0]]
  $region73: #{forward.1} parent=0
    _
  %s11 = ssub.s32 1, %s9
  %s12 = scalar_select 0, %s11, %s9
  $region1: #{forward.1} parent=0
    #allocation2 [shape = 'u8[524288]{0}', space=vmem, size = 0x80000, scoped, tag = 'input window, operand 4, single buffered']
    #allocation3 [shape = 's32[2]{0}', space=sflag, size = 0x8, scoped, tag = 'scoped memory for forward.1']
    #allocation4 [shape = 'u8[663552]{0}', space=vmem, size = 0xa2000, scoped, tag = 'input window, operand 5, single buffered']
    #allocation5 [shape = 's32[1]{0}', space=sflag, size = 0x4, scoped, tag = 'scoped memory for forward.1']
    %13 = vsyncpa [#allocation3], 0
    %14 = vsyncpa [#allocation5], 0
    loop: start=0, step=1, limit=4
    $region2: #{forward.1} parent=1 // loop_pre_header
      _
    $region3: #{forward.1} parent=1 // loop_header
      %s16 = sphi 0, %s20
      %p17 = scmp.ge.s32.totalorder %s16, 4
      %s26 = sphi 0, %s28
      %s29 = sphi 0, %s26
      %s30 = sphi 0, %s29
      %s46 = sphi 0, %s30
      %s52 = sphi 0, %s54
      %s55 = sphi 0, %s52
      %s56 = sphi 0, %s55
      %s72 = sphi 0, %s56
      %s78 = sphi 0, %s80
      %s81 = sphi 0, %s78
      %s82 = sphi 0, %s81
      %s98 = sphi 0, %s82
      %s104 = sphi 0, %s106
      %s107 = sphi 0, %s104
      %s108 = sphi 0, %s107
      %s124 = sphi 0, %s108
      %s128 = sphi 0, %s128
      %s130 = sphi 0, %s128
      %s131 = sphi 0, %s130
      %s145 = sphi 0, %s131
      %s149 = sphi 0, %s149
      %s151 = sphi 0, %s149
      %s152 = sphi 0, %s151
      %s166 = sphi 0, %s152
      %s172 = sphi 0, %s174
      %s175 = sphi 0, %s172
      %s176 = sphi 0, %s175
      %s192 = sphi 0, %s176
      %s198 = sphi 0, %s200
      %s201 = sphi 0, %s198
      %s202 = sphi 0, %s201
      %s218 = sphi 0, %s202
    $region4: #{forward.1} parent=1 // loop_header_branch
      %19 = sbr.rel (%p17) target = $region8
    $region5: #{forward.1} parent=1 // loop_body
      %s21 = ssub.s32 %s16, 1
      %s22 = ssub.s32 %s16, 2
      %s23 = sadd.s32 %s16, 1
      %s24 = ssub.s32 %s16, %s23
      %p25 = scmp.eq.s32.totalorder %s24, 0
      %s27 = sadd.s32 %s26, 1
      %s28 = scalar_select %p25, %s26, %s27
      %p31 = pneg %p25
      %p32 = scmp.eq.s32.totalorder %s16, 1
      %p33 = por %p31, %p32
      %p34 = scmp.ne.s32.totalorder %s26, %s29
      %p35 = scmp.eq.s32.totalorder %s16, 0
      %p36 = por %p34, %p35
      %p37 = scmp.ne.s32.totalorder %s26, %s29
      %p38 = scmp.eq.s32.totalorder %s21, 1
      %p39 = por %p37, %p38
      %p40 = scmp.ne.s32.totalorder %s29, %s30
      %p41 = scmp.eq.s32.totalorder %s21, 0
      %p42 = por %p40, %p41
      %p43 = scmp.ne.s32.totalorder %s29, %s30
      %p44 = scmp.eq.s32.totalorder %s22, 1
      %p45 = por %p43, %p44
      %p47 = scmp.ne.s32.totalorder %s30, %s46
      %p48 = scmp.eq.s32.totalorder %s22, 0
      %p49 = por %p47, %p48
      %s50 = ssub.s32 %s16, %s23
      %p51 = scmp.eq.s32.totalorder %s50, 0
      %s53 = sadd.s32 %s52, 1
      %s54 = scalar_select %p51, %s52, %s53
      %p57 = pneg %p51
      %p58 = scmp.eq.s32.totalorder %s16, 1
      %p59 = por %p57, %p58
      %p60 = scmp.ne.s32.totalorder %s52, %s55
      %p61 = scmp.eq.s32.totalorder %s16, 0
      %p62 = por %p60, %p61
      %p63 = scmp.ne.s32.totalorder %s52, %s55
      %p64 = scmp.eq.s32.totalorder %s21, 1
      %p65 = por %p63, %p64
      %p66 = scmp.ne.s32.totalorder %s55, %s56
      %p67 = scmp.eq.s32.totalorder %s21, 0
      %p68 = por %p66, %p67
      %p69 = scmp.ne.s32.totalorder %s55, %s56
      %p70 = scmp.eq.s32.totalorder %s22, 1
      %p71 = por %p69, %p70
      %p73 = scmp.ne.s32.totalorder %s56, %s72
      %p74 = scmp.eq.s32.totalorder %s22, 0
      %p75 = por %p73, %p74
      %s76 = ssub.s32 %s16, %s23
      %p77 = scmp.eq.s32.totalorder %s76, 0
      %s79 = sadd.s32 %s78, 1
      %s80 = scalar_select %p77, %s78, %s79
      %p83 = pneg %p77
      %p84 = scmp.eq.s32.totalorder %s16, 1
      %p85 = por %p83, %p84
      %p86 = scmp.ne.s32.totalorder %s78, %s81
      %p87 = scmp.eq.s32.totalorder %s16, 0
      %p88 = por %p86, %p87
      %p89 = scmp.ne.s32.totalorder %s78, %s81
      %p90 = scmp.eq.s32.totalorder %s21, 1
      %p91 = por %p89, %p90
      %p92 = scmp.ne.s32.totalorder %s81, %s82
      %p93 = scmp.eq.s32.totalorder %s21, 0
      %p94 = por %p92, %p93
      %p95 = scmp.ne.s32.totalorder %s81, %s82
      %p96 = scmp.eq.s32.totalorder %s22, 1
      %p97 = por %p95, %p96
      %p99 = scmp.ne.s32.totalorder %s82, %s98
      %p100 = scmp.eq.s32.totalorder %s22, 0
      %p101 = por %p99, %p100
      %s102 = ssub.s32 %s16, %s23
      %p103 = scmp.eq.s32.totalorder %s102, 0
      %s105 = sadd.s32 %s104, 1
      %s106 = scalar_select %p103, %s104, %s105
      %p109 = pneg %p103
      %p110 = scmp.eq.s32.totalorder %s16, 1
      %p111 = por %p109, %p110
      %p112 = scmp.ne.s32.totalorder %s104, %s107
      %p113 = scmp.eq.s32.totalorder %s16, 0
      %p114 = por %p112, %p113
      %p115 = scmp.ne.s32.totalorder %s104, %s107
      %p116 = scmp.eq.s32.totalorder %s21, 1
      %p117 = por %p115, %p116
      %p118 = scmp.ne.s32.totalorder %s107, %s108
      %p119 = scmp.eq.s32.totalorder %s21, 0
      %p120 = por %p118, %p119
      %p121 = scmp.ne.s32.totalorder %s107, %s108
      %p122 = scmp.eq.s32.totalorder %s22, 1
      %p123 = por %p121, %p122
      %p125 = scmp.ne.s32.totalorder %s108, %s124
      %p126 = scmp.eq.s32.totalorder %s22, 0
      %p127 = por %p125, %p126
      %s129 = sadd.s32 %s128, 1
      %p132 = scmp.eq.s32.totalorder %s16, 1
      %p133 = scmp.ne.s32.totalorder %s128, %s130
      %p134 = scmp.eq.s32.totalorder %s16, 0
      %p135 = por %p133, %p134
      %p136 = scmp.ne.s32.totalorder %s128, %s130
      %p137 = scmp.eq.s32.totalorder %s21, 1
      %p138 = por %p136, %p137
      %p139 = scmp.ne.s32.totalorder %s130, %s131
      %p140 = scmp.eq.s32.totalorder %s21, 0
      %p141 = por %p139, %p140
      %p142 = scmp.ne.s32.totalorder %s130, %s131
      %p143 = scmp.eq.s32.totalorder %s22, 1
      %p144 = por %p142, %p143
      %p146 = scmp.ne.s32.totalorder %s131, %s145
      %p147 = scmp.eq.s32.totalorder %s22, 0
      %p148 = por %p146, %p147
      %s150 = sadd.s32 %s149, 1
      %p153 = scmp.eq.s32.totalorder %s16, 1
      %p154 = scmp.ne.s32.totalorder %s149, %s151
      %p155 = scmp.eq.s32.totalorder %s16, 0
      %p156 = por %p154, %p155
      %p157 = scmp.ne.s32.totalorder %s149, %s151
      %p158 = scmp.eq.s32.totalorder %s21, 1
      %p159 = por %p157, %p158
      %p160 = scmp.ne.s32.totalorder %s151, %s152
      %p161 = scmp.eq.s32.totalorder %s21, 0
      %p162 = por %p160, %p161
      %p163 = scmp.ne.s32.totalorder %s151, %s152
      %p164 = scmp.eq.s32.totalorder %s22, 1
      %p165 = por %p163, %p164
      %p167 = scmp.ne.s32.totalorder %s152, %s166
      %p168 = scmp.eq.s32.totalorder %s22, 0
      %p169 = por %p167, %p168
      %s170 = ssub.s32 %s16, %s23
      %p171 = scmp.eq.s32.totalorder %s170, 0
      %s173 = sadd.s32 %s172, 1
      %s174 = scalar_select %p171, %s172, %s173
      %p177 = pneg %p171
      %p178 = scmp.eq.s32.totalorder %s16, 1
      %p179 = por %p177, %p178
      %p180 = scmp.ne.s32.totalorder %s172, %s175
      %p181 = scmp.eq.s32.totalorder %s16, 0
      %p182 = por %p180, %p181
      %p183 = scmp.ne.s32.totalorder %s172, %s175
      %p184 = scmp.eq.s32.totalorder %s21, 1
      %p185 = por %p183, %p184
      %p186 = scmp.ne.s32.totalorder %s175, %s176
      %p187 = scmp.eq.s32.totalorder %s21, 0
      %p188 = por %p186, %p187
      %p189 = scmp.ne.s32.totalorder %s175, %s176
      %p190 = scmp.eq.s32.totalorder %s22, 1
      %p191 = por %p189, %p190
      %p193 = scmp.ne.s32.totalorder %s176, %s192
      %p194 = scmp.eq.s32.totalorder %s22, 0
      %p195 = por %p193, %p194
      %s196 = ssub.s32 %s16, %s23
      %p197 = scmp.eq.s32.totalorder %s196, 0
      %s199 = sadd.s32 %s198, 1
      %s200 = scalar_select %p197, %s198, %s199
      %p203 = pneg %p197
      %p204 = scmp.eq.s32.totalorder %s16, 1
      %p205 = por %p203, %p204
      %p206 = scmp.ne.s32.totalorder %s198, %s201
      %p207 = scmp.eq.s32.totalorder %s16, 0
      %p208 = por %p206, %p207
      %p209 = scmp.ne.s32.totalorder %s198, %s201
      %p210 = scmp.eq.s32.totalorder %s21, 1
      %p211 = por %p209, %p210
      %p212 = scmp.ne.s32.totalorder %s201, %s202
      %p213 = scmp.eq.s32.totalorder %s21, 0
      %p214 = por %p212, %p213
      %p215 = scmp.ne.s32.totalorder %s201, %s202
      %p216 = scmp.eq.s32.totalorder %s22, 1
      %p217 = por %p215, %p216
      %p219 = scmp.ne.s32.totalorder %s202, %s218
      %p220 = scmp.eq.s32.totalorder %s22, 0
      %p221 = por %p219, %p220
      %p222 = scmp.le.s32.totalorder 1, %s16
      %p223 = scmp.lt.s32.totalorder %s16, 3
      %p224 = pnand %p222, %p223
      %p225 = pneg %p224
      // Predicated region
      $region9: #{forward.1} parent=5 // pred_check
        _
      $region10: #{forward.1} parent=5 // pred_check_branch
        %227 = sbr.rel (%p224) target = $region12
      $region11: #{forward.1} parent=5 // pred_region
        %s228 = ssub.s32 %s16, 1
        // Predicated region
        $region13: #{forward.1} parent=11 // pred_check
          %p229 = pneg %p141
        $region14: #{forward.1} parent=11 // pred_check_branch
          %231 = sbr.rel (%p229) target = $region16
        $region15: #{forward.1} parent=11 // pred_region
          %233 = vsyncadd [#allocation3], 0
          %s234 = sshll.u32 %s4, 4
          %s235 = int_to_ptr.hbm [resolvable:$true] %s234
          %s236 = sshll.u32 [#allocation2], 4
          %s237 = int_to_ptr.vmem [resolvable:$true] %s236
          %242 = dma.hbm_to_vmem [thread:$0]  %s235, 16384, %s237, [#allocation3], 128, 128, 8
        $region16: #{forward.1} parent=11 // pred_fallthru
          _
        // Predicated region
        $region17: #{forward.1} parent=11 // pred_check
          %p243 = pneg %p162
        $region18: #{forward.1} parent=11 // pred_check_branch
          %245 = sbr.rel (%p243) target = $region20
        $region19: #{forward.1} parent=11 // pred_region
          %247 = vsyncadd [#allocation5], 0
          %s248 = sshll.u32 %s5, 4
          %s249 = int_to_ptr.hbm [resolvable:$true] %s248
          %s250 = sshll.u32 [#allocation4], 4
          %s251 = int_to_ptr.vmem [resolvable:$true] %s250
          %256 = dma.hbm_to_vmem [thread:$0]  %s249, 20736, %s251, [#allocation5], 256, 256, 16
        $region20: #{forward.1} parent=11 // pred_fallthru
          _
      $region12: #{forward.1} parent=5 // pred_fallthru
        _
      %p257 = scmp.lt.s32.totalorder %s16, 2
      // Predicated region
      $region21: #{forward.1} parent=5 // pred_check
        %p258 = pneg %p257
      $region22: #{forward.1} parent=5 // pred_check_branch
        %260 = sbr.rel (%p258) target = $region24
      $region23: #{forward.1} parent=5 // pred_region
        // Predicated region
        $region25: #{forward.1} parent=23 // pred_check
          %p261 = pneg %p36
        $region26: #{forward.1} parent=23 // pred_check_branch
          %263 = sbr.rel (%p261) target = $region28
        $region27: #{forward.1} parent=23 // pred_region
          %p264 = scmp.lt.s32.totalorder %s16, 1
          %s265 = scalar_select %p264, %s16, 1
          %s266 = smul.addr %s265, 8
          %s267 = smul.addr %s266, 8
          %s268 = scalar_lea.vmem %s0, %s267
        $region28: #{forward.1} parent=23 // pred_fallthru
          _
        // Predicated region
        $region29: #{forward.1} parent=23 // pred_check
          %p269 = pneg %p62
        $region30: #{forward.1} parent=23 // pred_check_branch
          %271 = sbr.rel (%p269) target = $region32
        $region31: #{forward.1} parent=23 // pred_region
          %p272 = scmp.lt.s32.totalorder %s16, 1
          %s273 = scalar_select %p272, %s16, 1
          %s274 = smul.addr %s273, 8
          %s275 = scalar_lea.vmem %s1, %s274
        $region32: #{forward.1} parent=23 // pred_fallthru
          _
        // Predicated region
        $region33: #{forward.1} parent=23 // pred_check
          %p276 = pneg %p88
        $region34: #{forward.1} parent=23 // pred_check_branch
          %278 = sbr.rel (%p276) target = $region36
        $region35: #{forward.1} parent=23 // pred_region
          %p279 = scmp.lt.s32.totalorder %s16, 1
          %s280 = scalar_select %p279, %s16, 1
          %s281 = smul.addr %s280, 8
          %s282 = scalar_lea.vmem %s2, %s281
        $region36: #{forward.1} parent=23 // pred_fallthru
          _
        // Predicated region
        $region37: #{forward.1} parent=23 // pred_check
          %p283 = pneg %p114
        $region38: #{forward.1} parent=23 // pred_check_branch
          %285 = sbr.rel (%p283) target = $region40
        $region39: #{forward.1} parent=23 // pred_region
          %p286 = scmp.lt.s32.totalorder %s16, 1
          %s287 = scalar_select %p286, %s16, 1
          %s288 = scalar_lea.vmem %s3, %s287
        $region40: #{forward.1} parent=23 // pred_fallthru
          _
      $region24: #{forward.1} parent=5 // pred_fallthru
        _
      %p289 = scmp.le.s32.totalorder 1, %s16
      %p290 = scmp.lt.s32.totalorder %s16, 3
      %p291 = pnand %p289, %p290
      %p292 = pneg %p291
      // Predicated region
      $region41: #{forward.1} parent=5 // pred_check
        _
      $region42: #{forward.1} parent=5 // pred_check_branch
        %294 = sbr.rel (%p291) target = $region44
      $region43: #{forward.1} parent=5 // pred_region
        %s295 = ssub.s32 %s16, 1
        // Predicated region
        $region45: #{forward.1} parent=43 // pred_check
          %p296 = pneg %p141
        $region46: #{forward.1} parent=43 // pred_check_branch
          %298 = sbr.rel (%p296) target = $region48
        $region47: #{forward.1} parent=43 // pred_region
          %300 = dma.done [#allocation3], 16384
        $region48: #{forward.1} parent=43 // pred_fallthru
          _
        // Predicated region
        $region49: #{forward.1} parent=43 // pred_check
          %p301 = pneg %p162
        $region50: #{forward.1} parent=43 // pred_check_branch
          %303 = sbr.rel (%p301) target = $region52
        $region51: #{forward.1} parent=43 // pred_region
          %305 = dma.done [#allocation5], 20736
        $region52: #{forward.1} parent=43 // pred_fallthru
          _
        %p306 = scmp.lt.s32.totalorder %s21, 1
        %s307 = scalar_select %p306, %s21, 1
        %s308 = smul.addr %s307, 8
        %s309 = smul.addr %s308, 8
        %s310 = scalar_lea.vmem %s0, %s309
        %p311 = pneg %p42
        %p312 = pneg %p39
        %p313 = scmp.lt.s32.totalorder %s21, 1
        %s314 = scalar_select %p313, %s21, 1
        %s315 = smul.addr %s314, 8
        %s316 = scalar_lea.vmem %s1, %s315
        %p317 = pneg %p68
        %p318 = pneg %p65
        %p319 = scmp.lt.s32.totalorder %s21, 1
        %s320 = scalar_select %p319, %s21, 1
        %s321 = smul.addr %s320, 8
        %s322 = scalar_lea.vmem %s2, %s321
        %p323 = pneg %p94
        %p324 = pneg %p91
        %p325 = scmp.lt.s32.totalorder %s21, 1
        %s326 = scalar_select %p325, %s21, 1
        %s327 = scalar_lea.vmem %s3, %s326
        %p328 = pneg %p120
        %p329 = pneg %p117
        %p330 = pneg %p141
        %p331 = pneg %p138
        %p332 = pneg %p162
        %p333 = pneg %p159
        %p334 = pneg %p188
        %p335 = pneg %p185
        %p336 = scmp.lt.s32.totalorder %s21, 1
        %s337 = scalar_select %p336, %s21, 1
        %s338 = smul.addr %s337, 8
        %s339 = scalar_lea.vmem %s6, %s338
        %p340 = pneg %p214
        %p341 = pneg %p211
        %p342 = scmp.lt.s32.totalorder %s21, 1
        %s343 = scalar_select %p342, %s21, 1
        %s344 = scalar_lea.vmem %s7, %s343
        %p345 = scmp.lt.s32.totalorder %s21, 1
        %s346 = scalar_select %p345, %s21, 1
        %s347 = smul.addr %s346, 8
        %s348 = smul.addr %s347, 8
        %s349 = scalar_lea.vmem %s0, %s348
        %p350 = scmp.lt.s32.totalorder %s21, 1
        %s351 = scalar_select %p350, %s21, 1
        %s352 = smul.addr %s351, 8
        %s353 = scalar_lea.vmem %s1, %s352
        %p354 = scmp.lt.s32.totalorder %s21, 1
        %s355 = scalar_select %p354, %s21, 1
        %s356 = smul.addr %s355, 8
        %s357 = scalar_lea.vmem %s2, %s356
        %p358 = scmp.lt.s32.totalorder %s21, 1
        %s359 = scalar_select %p358, %s21, 1
        %s360 = scalar_lea.vmem %s3, %s359
        %p361 = scmp.lt.s32.totalorder %s21, 1
        %s362 = scalar_select %p361, %s21, 1
        %s363 = smul.addr %s362, 8
        %s364 = scalar_lea.vmem %s6, %s363
        %p365 = scmp.lt.s32.totalorder %s21, 1
        %s366 = scalar_select %p365, %s21, 1
        %s367 = scalar_lea.vmem %s7, %s366
        %v368 = vld [vmem:[%s349] sm:$0xff]
        %v369 = vld [vmem:[%s349 + $0x8] sm:$0xff]
        %v370 = vld [vmem:[%s349 + $0x10] sm:$0xff]
        %v371 = vld [vmem:[%s349 + $0x18] sm:$0xff]
        %v372 = vld [vmem:[%s349 + $0x20] sm:$0xff]
        %v373 = vld [vmem:[%s349 + $0x28] sm:$0xff]
        %v374 = vld [vmem:[%s349 + $0x30] sm:$0xff]
        %v375 = vld [vmem:[%s349 + $0x38] sm:$0xff]
        %v376 = vld [vmem:[#allocation2] sm:$0x7]
        %v377 = vld [vmem:[#allocation2 + $0x8] sm:$0x1]
        %v378 = vperm.slane %v377, 0
        %vm379 = vcmask 23552
        %v381 = vsel %vm379, %v368, 0
        %v384 = vsel %vm379, %v369, 0
        %v387 = vsel %vm379, %v370, 0
        %v390 = vsel %vm379, %v371, 0
        %v393 = vsel %vm379, %v372, 0
        %v396 = vsel %vm379, %v373, 0
        %v399 = vsel %vm379, %v374, 0
        %v402 = vsel %vm379, %v375, 0
        %vm404 = vcmask 1042432
        %v406 = vsel %vm404, %v376, 0
        %408 = vmatpush.msra.mxu0 0.0
        %409 = vmatpush.msra.mxu0 0.0
        %410 = vmatpush.msra.mxu0 0.0
        %411 = vmatpush.msra.mxu0 0.0
        %412 = vmatpush.msra.mxu0 0.0
        %413 = vmatpush.msra.mxu0 0.0
        %414 = vmatpush.msra.mxu0 0.0
        %415 = vmatpush.msra.mxu0 0.0
        %416 = vmatpush.msra.mxu0 0.0
        %417 = vmatpush.msra.mxu0 0.0
        %418 = vmatpush.msra.mxu0 0.0
        %419 = vmatpush.msra.mxu0 0.0
        %420 = vmatpush.msra.mxu0 0.0
        %421 = vmatpush.msra.mxu0 0.0
        %422 = vmatpush.msra.mxu0 0.0
        %423 = vmatpush.msra.mxu0 %v406
        %424 = vmatmul.f32.gmra.mxu0 %v381
        %v425 = vpop.f32.mrf.mxu0
        %v426 = vadd.f32 %v378, %v425
        %427 = vmatmul.f32.gmra.mxu0 %v384
        %v428 = vpop.f32.mrf.mxu0
        %v429 = vadd.f32 %v378, %v428
        %430 = vmatmul.f32.gmra.mxu0 %v387
        %v431 = vpop.f32.mrf.mxu0
        %v432 = vadd.f32 %v378, %v431
        %433 = vmatmul.f32.gmra.mxu0 %v390
        %v434 = vpop.f32.mrf.mxu0
        %v435 = vadd.f32 %v378, %v434
        %436 = vmatmul.f32.gmra.mxu0 %v393
        %v437 = vpop.f32.mrf.mxu0
        %v438 = vadd.f32 %v378, %v437
        %439 = vmatmul.f32.gmra.mxu0 %v396
        %v440 = vpop.f32.mrf.mxu0
        %v441 = vadd.f32 %v378, %v440
        %442 = vmatmul.f32.gmra.mxu0 %v399
        %v443 = vpop.f32.mrf.mxu0
        %v444 = vadd.f32 %v378, %v443
        %445 = vmatmul.f32.gmra.mxu0 %v402
        %v446 = vpop.f32.mrf.mxu0
        %v447 = vadd.f32 %v378, %v446
        %448 = vdwg.mxu0
        %v449 = vmax.f32 %v426, 0.0
        %v450 = vmax.f32 %v429, 0.0
        %v451 = vmax.f32 %v432, 0.0
        %v452 = vmax.f32 %v435, 0.0
        %v453 = vmax.f32 %v438, 0.0
        %v454 = vmax.f32 %v441, 0.0
        %v455 = vmax.f32 %v444, 0.0
        %v456 = vmax.f32 %v447, 0.0
        %v457 = vld [vmem:[#allocation2 + $0x10] sm:$0xff]
        %v458 = vld [vmem:[#allocation2 + $0x18] sm:$0xff]
        %v459 = vld [vmem:[#allocation2 + $0x20] sm:$0xff]
        %v460 = vld [vmem:[#allocation2 + $0x28] sm:$0xff]
        %v461 = vld [vmem:[#allocation2 + $0x30] sm:$0x1]
        %v462 = vperm.slane %v461, 0
        %vm463 = vcmask 261120
        %v465 = vsel %vm463, %v449, 0
        %v468 = vsel %vm463, %v450, 0
        %v471 = vsel %vm463, %v451, 0
        %v474 = vsel %vm463, %v452, 0
        %v477 = vsel %vm463, %v453, 0
        %v480 = vsel %vm463, %v454, 0
        %v483 = vsel %vm463, %v455, 0
        %v486 = vsel %vm463, %v456, 0
        %488 = vmatpush.msra.mxu0 0.0
        %489 = vmatpush.msra.mxu0 0.0
        %490 = vmatpush.msra.mxu0 0.0
        %491 = vmatpush.msra.mxu0 0.0
        %492 = vmatpush.msra.mxu0 0.0
        %493 = vmatpush.msra.mxu0 0.0
        %494 = vmatpush.msra.mxu0 0.0
        %495 = vmatpush.msra.mxu0 0.0
        %496 = vmatpush.msra.mxu0 0.0
        %497 = vmatpush.msra.mxu0 0.0
        %498 = vmatpush.msra.mxu0 0.0
        %499 = vmatpush.msra.mxu0 0.0
        %500 = vmatpush.msra.mxu0 %v460
        %501 = vmatpush.msra.mxu0 %v459
        %502 = vmatpush.msra.mxu0 %v458
        %503 = vmatpush.msra.mxu0 %v457
        %504 = vmatmul.f32.gmra.mxu0 %v465
        %v505 = vpop.f32.mrf.mxu0
        %v506 = vadd.f32 %v462, %v505
        %507 = vmatmul.f32.gmra.mxu0 %v468
        %v508 = vpop.f32.mrf.mxu0
        %v509 = vadd.f32 %v462, %v508
        %510 = vmatmul.f32.gmra.mxu0 %v471
        %v511 = vpop.f32.mrf.mxu0
        %v512 = vadd.f32 %v462, %v511
        %513 = vmatmul.f32.gmra.mxu0 %v474
        %v514 = vpop.f32.mrf.mxu0
        %v515 = vadd.f32 %v462, %v514
        %516 = vmatmul.f32.gmra.mxu0 %v477
        %v517 = vpop.f32.mrf.mxu0
        %v518 = vadd.f32 %v462, %v517
        %519 = vmatmul.f32.gmra.mxu0 %v480
        %v520 = vpop.f32.mrf.mxu0
        %v521 = vadd.f32 %v462, %v520
        %522 = vmatmul.f32.gmra.mxu0 %v483
        %v523 = vpop.f32.mrf.mxu0
        %v524 = vadd.f32 %v462, %v523
        %525 = vmatmul.f32.gmra.mxu0 %v486
        %v526 = vpop.f32.mrf.mxu0
        %v527 = vadd.f32 %v462, %v526
        %528 = vdwg.mxu0
        %v529 = vmax.f32 %v506, 0.0
        %v530 = vmax.f32 %v509, 0.0
        %v531 = vmax.f32 %v512, 0.0
        %v532 = vmax.f32 %v515, 0.0
        %v533 = vmax.f32 %v518, 0.0
        %v534 = vmax.f32 %v521, 0.0
        %v535 = vmax.f32 %v524, 0.0
        %v536 = vmax.f32 %v527, 0.0
        %v537 = vld [vmem:[#allocation2 + $0x38] sm:$0xff]
        %v538 = vld [vmem:[#allocation2 + $0x40] sm:$0xff]
        %v539 = vld [vmem:[#allocation2 + $0x48] sm:$0xff]
        %v540 = vld [vmem:[#allocation2 + $0x50] sm:$0xff]
        %v541 = vld [vmem:[#allocation2 + $0x58] sm:$0xff]
        %v542 = vld [vmem:[#allocation2 + $0x60] sm:$0xff]
        %v543 = vld [vmem:[#allocation2 + $0x68] sm:$0xff]
        %v544 = vld [vmem:[#allocation2 + $0x70] sm:$0xff]
        %v545 = vld [vmem:[#allocation2 + $0x78] sm:$0x1]
        %v546 = vperm.slane %v545, 0
        %vm547 = vcmask 523264
        %v549 = vsel %vm547, %v529, 0
        %v552 = vsel %vm547, %v530, 0
        %v555 = vsel %vm547, %v531, 0
        %v558 = vsel %vm547, %v532, 0
        %v561 = vsel %vm547, %v533, 0
        %v564 = vsel %vm547, %v534, 0
        %v567 = vsel %vm547, %v535, 0
        %v570 = vsel %vm547, %v536, 0
        %572 = vmatpush.msra.mxu0 0.0
        %573 = vmatpush.msra.mxu0 0.0
        %574 = vmatpush.msra.mxu0 0.0
        %575 = vmatpush.msra.mxu0 0.0
        %576 = vmatpush.msra.mxu0 0.0
        %577 = vmatpush.msra.mxu0 0.0
        %578 = vmatpush.msra.mxu0 0.0
        %579 = vmatpush.msra.mxu0 0.0
        %580 = vmatpush.msra.mxu0 %v544
        %581 = vmatpush.msra.mxu0 %v543
        %582 = vmatpush.msra.mxu0 %v542
        %583 = vmatpush.msra.mxu0 %v541
        %584 = vmatpush.msra.mxu0 %v540
        %585 = vmatpush.msra.mxu0 %v539
        %586 = vmatpush.msra.mxu0 %v538
        %587 = vmatpush.msra.mxu0 %v537
        %588 = vmatmul.f32.gmra.mxu0 %v549
        %v589 = vpop.f32.mrf.mxu0
        %v590 = vadd.f32 %v546, %v589
        %591 = vmatmul.f32.gmra.mxu0 %v552
        %v592 = vpop.f32.mrf.mxu0
        %v593 = vadd.f32 %v546, %v592
        %594 = vmatmul.f32.gmra.mxu0 %v555
        %v595 = vpop.f32.mrf.mxu0
        %v596 = vadd.f32 %v546, %v595
        %597 = vmatmul.f32.gmra.mxu0 %v558
        %v598 = vpop.f32.mrf.mxu0
        %v599 = vadd.f32 %v546, %v598
        %600 = vmatmul.f32.gmra.mxu0 %v561
        %v601 = vpop.f32.mrf.mxu0
        %v602 = vadd.f32 %v546, %v601
        %603 = vmatmul.f32.gmra.mxu0 %v564
        %v604 = vpop.f32.mrf.mxu0
        %v605 = vadd.f32 %v546, %v604
        %606 = vmatmul.f32.gmra.mxu0 %v567
        %v607 = vpop.f32.mrf.mxu0
        %v608 = vadd.f32 %v546, %v607
        %609 = vmatmul.f32.gmra.mxu0 %v570
        %v610 = vpop.f32.mrf.mxu0
        %v611 = vadd.f32 %v546, %v610
        %612 = vdwg.mxu0
        %v613 = vmax.f32 %v590, 0.0
        %v614 = vmax.f32 %v593, 0.0
        %v615 = vmax.f32 %v596, 0.0
        %v616 = vmax.f32 %v599, 0.0
        %v617 = vmax.f32 %v602, 0.0
        %v618 = vmax.f32 %v605, 0.0
        %v619 = vmax.f32 %v608, 0.0
        %v620 = vmax.f32 %v611, 0.0
        %v621 = vmax.f32 %v613, %v617
        %v622 = vmax.f32 %v614, %v618
        %v623 = vmax.f32 %v615, %v619
        %v624 = vmax.f32 %v616, %v620
        %v625 = vmax.f32 %v621, %v622
        %v626 = vmax.f32 %v623, %v624
        %v627 = vmax.f32 %v625, %v626
        %v628 = vrot.slane %v627, 4
        %v629 = vmax.f32 %v627, %v628
        %v630 = vrot.slane %v629, 2
        %v631 = vmax.f32 %v629, %v630
        %v632 = vrot.slane %v631, 1
        %v633 = vmax.f32 %v631, %v632
        %v634 = vld [vmem:[#allocation2 + $0x80] sm:$0xff]
        %v635 = vld [vmem:[#allocation2 + $0x88] sm:$0xff]
        %v636 = vld [vmem:[#allocation2 + $0x90] sm:$0xff]
        %v637 = vld [vmem:[#allocation2 + $0x98] sm:$0xff]
        %v638 = vld [vmem:[#allocation2 + $0xa0] sm:$0xff]
        %v639 = vld [vmem:[#allocation2 + $0xa8] sm:$0xff]
        %v640 = vld [vmem:[#allocation2 + $0xb0] sm:$0xff]
        %v641 = vld [vmem:[#allocation2 + $0xb8] sm:$0xff]
        %v642 = vld [vmem:[#allocation2 + $0xc0] sm:$0xff]
        %v643 = vld [vmem:[#allocation2 + $0xc8] sm:$0xff]
        %v644 = vld [vmem:[#allocation2 + $0xd0] sm:$0xff]
        %v645 = vld [vmem:[#allocation2 + $0xd8] sm:$0xff]
        %v646 = vld [vmem:[#allocation2 + $0xe0] sm:$0xff]
        %v647 = vld [vmem:[#allocation2 + $0xe8] sm:$0xff]
        %v648 = vld [vmem:[#allocation2 + $0xf0] sm:$0xff]
        %v649 = vld [vmem:[#allocation2 + $0xf8] sm:$0xff]
        %v650 = vld [vmem:[#allocation2 + $0x100] sm:$0x1]
        %651 = vmatpush.msra.mxu0 %v649
        %652 = vmatpush.msra.mxu0 %v648
        %653 = vmatpush.msra.mxu0 %v647
        %654 = vmatpush.msra.mxu0 %v646
        %655 = vmatpush.msra.mxu0 %v645
        %656 = vmatpush.msra.mxu0 %v644
        %657 = vmatpush.msra.mxu0 %v643
        %658 = vmatpush.msra.mxu0 %v642
        %659 = vmatpush.msra.mxu0 %v641
        %660 = vmatpush.msra.mxu0 %v640
        %661 = vmatpush.msra.mxu0 %v639
        %662 = vmatpush.msra.mxu0 %v638
        %663 = vmatpush.msra.mxu0 %v637
        %664 = vmatpush.msra.mxu0 %v636
        %665 = vmatpush.msra.mxu0 %v635
        %666 = vmatpush.msra.mxu0 %v634
        %667 = vmatmul.f32.gmra.mxu0 %v633
        %v668 = vpop.f32.mrf.mxu0
        %v669 = vadd.f32 %v650, %v668
        %670 = vdwg.mxu0
        %v671 = vmax.f32 %v669, 0.0
        %v672 = vld [vmem:[#allocation2 + $0x108] sm:$0xff]
        %v673 = vld [vmem:[#allocation2 + $0x110] sm:$0xff]
        %v674 = vld [vmem:[#allocation2 + $0x118] sm:$0xff]
        %v675 = vld [vmem:[#allocation2 + $0x120] sm:$0xff]
        %v676 = vld [vmem:[#allocation2 + $0x128] sm:$0xff]
        %v677 = vld [vmem:[#allocation2 + $0x130] sm:$0xff]
        %v678 = vld [vmem:[#allocation2 + $0x138] sm:$0xff]
        %v679 = vld [vmem:[#allocation2 + $0x140] sm:$0xff]
        %v680 = vld [vmem:[#allocation2 + $0x148] sm:$0x1]
        %v682 = vsel %vm547, %v671, 0
        %684 = vmatpush.msra.mxu0 0.0
        %685 = vmatpush.msra.mxu0 0.0
        %686 = vmatpush.msra.mxu0 0.0
        %687 = vmatpush.msra.mxu0 0.0
        %688 = vmatpush.msra.mxu0 0.0
        %689 = vmatpush.msra.mxu0 0.0
        %690 = vmatpush.msra.mxu0 0.0
        %691 = vmatpush.msra.mxu0 0.0
        %692 = vmatpush.msra.mxu0 %v679
        %693 = vmatpush.msra.mxu0 %v678
        %694 = vmatpush.msra.mxu0 %v677
        %695 = vmatpush.msra.mxu0 %v676
        %696 = vmatpush.msra.mxu0 %v675
        %697 = vmatpush.msra.mxu0 %v674
        %698 = vmatpush.msra.mxu0 %v673
        %699 = vmatpush.msra.mxu0 %v672
        %700 = vmatmul.f32.gmra.mxu0 %v682
        %v701 = vpop.f32.mrf.mxu0
        %v702 = vadd.f32 %v680, %v701
        %703 = vdwg.mxu0
        %704 = vset.pattern.permute.xlu0 0
        %705 = vperm.xlu0 %704, %v368
        %v706 = vpop.permute.xlu0 %705
        %708 = vset.pattern.permute.xlu0 0
        %709 = vperm.xlu0 %708, %v369
        %v710 = vpop.permute.xlu0 %709
        %712 = vset.pattern.permute.xlu0 0
        %713 = vperm.xlu0 %712, %v370
        %v714 = vpop.permute.xlu0 %713
        %716 = vset.pattern.permute.xlu0 0
        %717 = vperm.xlu0 %716, %v371
        %v718 = vpop.permute.xlu0 %717
        %720 = vset.pattern.permute.xlu0 0
        %721 = vperm.xlu0 %720, %v372
        %v722 = vpop.permute.xlu0 %721
        %724 = vset.pattern.permute.xlu0 0
        %725 = vperm.xlu0 %724, %v373
        %v726 = vpop.permute.xlu0 %725
        %728 = vset.pattern.permute.xlu0 0
        %729 = vperm.xlu0 %728, %v374
        %v730 = vpop.permute.xlu0 %729
        %732 = vset.pattern.permute.xlu0 0
        %733 = vperm.xlu0 %732, %v375
        %v734 = vpop.permute.xlu0 %733
        %v736 = vperm.slane %v702, 0
        %v737 = vmul.f32 %v706, %v736
        %v738 = vmul.f32 %v710, %v736
        %v739 = vmul.f32 %v714, %v736
        %v740 = vmul.f32 %v718, %v736
        %v741 = vmul.f32 %v722, %v736
        %v742 = vmul.f32 %v726, %v736
        %v743 = vmul.f32 %v730, %v736
        %v744 = vmul.f32 %v734, %v736
        %745 = vset.pattern.permute.xlu0 1
        %746 = vperm.xlu0 %745, %v368
        %v747 = vpop.permute.xlu0 %746
        %749 = vset.pattern.permute.xlu0 1
        %750 = vperm.xlu0 %749, %v369
        %v751 = vpop.permute.xlu0 %750
        %753 = vset.pattern.permute.xlu0 1
        %754 = vperm.xlu0 %753, %v370
        %v755 = vpop.permute.xlu0 %754
        %757 = vset.pattern.permute.xlu0 1
        %758 = vperm.xlu0 %757, %v371
        %v759 = vpop.permute.xlu0 %758
        %761 = vset.pattern.permute.xlu0 1
        %762 = vperm.xlu0 %761, %v372
        %v763 = vpop.permute.xlu0 %762
        %765 = vset.pattern.permute.xlu0 1
        %766 = vperm.xlu0 %765, %v373
        %v767 = vpop.permute.xlu0 %766
        %769 = vset.pattern.permute.xlu0 1
        %770 = vperm.xlu0 %769, %v374
        %v771 = vpop.permute.xlu0 %770
        %773 = vset.pattern.permute.xlu0 1
        %774 = vperm.xlu0 %773, %v375
        %v775 = vpop.permute.xlu0 %774
        %v777 = vmul.f32 %v747, %v736
        %v778 = vmul.f32 %v751, %v736
        %v779 = vmul.f32 %v755, %v736
        %v780 = vmul.f32 %v759, %v736
        %v781 = vmul.f32 %v763, %v736
        %v782 = vmul.f32 %v767, %v736
        %v783 = vmul.f32 %v771, %v736
        %v784 = vmul.f32 %v775, %v736
        %793 = vrot.lane.b32.xlu0 %v777, 125
        %v794 = vpop.permute.xlu0 %793
        %795 = vrot.lane.b32.xlu0 %v778, 125
        %v796 = vpop.permute.xlu0 %795
        %797 = vrot.lane.b32.xlu0 %v779, 125
        %v798 = vpop.permute.xlu0 %797
        %799 = vrot.lane.b32.xlu0 %v780, 125
        %v800 = vpop.permute.xlu0 %799
        %801 = vrot.lane.b32.xlu0 %v781, 125
        %v802 = vpop.permute.xlu0 %801
        %803 = vrot.lane.b32.xlu0 %v782, 125
        %v804 = vpop.permute.xlu0 %803
        %805 = vrot.lane.b32.xlu0 %v783, 125
        %v806 = vpop.permute.xlu0 %805
        %807 = vrot.lane.b32.xlu0 %v784, 125
        %v808 = vpop.permute.xlu0 %807
        %v817 = vadd.f32 %v737, %v794
        %v818 = vadd.f32 %v738, %v796
        %v819 = vadd.f32 %v739, %v798
        %v820 = vadd.f32 %v740, %v800
        %v821 = vadd.f32 %v741, %v802
        %v822 = vadd.f32 %v742, %v804
        %v823 = vadd.f32 %v743, %v806
        %v824 = vadd.f32 %v744, %v808
        %825 = vset.pattern.permute.xlu0 2
        %826 = vperm.xlu0 %825, %v368
        %v827 = vpop.permute.xlu0 %826
        %829 = vset.pattern.permute.xlu0 2
        %830 = vperm.xlu0 %829, %v369
        %v831 = vpop.permute.xlu0 %830
        %833 = vset.pattern.permute.xlu0 2
        %834 = vperm.xlu0 %833, %v370
        %v835 = vpop.permute.xlu0 %834
        %837 = vset.pattern.permute.xlu0 2
        %838 = vperm.xlu0 %837, %v371
        %v839 = vpop.permute.xlu0 %838
        %841 = vset.pattern.permute.xlu0 2
        %842 = vperm.xlu0 %841, %v372
        %v843 = vpop.permute.xlu0 %842
        %845 = vset.pattern.permute.xlu0 2
        %846 = vperm.xlu0 %845, %v373
        %v847 = vpop.permute.xlu0 %846
        %849 = vset.pattern.permute.xlu0 2
        %850 = vperm.xlu0 %849, %v374
        %v851 = vpop.permute.xlu0 %850
        %853 = vset.pattern.permute.xlu0 2
        %854 = vperm.xlu0 %853, %v375
        %v855 = vpop.permute.xlu0 %854
        %v857 = vmul.f32 %v827, %v736
        %v858 = vmul.f32 %v831, %v736
        %v859 = vmul.f32 %v835, %v736
        %v860 = vmul.f32 %v839, %v736
        %v861 = vmul.f32 %v843, %v736
        %v862 = vmul.f32 %v847, %v736
        %v863 = vmul.f32 %v851, %v736
        %v864 = vmul.f32 %v855, %v736
        %873 = vrot.lane.b32.xlu0 %v857, 122
        %v874 = vpop.permute.xlu0 %873
        %875 = vrot.lane.b32.xlu0 %v858, 122
        %v876 = vpop.permute.xlu0 %875
        %877 = vrot.lane.b32.xlu0 %v859, 122
        %v878 = vpop.permute.xlu0 %877
        %879 = vrot.lane.b32.xlu0 %v860, 122
        %v880 = vpop.permute.xlu0 %879
        %881 = vrot.lane.b32.xlu0 %v861, 122
        %v882 = vpop.permute.xlu0 %881
        %883 = vrot.lane.b32.xlu0 %v862, 122
        %v884 = vpop.permute.xlu0 %883
        %885 = vrot.lane.b32.xlu0 %v863, 122
        %v886 = vpop.permute.xlu0 %885
        %887 = vrot.lane.b32.xlu0 %v864, 122
        %v888 = vpop.permute.xlu0 %887
        %v897 = vadd.f32 %v817, %v874
        %v898 = vadd.f32 %v818, %v876
        %v899 = vadd.f32 %v819, %v878
        %v900 = vadd.f32 %v820, %v880
        %v901 = vadd.f32 %v821, %v882
        %v902 = vadd.f32 %v822, %v884
        %v903 = vadd.f32 %v823, %v886
        %v904 = vadd.f32 %v824, %v888
        %v905 = vadd.f32 %v368, %v897
        %v906 = vadd.f32 %v369, %v898
        %v907 = vadd.f32 %v370, %v899
        %v908 = vadd.f32 %v371, %v900
        %v909 = vadd.f32 %v372, %v901
        %v910 = vadd.f32 %v373, %v902
        %v911 = vadd.f32 %v374, %v903
        %v912 = vadd.f32 %v375, %v904
        %v913 = vld [vmem:[#allocation2 + $0x150] sm:$0x7]
        %v914 = vld [vmem:[#allocation2 + $0x158] sm:$0x1]
        %v915 = vperm.slane %v914, 0
        %v917 = vsel %vm379, %v905, 0
        %v920 = vsel %vm379, %v906, 0
        %v923 = vsel %vm379, %v907, 0
        %v926 = vsel %vm379, %v908, 0
        %v929 = vsel %vm379, %v909, 0
        %v932 = vsel %vm379, %v910, 0
        %v935 = vsel %vm379, %v911, 0
        %v938 = vsel %vm379, %v912, 0
        %v941 = vsel %vm404, %v913, 0
        %943 = vmatpush.msra.mxu0 0.0
        %944 = vmatpush.msra.mxu0 0.0
        %945 = vmatpush.msra.mxu0 0.0
        %946 = vmatpush.msra.mxu0 0.0
        %947 = vmatpush.msra.mxu0 0.0
        %948 = vmatpush.msra.mxu0 0.0
        %949 = vmatpush.msra.mxu0 0.0
        %950 = vmatpush.msra.mxu0 0.0
        %951 = vmatpush.msra.mxu0 0.0
        %952 = vmatpush.msra.mxu0 0.0
        %953 = vmatpush.msra.mxu0 0.0
        %954 = vmatpush.msra.mxu0 0.0
        %955 = vmatpush.msra.mxu0 0.0
        %956 = vmatpush.msra.mxu0 0.0
        %957 = vmatpush.msra.mxu0 0.0
        %958 = vmatpush.msra.mxu0 %v941
        %959 = vmatmul.f32.gmra.mxu0 %v917
        %v960 = vpop.f32.mrf.mxu0
        %v961 = vadd.f32 %v915, %v960
        %962 = vmatmul.f32.gmra.mxu0 %v920
        %v963 = vpop.f32.mrf.mxu0
        %v964 = vadd.f32 %v915, %v963
        %965 = vmatmul.f32.gmra.mxu0 %v923
        %v966 = vpop.f32.mrf.mxu0
        %v967 = vadd.f32 %v915, %v966
        %968 = vmatmul.f32.gmra.mxu0 %v926
        %v969 = vpop.f32.mrf.mxu0
        %v970 = vadd.f32 %v915, %v969
        %971 = vmatmul.f32.gmra.mxu0 %v929
        %v972 = vpop.f32.mrf.mxu0
        %v973 = vadd.f32 %v915, %v972
        %974 = vmatmul.f32.gmra.mxu0 %v932
        %v975 = vpop.f32.mrf.mxu0
        %v976 = vadd.f32 %v915, %v975
        %977 = vmatmul.f32.gmra.mxu0 %v935
        %v978 = vpop.f32.mrf.mxu0
        %v979 = vadd.f32 %v915, %v978
        %980 = vmatmul.f32.gmra.mxu0 %v938
        %v981 = vpop.f32.mrf.mxu0
        %v982 = vadd.f32 %v915, %v981
        %983 = vdwg.mxu0
        %v984 = vmax.f32 %v961, 0.0
        %v985 = vmax.f32 %v964, 0.0
        %v986 = vmax.f32 %v967, 0.0
        %v987 = vmax.f32 %v970, 0.0
        %v988 = vmax.f32 %v973, 0.0
        %v989 = vmax.f32 %v976, 0.0
        %v990 = vmax.f32 %v979, 0.0
        %v991 = vmax.f32 %v982, 0.0
        %v992 = vld [vmem:[#allocation2 + $0x160] sm:$0xff]
        %v993 = vld [vmem:[#allocation2 + $0x168] sm:$0xff]
        %v994 = vld [vmem:[#allocation2 + $0x170] sm:$0xff]
        %v995 = vld [vmem:[#allocation2 + $0x178] sm:$0xff]
        %v996 = vld [vmem:[#allocation2 + $0x180] sm:$0x1]
        %v997 = vperm.slane %v996, 0
        %v999 = vsel %vm463, %v984, 0
        %v1002 = vsel %vm463, %v985, 0
        %v1005 = vsel %vm463, %v986, 0
        %v1008 = vsel %vm463, %v987, 0
        %v1011 = vsel %vm463, %v988, 0
        %v1014 = vsel %vm463, %v989, 0
        %v1017 = vsel %vm463, %v990, 0
        %v1020 = vsel %vm463, %v991, 0
        %1022 = vmatpush.msra.mxu0 0.0
        %1023 = vmatpush.msra.mxu0 0.0
        %1024 = vmatpush.msra.mxu0 0.0
        %1025 = vmatpush.msra.mxu0 0.0
        %1026 = vmatpush.msra.mxu0 0.0
        %1027 = vmatpush.msra.mxu0 0.0
        %1028 = vmatpush.msra.mxu0 0.0
        %1029 = vmatpush.msra.mxu0 0.0
        %1030 = vmatpush.msra.mxu0 0.0
        %1031 = vmatpush.msra.mxu0 0.0
        %1032 = vmatpush.msra.mxu0 0.0
        %1033 = vmatpush.msra.mxu0 0.0
        %1034 = vmatpush.msra.mxu0 %v995
        %1035 = vmatpush.msra.mxu0 %v994
        %1036 = vmatpush.msra.mxu0 %v993
        %1037 = vmatpush.msra.mxu0 %v992
        %1038 = vmatmul.f32.gmra.mxu0 %v999
        %v1039 = vpop.f32.mrf.mxu0
        %v1040 = vadd.f32 %v997, %v1039
        %1041 = vmatmul.f32.gmra.mxu0 %v1002
        %v1042 = vpop.f32.mrf.mxu0
        %v1043 = vadd.f32 %v997, %v1042
        %1044 = vmatmul.f32.gmra.mxu0 %v1005
        %v1045 = vpop.f32.mrf.mxu0
        %v1046 = vadd.f32 %v997, %v1045
        %1047 = vmatmul.f32.gmra.mxu0 %v1008
        %v1048 = vpop.f32.mrf.mxu0
        %v1049 = vadd.f32 %v997, %v1048
        %1050 = vmatmul.f32.gmra.mxu0 %v1011
        %v1051 = vpop.f32.mrf.mxu0
        %v1052 = vadd.f32 %v997, %v1051
        %1053 = vmatmul.f32.gmra.mxu0 %v1014
        %v1054 = vpop.f32.mrf.mxu0
        %v1055 = vadd.f32 %v997, %v1054
        %1056 = vmatmul.f32.gmra.mxu0 %v1017
        %v1057 = vpop.f32.mrf.mxu0
        %v1058 = vadd.f32 %v997, %v1057
        %1059 = vmatmul.f32.gmra.mxu0 %v1020
        %v1060 = vpop.f32.mrf.mxu0
        %v1061 = vadd.f32 %v997, %v1060
        %1062 = vdwg.mxu0
        %v1063 = vmax.f32 %v1040, 0.0
        %v1064 = vmax.f32 %v1043, 0.0
        %v1065 = vmax.f32 %v1046, 0.0
        %v1066 = vmax.f32 %v1049, 0.0
        %v1067 = vmax.f32 %v1052, 0.0
        %v1068 = vmax.f32 %v1055, 0.0
        %v1069 = vmax.f32 %v1058, 0.0
        %v1070 = vmax.f32 %v1061, 0.0
        %v1071 = vld [vmem:[#allocation2 + $0x188] sm:$0xff]
        %v1072 = vld [vmem:[#allocation2 + $0x190] sm:$0xff]
        %v1073 = vld [vmem:[#allocation2 + $0x198] sm:$0xff]
        %v1074 = vld [vmem:[#allocation2 + $0x1a0] sm:$0xff]
        %v1075 = vld [vmem:[#allocation2 + $0x1a8] sm:$0xff]
        %v1076 = vld [vmem:[#allocation2 + $0x1b0] sm:$0xff]
        %v1077 = vld [vmem:[#allocation2 + $0x1b8] sm:$0xff]
        %v1078 = vld [vmem:[#allocation2 + $0x1c0] sm:$0xff]
        %v1079 = vld [vmem:[#allocation2 + $0x1c8] sm:$0x1]
        %v1080 = vperm.slane %v1079, 0
        %v1082 = vsel %vm547, %v1063, 0
        %v1085 = vsel %vm547, %v1064, 0
        %v1088 = vsel %vm547, %v1065, 0
        %v1091 = vsel %vm547, %v1066, 0
        %v1094 = vsel %vm547, %v1067, 0
        %v1097 = vsel %vm547, %v1068, 0
        %v1100 = vsel %vm547, %v1069, 0
        %v1103 = vsel %vm547, %v1070, 0
        %1105 = vmatpush.msra.mxu0 0.0
        %1106 = vmatpush.msra.mxu0 0.0
        %1107 = vmatpush.msra.mxu0 0.0
        %1108 = vmatpush.msra.mxu0 0.0
        %1109 = vmatpush.msra.mxu0 0.0
        %1110 = vmatpush.msra.mxu0 0.0
        %1111 = vmatpush.msra.mxu0 0.0
        %1112 = vmatpush.msra.mxu0 0.0
        %1113 = vmatpush.msra.mxu0 %v1078
        %1114 = vmatpush.msra.mxu0 %v1077
        %1115 = vmatpush.msra.mxu0 %v1076
        %1116 = vmatpush.msra.mxu0 %v1075
        %1117 = vmatpush.msra.mxu0 %v1074
        %1118 = vmatpush.msra.mxu0 %v1073
        %1119 = vmatpush.msra.mxu0 %v1072
        %1120 = vmatpush.msra.mxu0 %v1071
        %1121 = vmatmul.f32.gmra.mxu0 %v1082
        %v1122 = vpop.f32.mrf.mxu0
        %v1123 = vadd.f32 %v1080, %v1122
        %1124 = vmatmul.f32.gmra.mxu0 %v1085
        %v1125 = vpop.f32.mrf.mxu0
        %v1126 = vadd.f32 %v1080, %v1125
        %1127 = vmatmul.f32.gmra.mxu0 %v1088
        %v1128 = vpop.f32.mrf.mxu0
        %v1129 = vadd.f32 %v1080, %v1128
        %1130 = vmatmul.f32.gmra.mxu0 %v1091
        %v1131 = vpop.f32.mrf.mxu0
        %v1132 = vadd.f32 %v1080, %v1131
        %1133 = vmatmul.f32.gmra.mxu0 %v1094
        %v1134 = vpop.f32.mrf.mxu0
        %v1135 = vadd.f32 %v1080, %v1134
        %1136 = vmatmul.f32.gmra.mxu0 %v1097
        %v1137 = vpop.f32.mrf.mxu0
        %v1138 = vadd.f32 %v1080, %v1137
        %1139 = vmatmul.f32.gmra.mxu0 %v1100
        %v1140 = vpop.f32.mrf.mxu0
        %v1141 = vadd.f32 %v1080, %v1140
        %1142 = vmatmul.f32.gmra.mxu0 %v1103
        %v1143 = vpop.f32.mrf.mxu0
        %v1144 = vadd.f32 %v1080, %v1143
        %1145 = vdwg.mxu0
        %v1146 = vmax.f32 %v1123, 0.0
        %v1147 = vmax.f32 %v1126, 0.0
        %v1148 = vmax.f32 %v1129, 0.0
        %v1149 = vmax.f32 %v1132, 0.0
        %v1150 = vmax.f32 %v1135, 0.0
        %v1151 = vmax.f32 %v1138, 0.0
        %v1152 = vmax.f32 %v1141, 0.0
        %v1153 = vmax.f32 %v1144, 0.0
        %v1154 = vmax.f32 %v1146, %v1150
        %v1155 = vmax.f32 %v1147, %v1151
        %v1156 = vmax.f32 %v1148, %v1152
        %v1157 = vmax.f32 %v1149, %v1153
        %v1158 = vmax.f32 %v1154, %v1155
        %v1159 = vmax.f32 %v1156, %v1157
        %v1160 = vmax.f32 %v1158, %v1159
        %v1161 = vrot.slane %v1160, 4
        %v1162 = vmax.f32 %v1160, %v1161
        %v1163 = vrot.slane %v1162, 2
        %v1164 = vmax.f32 %v1162, %v1163
        %v1165 = vrot.slane %v1164, 1
        %v1166 = vmax.f32 %v1164, %v1165
        %v1167 = vld [vmem:[#allocation2 + $0x1d0] sm:$0xff]
        %v1168 = vld [vmem:[#allocation2 + $0x1d8] sm:$0xff]
        %v1169 = vld [vmem:[#allocation2 + $0x1e0] sm:$0xff]
        %v1170 = vld [vmem:[#allocation2 + $0x1e8] sm:$0xff]
        %v1171 = vld [vmem:[#allocation2 + $0x1f0] sm:$0xff]
        %v1172 = vld [vmem:[#allocation2 + $0x1f8] sm:$0xff]
        %v1173 = vld [vmem:[#allocation2 + $0x200] sm:$0xff]
        %v1174 = vld [vmem:[#allocation2 + $0x208] sm:$0xff]
        %v1175 = vld [vmem:[#allocation2 + $0x210] sm:$0xff]
        %v1176 = vld [vmem:[#allocation2 + $0x218] sm:$0xff]
        %v1177 = vld [vmem:[#allocation2 + $0x220] sm:$0xff]
        %v1178 = vld [vmem:[#allocation2 + $0x228] sm:$0xff]
        %v1179 = vld [vmem:[#allocation2 + $0x230] sm:$0xff]
        %v1180 = vld [vmem:[#allocation2 + $0x238] sm:$0xff]
        %v1181 = vld [vmem:[#allocation2 + $0x240] sm:$0xff]
        %v1182 = vld [vmem:[#allocation2 + $0x248] sm:$0xff]
        %v1183 = vld [vmem:[#allocation2 + $0x250] sm:$0x1]
        %1184 = vmatpush.msra.mxu0 %v1182
        %1185 = vmatpush.msra.mxu0 %v1181
        %1186 = vmatpush.msra.mxu0 %v1180
        %1187 = vmatpush.msra.mxu0 %v1179
        %1188 = vmatpush.msra.mxu0 %v1178
        %1189 = vmatpush.msra.mxu0 %v1177
        %1190 = vmatpush.msra.mxu0 %v1176
        %1191 = vmatpush.msra.mxu0 %v1175
        %1192 = vmatpush.msra.mxu0 %v1174
        %1193 = vmatpush.msra.mxu0 %v1173
        %1194 = vmatpush.msra.mxu0 %v1172
        %1195 = vmatpush.msra.mxu0 %v1171
        %1196 = vmatpush.msra.mxu0 %v1170
        %1197 = vmatpush.msra.mxu0 %v1169
        %1198 = vmatpush.msra.mxu0 %v1168
        %1199 = vmatpush.msra.mxu0 %v1167
        %1200 = vmatmul.f32.gmra.mxu0 %v1166
        %v1201 = vpop.f32.mrf.mxu0
        %v1202 = vadd.f32 %v1183, %v1201
        %1203 = vdwg.mxu0
        %v1204 = vmax.f32 %v1202, 0.0
        %v1205 = vld [vmem:[#allocation2 + $0x258] sm:$0xff]
        %v1206 = vld [vmem:[#allocation2 + $0x260] sm:$0xff]
        %v1207 = vld [vmem:[#allocation2 + $0x268] sm:$0xff]
        %v1208 = vld [vmem:[#allocation2 + $0x270] sm:$0xff]
        %v1209 = vld [vmem:[#allocation2 + $0x278] sm:$0xff]
        %v1210 = vld [vmem:[#allocation2 + $0x280] sm:$0xff]
        %v1211 = vld [vmem:[#allocation2 + $0x288] sm:$0xff]
        %v1212 = vld [vmem:[#allocation2 + $0x290] sm:$0xff]
        %v1213 = vld [vmem:[#allocation2 + $0x298] sm:$0x1]
        %v1215 = vsel %vm547, %v1204, 0
        %1217 = vmatpush.msra.mxu0 0.0
        %1218 = vmatpush.msra.mxu0 0.0
        %1219 = vmatpush.msra.mxu0 0.0
        %1220 = vmatpush.msra.mxu0 0.0
        %1221 = vmatpush.msra.mxu0 0.0
        %1222 = vmatpush.msra.mxu0 0.0
        %1223 = vmatpush.msra.mxu0 0.0
        %1224 = vmatpush.msra.mxu0 0.0
        %1225 = vmatpush.msra.mxu0 %v1212
        %1226 = vmatpush.msra.mxu0 %v1211
        %1227 = vmatpush.msra.mxu0 %v1210
        %1228 = vmatpush.msra.mxu0 %v1209
        %1229 = vmatpush.msra.mxu0 %v1208
        %1230 = vmatpush.msra.mxu0 %v1207
        %1231 = vmatpush.msra.mxu0 %v1206
        %1232 = vmatpush.msra.mxu0 %v1205
        %1233 = vmatmul.f32.gmra.mxu0 %v1215
        %v1234 = vpop.f32.mrf.mxu0
        %v1235 = vadd.f32 %v1213, %v1234
        %1236 = vdwg.mxu0
        %v1237 = vld [vmem:[%s353] sm:$0xff]
        %v1238 = vld [vmem:[#allocation2 + $0x2a0] sm:$0xff]
        %v1239 = vld [vmem:[#allocation2 + $0x2a8] sm:$0x7f]
        %v1240 = vld [vmem:[#allocation2 + $0x2b0] sm:$0xff]
        %vm1241 = vcmask 64512
        %v1243 = vsel %vm1241, %v1235, 0
        %1245 = vmatpush.msra.mxu0 0.0
        %1246 = vmatpush.msra.mxu0 0.0
        %1247 = vmatpush.msra.mxu0 0.0
        %1248 = vmatpush.msra.mxu0 0.0
        %1249 = vmatpush.msra.mxu0 0.0
        %1250 = vmatpush.msra.mxu0 0.0
        %1251 = vmatpush.msra.mxu0 0.0
        %1252 = vmatpush.msra.mxu0 0.0
        %1253 = vmatpush.msra.mxu0 0.0
        %1254 = vmatpush.msra.mxu0 0.0
        %1255 = vmatpush.msra.mxu0 0.0
        %1256 = vmatpush.msra.mxu0 0.0
        %1257 = vmatpush.msra.mxu0 0.0
        %1258 = vmatpush.msra.mxu0 0.0
        %1259 = vmatpush.msra.mxu0 0.0
        %1260 = vmatpush.msra.mxu0 %v1240
        %1261 = vmatmul.f32.gmra.mxu0 %v1243
        %v1262 = vpop.f32.mrf.mxu0
        %v1263 = vadd.f32 0.0, %v1262
        %1264 = vdwg.mxu0
        %v1265 = vperm.slane %v1263, 0
        %vm1266 = vcmask 121856
        %v1268 = vsel %vm1266, %v1237, 0
        %vm1270 = vcmask 1046528
        %v1272 = vsel %vm1270, %v1239, 0
        %1274 = vmatpush.msra.mxu0 0.0
        %1275 = vmatpush.msra.mxu0 0.0
        %1276 = vmatpush.msra.mxu0 0.0
        %1277 = vmatpush.msra.mxu0 0.0
        %1278 = vmatpush.msra.mxu0 0.0
        %1279 = vmatpush.msra.mxu0 0.0
        %1280 = vmatpush.msra.mxu0 0.0
        %1281 = vmatpush.msra.mxu0 0.0
        %1282 = vmatpush.msra.mxu0 0.0
        %1283 = vmatpush.msra.mxu0 0.0
        %1284 = vmatpush.msra.mxu0 0.0
        %1285 = vmatpush.msra.mxu0 0.0
        %1286 = vmatpush.msra.mxu0 0.0
        %1287 = vmatpush.msra.mxu0 0.0
        %1288 = vmatpush.msra.mxu0 %v1272
        %1289 = vmatpush.msra.mxu0 %v1238
        %1290 = vmatmul.f32.gmra.mxu0 %v1268
        %v1291 = vpop.f32.mrf.mxu0
        %v1292 = vadd.f32 %v1265, %v1291
        %1293 = vdwg.mxu0
        %v1294 = vld [vmem:[#allocation2 + $0x2b8] sm:$0x1]
        %v1295 = vperm.slane %v1294, 0
        %v1296 = vadd.f32 %v1292, %v1295
        %1298 = vset.pattern.permute.xlu0 0
        %1299 = vperm.xlu0 %1298, %v702
        %v1300 = vpop.permute.xlu0 %1299
        %v1302 = vmul.f32 %v1300, %v1238
        %1303 = vset.pattern.permute.xlu0 1
        %1304 = vperm.xlu0 %1303, %v702
        %v1305 = vpop.permute.xlu0 %1304
        %v1308 = vrot.slane %v1238, 1
        %v1310 = vmul.f32 %v1305, %v1308
        %v1311 = vadd.f32 %v1302, %v1310
        %1312 = vset.pattern.permute.xlu0 2
        %1313 = vperm.xlu0 %1312, %v702
        %v1314 = vpop.permute.xlu0 %1313
        %v1316 = vrot.slane %v1238, 2
        %v1318 = vmul.f32 %v1314, %v1316
        %v1319 = vadd.f32 %v1311, %v1318
        %1320 = vset.pattern.permute.xlu0 0
        %1321 = vperm.xlu0 %1320, %v1237
        %v1322 = vpop.permute.xlu0 %1321
        %v1324 = vperm.slane %v1319, 0
        %v1325 = vmul.f32 %v1322, %v1324
        %1326 = vset.pattern.permute.xlu0 3
        %1327 = vperm.xlu0 %1326, %v702
        %v1328 = vpop.permute.xlu0 %1327
        %v1330 = vmul.f32 %v1328, %v1238
        %1331 = vset.pattern.permute.xlu0 4
        %1332 = vperm.xlu0 %1331, %v702
        %v1333 = vpop.permute.xlu0 %1332
        %v1335 = vmul.f32 %v1333, %v1308
        %v1336 = vadd.f32 %v1330, %v1335
        %1337 = vset.pattern.permute.xlu0 5
        %1338 = vperm.xlu0 %1337, %v702
        %v1339 = vpop.permute.xlu0 %1338
        %v1341 = vmul.f32 %v1339, %v1316
        %v1342 = vadd.f32 %v1336, %v1341
        %1343 = vset.pattern.permute.xlu0 1
        %1344 = vperm.xlu0 %1343, %v1237
        %v1345 = vpop.permute.xlu0 %1344
        %v1347 = vperm.slane %v1342, 0
        %v1348 = vmul.f32 %v1345, %v1347
        %v1349 = vadd.f32 %v1325, %v1348
        %1350 = vset.pattern.permute.xlu0 6
        %1351 = vperm.xlu0 %1350, %v702
        %v1352 = vpop.permute.xlu0 %1351
        %v1354 = vmul.f32 %v1352, %v1238
        %1355 = vset.pattern.permute.xlu0 7
        %1356 = vperm.xlu0 %1355, %v702
        %v1357 = vpop.permute.xlu0 %1356
        %v1359 = vmul.f32 %v1357, %v1308
        %v1360 = vadd.f32 %v1354, %v1359
        %1361 = vset.pattern.permute.xlu0 8
        %1362 = vperm.xlu0 %1361, %v702
        %v1363 = vpop.permute.xlu0 %1362
        %v1365 = vmul.f32 %v1363, %v1316
        %v1366 = vadd.f32 %v1360, %v1365
        %1367 = vset.pattern.permute.xlu0 2
        %1368 = vperm.xlu0 %1367, %v1237
        %v1369 = vpop.permute.xlu0 %1368
        %v1371 = vperm.slane %v1366, 0
        %v1372 = vmul.f32 %v1369, %v1371
        %v1373 = vadd.f32 %v1349, %v1372
        %v1374 = vrot.slane %v1238, 3
        %v1376 = vmul.f32 %v1300, %v1374
        %v1377 = vrot.slane %v1238, 4
        %v1379 = vmul.f32 %v1305, %v1377
        %v1380 = vadd.f32 %v1376, %v1379
        %v1381 = vrot.slane %v1238, 5
        %v1383 = vmul.f32 %v1314, %v1381
        %v1384 = vadd.f32 %v1380, %v1383
        %1385 = vset.pattern.permute.xlu0 3
        %1386 = vperm.xlu0 %1385, %v1237
        %v1387 = vpop.permute.xlu0 %1386
        %v1389 = vperm.slane %v1384, 0
        %v1390 = vmul.f32 %v1387, %v1389
        %v1391 = vadd.f32 %v1373, %v1390
        %v1392 = vmul.f32 %v1328, %v1374
        %v1393 = vmul.f32 %v1333, %v1377
        %v1394 = vadd.f32 %v1392, %v1393
        %v1395 = vmul.f32 %v1339, %v1381
        %v1396 = vadd.f32 %v1394, %v1395
        %1397 = vset.pattern.permute.xlu0 4
        %1398 = vperm.xlu0 %1397, %v1237
        %v1399 = vpop.permute.xlu0 %1398
        %v1401 = vperm.slane %v1396, 0
        %v1402 = vmul.f32 %v1399, %v1401
        %v1403 = vadd.f32 %v1391, %v1402
        %v1404 = vmul.f32 %v1352, %v1374
        %v1405 = vmul.f32 %v1357, %v1377
        %v1406 = vadd.f32 %v1404, %v1405
        %v1407 = vmul.f32 %v1363, %v1381
        %v1408 = vadd.f32 %v1406, %v1407
        %1409 = vset.pattern.permute.xlu0 5
        %1410 = vperm.xlu0 %1409, %v1237
        %v1411 = vpop.permute.xlu0 %1410
        %v1413 = vperm.slane %v1408, 0
        %v1414 = vmul.f32 %v1411, %v1413
        %v1415 = vadd.f32 %v1403, %v1414
        %v1416 = vrot.slane %v1238, 6
        %v1418 = vmul.f32 %v1300, %v1416
        %v1419 = vrot.slane %v1238, 7
        %v1421 = vmul.f32 %v1305, %v1419
        %v1422 = vadd.f32 %v1418, %v1421
        %v1423 = vmul.f32 %v1314, %v1239
        %v1424 = vadd.f32 %v1422, %v1423
        %1425 = vset.pattern.permute.xlu0 6
        %1426 = vperm.xlu0 %1425, %v1237
        %v1427 = vpop.permute.xlu0 %1426
        %v1429 = vperm.slane %v1424, 0
        %v1430 = vmul.f32 %v1427, %v1429
        %v1431 = vadd.f32 %v1415, %v1430
        %v1432 = vmul.f32 %v1328, %v1416
        %v1433 = vmul.f32 %v1333, %v1419
        %v1434 = vadd.f32 %v1432, %v1433
        %v1435 = vmul.f32 %v1339, %v1239
        %v1436 = vadd.f32 %v1434, %v1435
        %1437 = vset.pattern.permute.xlu0 7
        %1438 = vperm.xlu0 %1437, %v1237
        %v1439 = vpop.permute.xlu0 %1438
        %v1441 = vperm.slane %v1436, 0
        %v1442 = vmul.f32 %v1439, %v1441
        %v1443 = vadd.f32 %v1431, %v1442
        %v1444 = vmul.f32 %v1352, %v1416
        %v1445 = vmul.f32 %v1357, %v1419
        %v1446 = vadd.f32 %v1444, %v1445
        %v1447 = vmul.f32 %v1363, %v1239
        %v1448 = vadd.f32 %v1446, %v1447
        %1449 = vset.pattern.permute.xlu0 8
        %1450 = vperm.xlu0 %1449, %v1237
        %v1451 = vpop.permute.xlu0 %1450
        %v1453 = vperm.slane %v1448, 0
        %v1454 = vmul.f32 %v1451, %v1453
        %v1455 = vadd.f32 %v1443, %v1454
        %v1456 = vrot.slane %v1239, 1
        %v1458 = vmul.f32 %v1300, %v1456
        %v1459 = vrot.slane %v1239, 2
        %v1461 = vmul.f32 %v1305, %v1459
        %v1462 = vadd.f32 %v1458, %v1461
        %v1463 = vrot.slane %v1239, 3
        %v1465 = vmul.f32 %v1314, %v1463
        %v1466 = vadd.f32 %v1462, %v1465
        %1467 = vset.pattern.permute.xlu0 9
        %1468 = vperm.xlu0 %1467, %v1237
        %v1469 = vpop.permute.xlu0 %1468
        %v1471 = vperm.slane %v1466, 0
        %v1472 = vmul.f32 %v1469, %v1471
        %v1473 = vadd.f32 %v1455, %v1472
        %v1474 = vmul.f32 %v1328, %v1456
        %v1475 = vmul.f32 %v1333, %v1459
        %v1476 = vadd.f32 %v1474, %v1475
        %v1477 = vmul.f32 %v1339, %v1463
        %v1478 = vadd.f32 %v1476, %v1477
        %1479 = vset.pattern.permute.xlu0 10
        %1480 = vperm.xlu0 %1479, %v1237
        %v1481 = vpop.permute.xlu0 %1480
        %v1483 = vperm.slane %v1478, 0
        %v1484 = vmul.f32 %v1481, %v1483
        %v1485 = vadd.f32 %v1473, %v1484
        %v1486 = vmul.f32 %v1352, %v1456
        %v1487 = vmul.f32 %v1357, %v1459
        %v1488 = vadd.f32 %v1486, %v1487
        %v1489 = vmul.f32 %v1363, %v1463
        %v1490 = vadd.f32 %v1488, %v1489
        %1491 = vset.pattern.permute.xlu0 11
        %1492 = vperm.xlu0 %1491, %v1237
        %v1493 = vpop.permute.xlu0 %1492
        %v1495 = vperm.slane %v1490, 0
        %v1496 = vmul.f32 %v1493, %v1495
        %v1497 = vadd.f32 %v1485, %v1496
        %v1498 = vadd.f32 %v1296, %v1497
        %v1499 = vmax.f32 %v1498, 0.0
        %v1500 = vld [vmem:[#allocation2 + $0x2c0] sm:$0xff]
        %v1501 = vld [vmem:[#allocation2 + $0x2c8] sm:$0xff]
        %v1502 = vld [vmem:[#allocation2 + $0x2d0] sm:$0xff]
        %v1503 = vld [vmem:[#allocation2 + $0x2d8] sm:$0xff]
        %v1504 = vld [vmem:[#allocation2 + $0x2e0] sm:$0x1]
        %v1505 = vperm.slane %v1504, 0
        %v1507 = vsel %vm463, %v1499, 0
        %1509 = vmatpush.msra.mxu0 0.0
        %1510 = vmatpush.msra.mxu0 0.0
        %1511 = vmatpush.msra.mxu0 0.0
        %1512 = vmatpush.msra.mxu0 0.0
        %1513 = vmatpush.msra.mxu0 0.0
        %1514 = vmatpush.msra.mxu0 0.0
        %1515 = vmatpush.msra.mxu0 0.0
        %1516 = vmatpush.msra.mxu0 0.0
        %1517 = vmatpush.msra.mxu0 0.0
        %1518 = vmatpush.msra.mxu0 0.0
        %1519 = vmatpush.msra.mxu0 0.0
        %1520 = vmatpush.msra.mxu0 0.0
        %1521 = vmatpush.msra.mxu0 %v1503
        %1522 = vmatpush.msra.mxu0 %v1502
        %1523 = vmatpush.msra.mxu0 %v1501
        %1524 = vmatpush.msra.mxu0 %v1500
        %1525 = vmatmul.f32.gmra.mxu0 %v1507
        %v1526 = vpop.f32.mrf.mxu0
        %v1527 = vadd.f32 %v1505, %v1526
        %1528 = vdwg.mxu0
        %v1529 = vmax.f32 %v1527, 0.0
        %v1530 = vld [vmem:[#allocation2 + $0x2e8] sm:$0xff]
        %v1531 = vld [vmem:[#allocation2 + $0x2f0] sm:$0xff]
        %v1532 = vld [vmem:[#allocation2 + $0x2f8] sm:$0xff]
        %v1533 = vld [vmem:[#allocation2 + $0x300] sm:$0xff]
        %v1534 = vld [vmem:[#allocation2 + $0x308] sm:$0xff]
        %v1535 = vld [vmem:[#allocation2 + $0x310] sm:$0xff]
        %v1536 = vld [vmem:[#allocation2 + $0x318] sm:$0xff]
        %v1537 = vld [vmem:[#allocation2 + $0x320] sm:$0xff]
        %v1538 = vld [vmem:[#allocation2 + $0x328] sm:$0x1]
        %v1539 = vperm.slane %v1538, 0
        %v1541 = vsel %vm547, %v1529, 0
        %1543 = vmatpush.msra.mxu0 0.0
        %1544 = vmatpush.msra.mxu0 0.0
        %1545 = vmatpush.msra.mxu0 0.0
        %1546 = vmatpush.msra.mxu0 0.0
        %1547 = vmatpush.msra.mxu0 0.0
        %1548 = vmatpush.msra.mxu0 0.0
        %1549 = vmatpush.msra.mxu0 0.0
        %1550 = vmatpush.msra.mxu0 0.0
        %1551 = vmatpush.msra.mxu0 %v1537
        %1552 = vmatpush.msra.mxu0 %v1536
        %1553 = vmatpush.msra.mxu0 %v1535
        %1554 = vmatpush.msra.mxu0 %v1534
        %1555 = vmatpush.msra.mxu0 %v1533
        %1556 = vmatpush.msra.mxu0 %v1532
        %1557 = vmatpush.msra.mxu0 %v1531
        %1558 = vmatpush.msra.mxu0 %v1530
        %1559 = vmatmul.f32.gmra.mxu0 %v1541
        %v1560 = vpop.f32.mrf.mxu0
        %v1561 = vadd.f32 %v1539, %v1560
        %1562 = vdwg.mxu0
        %v1563 = vmax.f32 %v1561, 0.0
        %v1564 = vrot.slane %v1563, 4
        %v1565 = vmax.f32 %v1563, %v1564
        %v1566 = vrot.slane %v1565, 2
        %v1567 = vmax.f32 %v1565, %v1566
        %v1568 = vrot.slane %v1567, 1
        %v1569 = vmax.f32 %v1567, %v1568
        %v1570 = vld [vmem:[#allocation2 + $0x330] sm:$0xff]
        %v1571 = vld [vmem:[#allocation2 + $0x338] sm:$0xff]
        %v1572 = vld [vmem:[#allocation2 + $0x340] sm:$0xff]
        %v1573 = vld [vmem:[#allocation2 + $0x348] sm:$0xff]
        %v1574 = vld [vmem:[#allocation2 + $0x350] sm:$0xff]
        %v1575 = vld [vmem:[#allocation2 + $0x358] sm:$0xff]
        %v1576 = vld [vmem:[#allocation2 + $0x360] sm:$0xff]
        %v1577 = vld [vmem:[#allocation2 + $0x368] sm:$0xff]
        %v1578 = vld [vmem:[#allocation2 + $0x370] sm:$0xff]
        %v1579 = vld [vmem:[#allocation2 + $0x378] sm:$0xff]
        %v1580 = vld [vmem:[#allocation2 + $0x380] sm:$0xff]
        %v1581 = vld [vmem:[#allocation2 + $0x388] sm:$0xff]
        %v1582 = vld [vmem:[#allocation2 + $0x390] sm:$0xff]
        %v1583 = vld [vmem:[#allocation2 + $0x398] sm:$0xff]
        %v1584 = vld [vmem:[#allocation2 + $0x3a0] sm:$0xff]
        %v1585 = vld [vmem:[#allocation2 + $0x3a8] sm:$0xff]
        %v1586 = vld [vmem:[#allocation2 + $0x3b0] sm:$0x1]
        %1587 = vmatpush.msra.mxu0 %v1585
        %1588 = vmatpush.msra.mxu0 %v1584
        %1589 = vmatpush.msra.mxu0 %v1583
        %1590 = vmatpush.msra.mxu0 %v1582
        %1591 = vmatpush.msra.mxu0 %v1581
        %1592 = vmatpush.msra.mxu0 %v1580
        %1593 = vmatpush.msra.mxu0 %v1579
        %1594 = vmatpush.msra.mxu0 %v1578
        %1595 = vmatpush.msra.mxu0 %v1577
        %1596 = vmatpush.msra.mxu0 %v1576
        %1597 = vmatpush.msra.mxu0 %v1575
        %1598 = vmatpush.msra.mxu0 %v1574
        %1599 = vmatpush.msra.mxu0 %v1573
        %1600 = vmatpush.msra.mxu0 %v1572
        %1601 = vmatpush.msra.mxu0 %v1571
        %1602 = vmatpush.msra.mxu0 %v1570
        %1603 = vmatmul.f32.gmra.mxu0 %v1569
        %v1604 = vpop.f32.mrf.mxu0
        %v1605 = vadd.f32 %v1586, %v1604
        %1606 = vdwg.mxu0
        %v1607 = vmax.f32 %v1605, 0.0
        %v1608 = vld [vmem:[#allocation2 + $0x3b8] sm:$0xff]
        %v1609 = vld [vmem:[#allocation2 + $0x3c0] sm:$0xff]
        %v1610 = vld [vmem:[#allocation2 + $0x3c8] sm:$0xff]
        %v1611 = vld [vmem:[#allocation2 + $0x3d0] sm:$0xff]
        %v1612 = vld [vmem:[#allocation2 + $0x3d8] sm:$0xff]
        %v1613 = vld [vmem:[#allocation2 + $0x3e0] sm:$0xff]
        %v1614 = vld [vmem:[#allocation2 + $0x3e8] sm:$0xff]
        %v1615 = vld [vmem:[#allocation2 + $0x3f0] sm:$0xff]
        %v1616 = vld [vmem:[#allocation2 + $0x3f8] sm:$0x1]
        %v1618 = vsel %vm547, %v1607, 0
        %1620 = vmatpush.msra.mxu0 0.0
        %1621 = vmatpush.msra.mxu0 0.0
        %1622 = vmatpush.msra.mxu0 0.0
        %1623 = vmatpush.msra.mxu0 0.0
        %1624 = vmatpush.msra.mxu0 0.0
        %1625 = vmatpush.msra.mxu0 0.0
        %1626 = vmatpush.msra.mxu0 0.0
        %1627 = vmatpush.msra.mxu0 0.0
        %1628 = vmatpush.msra.mxu0 %v1615
        %1629 = vmatpush.msra.mxu0 %v1614
        %1630 = vmatpush.msra.mxu0 %v1613
        %1631 = vmatpush.msra.mxu0 %v1612
        %1632 = vmatpush.msra.mxu0 %v1611
        %1633 = vmatpush.msra.mxu0 %v1610
        %1634 = vmatpush.msra.mxu0 %v1609
        %1635 = vmatpush.msra.mxu0 %v1608
        %1636 = vmatmul.f32.gmra.mxu0 %v1618
        %v1637 = vpop.f32.mrf.mxu0
        %v1638 = vadd.f32 %v1616, %v1637
        %1639 = vdwg.mxu0
        %v1640 = vld [vmem:[%s360] sm:$0x1]
        %v1641 = vmul.f32 %v1638, 1.442695
        %v1642 = vpow.pop %v1641
        %v1643 = vadd.f32 %v1642, 0.0001
        %v1645 = vperm.slane %v1640, 0
        %1646 = vrot.lane.b32.xlu0 %v1645, 8
        %v1647 = vpop.permute.xlu0 %1646
        %v1649 = vmul.f32 %v1643, %v1647
        %1651 = vrot.lane.b32.xlu0 %v1649, 120
        %v1652 = vpop.permute.xlu0 %1651
        %v1654 = vadd.f32 %v1638, %v1652
        %v1655 = vlaneseq
        %v1656 = vand.u32 %v1655, 127
        %vm1657 = vcmp.lt.s32.totalorder %v1656, 8
        %vm1658 = vcmp.lt.s32.totalorder %v1656, 16
        %v1659 = vsel %vm1658, %v1643, 0.0
        %v1660 = vsel %vm1657, %v1638, %v1659
        %1661 = vst [vmem:[%s367] sm:$0x1] %v1660
        %v1662 = vld [vmem:[%s357] sm:$0xff]
        %v1663 = vld [vmem:[#allocation4] sm:$0xff]
        %v1664 = vld [vmem:[#allocation4 + $0x10] sm:$0x1f]
        %v1665 = vld [vmem:[#allocation4 + $0x20] sm:$0xff]
        %v1667 = vsel %vm1241, %v1654, 0
        %1669 = vmatpush.msra.mxu0 0.0
        %1670 = vmatpush.msra.mxu0 0.0
        %1671 = vmatpush.msra.mxu0 0.0
        %1672 = vmatpush.msra.mxu0 0.0
        %1673 = vmatpush.msra.mxu0 0.0
        %1674 = vmatpush.msra.mxu0 0.0
        %1675 = vmatpush.msra.mxu0 0.0
        %1676 = vmatpush.msra.mxu0 0.0
        %1677 = vmatpush.msra.mxu0 0.0
        %1678 = vmatpush.msra.mxu0 0.0
        %1679 = vmatpush.msra.mxu0 0.0
        %1680 = vmatpush.msra.mxu0 0.0
        %1681 = vmatpush.msra.mxu0 0.0
        %1682 = vmatpush.msra.mxu0 0.0
        %1683 = vmatpush.msra.mxu0 0.0
        %1684 = vmatpush.msra.mxu0 %v1665
        %1685 = vmatmul.f32.gmra.mxu0 %v1667
        %v1686 = vpop.f32.mrf.mxu0
        %v1687 = vadd.f32 0.0, %v1686
        %1688 = vdwg.mxu0
        %v1689 = vperm.slane %v1687, 0
        %vm1690 = vcmask 105472
        %v1692 = vsel %vm1690, %v1662, 0
        %vm1694 = vcmask 1044480
        %v1696 = vsel %vm1694, %v1664, 0
        %1698 = vmatpush.msra.mxu0 0.0
        %1699 = vmatpush.msra.mxu0 0.0
        %1700 = vmatpush.msra.mxu0 0.0
        %1701 = vmatpush.msra.mxu0 0.0
        %1702 = vmatpush.msra.mxu0 0.0
        %1703 = vmatpush.msra.mxu0 0.0
        %1704 = vmatpush.msra.mxu0 0.0
        %1705 = vmatpush.msra.mxu0 0.0
        %1706 = vmatpush.msra.mxu0 0.0
        %1707 = vmatpush.msra.mxu0 0.0
        %1708 = vmatpush.msra.mxu0 0.0
        %1709 = vmatpush.msra.mxu0 0.0
        %1710 = vmatpush.msra.mxu0 0.0
        %1711 = vmatpush.msra.mxu0 0.0
        %1712 = vmatpush.msra.mxu0 %v1696
        %1713 = vmatpush.msra.mxu0 %v1663
        %1714 = vmatmul.f32.gmra.mxu0 %v1692
        %v1715 = vpop.f32.mrf.mxu0
        %v1716 = vadd.f32 %v1689, %v1715
        %1717 = vdwg.mxu0
        %v1718 = vld [vmem:[#allocation4 + $0x30] sm:$0xff]
        %1719 = vmatpush.msra.mxu0 0.0
        %1720 = vmatpush.msra.mxu0 0.0
        %1721 = vmatpush.msra.mxu0 0.0
        %1722 = vmatpush.msra.mxu0 0.0
        %1723 = vmatpush.msra.mxu0 0.0
        %1724 = vmatpush.msra.mxu0 0.0
        %1725 = vmatpush.msra.mxu0 0.0
        %1726 = vmatpush.msra.mxu0 0.0
        %1727 = vmatpush.msra.mxu0 0.0
        %1728 = vmatpush.msra.mxu0 0.0
        %1729 = vmatpush.msra.mxu0 0.0
        %1730 = vmatpush.msra.mxu0 0.0
        %1731 = vmatpush.msra.mxu0 0.0
        %1732 = vmatpush.msra.mxu0 0.0
        %1733 = vmatpush.msra.mxu0 0.0
        %1734 = vmatpush.msra.mxu0 %v1718
        %1735 = vmatmul.f32.gmra.mxu0 %v1243
        %v1736 = vpop.f32.mrf.mxu0
        %v1737 = vadd.f32 0.0, %v1736
        %1738 = vdwg.mxu0
        %v1739 = vperm.slane %v1737, 0
        %v1740 = vadd.f32 %v1716, %v1739
        %v1741 = vld [vmem:[#allocation4 + $0x40] ss:$0 sm:$0xff]
        %v1742 = vadd.f32 %v1740, %v1741
        %v1743 = vmul.f32 %v1300, %v1663
        %v1745 = vrot.slane %v1663, 1
        %v1747 = vmul.f32 %v1305, %v1745
        %v1748 = vadd.f32 %v1743, %v1747
        %v1749 = vrot.slane %v1663, 2
        %v1751 = vmul.f32 %v1314, %v1749
        %v1752 = vadd.f32 %v1748, %v1751
        %1753 = vset.pattern.permute.xlu0 0
        %1754 = vperm.xlu0 %1753, %v1662
        %v1755 = vpop.permute.xlu0 %1754
        %v1757 = vperm.slane %v1752, 0
        %v1758 = vmul.f32 %v1755, %v1757
        %v1759 = vmul.f32 %v1328, %v1663
        %v1760 = vmul.f32 %v1333, %v1745
        %v1761 = vadd.f32 %v1759, %v1760
        %v1762 = vmul.f32 %v1339, %v1749
        %v1763 = vadd.f32 %v1761, %v1762
        %1764 = vset.pattern.permute.xlu0 1
        %1765 = vperm.xlu0 %1764, %v1662
        %v1766 = vpop.permute.xlu0 %1765
        %v1768 = vperm.slane %v1763, 0
        %v1769 = vmul.f32 %v1766, %v1768
        %v1770 = vadd.f32 %v1758, %v1769
        %v1771 = vmul.f32 %v1352, %v1663
        %v1772 = vmul.f32 %v1357, %v1745
        %v1773 = vadd.f32 %v1771, %v1772
        %v1774 = vmul.f32 %v1363, %v1749
        %v1775 = vadd.f32 %v1773, %v1774
        %1776 = vset.pattern.permute.xlu0 2
        %1777 = vperm.xlu0 %1776, %v1662
        %v1778 = vpop.permute.xlu0 %1777
        %v1780 = vperm.slane %v1775, 0
        %v1781 = vmul.f32 %v1778, %v1780
        %v1782 = vadd.f32 %v1770, %v1781
        %v1783 = vrot.slane %v1663, 3
        %v1785 = vmul.f32 %v1300, %v1783
        %v1786 = vrot.slane %v1663, 4
        %v1788 = vmul.f32 %v1305, %v1786
        %v1789 = vadd.f32 %v1785, %v1788
        %v1790 = vrot.slane %v1663, 5
        %v1792 = vmul.f32 %v1314, %v1790
        %v1793 = vadd.f32 %v1789, %v1792
        %1794 = vset.pattern.permute.xlu0 3
        %1795 = vperm.xlu0 %1794, %v1662
        %v1796 = vpop.permute.xlu0 %1795
        %v1798 = vperm.slane %v1793, 0
        %v1799 = vmul.f32 %v1796, %v1798
        %v1800 = vadd.f32 %v1782, %v1799
        %v1801 = vmul.f32 %v1328, %v1783
        %v1802 = vmul.f32 %v1333, %v1786
        %v1803 = vadd.f32 %v1801, %v1802
        %v1804 = vmul.f32 %v1339, %v1790
        %v1805 = vadd.f32 %v1803, %v1804
        %1806 = vset.pattern.permute.xlu0 4
        %1807 = vperm.xlu0 %1806, %v1662
        %v1808 = vpop.permute.xlu0 %1807
        %v1810 = vperm.slane %v1805, 0
        %v1811 = vmul.f32 %v1808, %v1810
        %v1812 = vadd.f32 %v1800, %v1811
        %v1813 = vmul.f32 %v1352, %v1783
        %v1814 = vmul.f32 %v1357, %v1786
        %v1815 = vadd.f32 %v1813, %v1814
        %v1816 = vmul.f32 %v1363, %v1790
        %v1817 = vadd.f32 %v1815, %v1816
        %1818 = vset.pattern.permute.xlu0 5
        %1819 = vperm.xlu0 %1818, %v1662
        %v1820 = vpop.permute.xlu0 %1819
        %v1822 = vperm.slane %v1817, 0
        %v1823 = vmul.f32 %v1820, %v1822
        %v1824 = vadd.f32 %v1812, %v1823
        %v1825 = vrot.slane %v1663, 6
        %v1827 = vmul.f32 %v1300, %v1825
        %v1828 = vrot.slane %v1663, 7
        %v1830 = vmul.f32 %v1305, %v1828
        %v1831 = vadd.f32 %v1827, %v1830
        %v1832 = vmul.f32 %v1314, %v1664
        %v1833 = vadd.f32 %v1831, %v1832
        %1834 = vset.pattern.permute.xlu0 6
        %1835 = vperm.xlu0 %1834, %v1662
        %v1836 = vpop.permute.xlu0 %1835
        %v1838 = vperm.slane %v1833, 0
        %v1839 = vmul.f32 %v1836, %v1838
        %v1840 = vadd.f32 %v1824, %v1839
        %v1841 = vmul.f32 %v1328, %v1825
        %v1842 = vmul.f32 %v1333, %v1828
        %v1843 = vadd.f32 %v1841, %v1842
        %v1844 = vmul.f32 %v1339, %v1664
        %v1845 = vadd.f32 %v1843, %v1844
        %1846 = vset.pattern.permute.xlu0 7
        %1847 = vperm.xlu0 %1846, %v1662
        %v1848 = vpop.permute.xlu0 %1847
        %v1850 = vperm.slane %v1845, 0
        %v1851 = vmul.f32 %v1848, %v1850
        %v1852 = vadd.f32 %v1840, %v1851
        %v1853 = vmul.f32 %v1352, %v1825
        %v1854 = vmul.f32 %v1357, %v1828
        %v1855 = vadd.f32 %v1853, %v1854
        %v1856 = vmul.f32 %v1363, %v1664
        %v1857 = vadd.f32 %v1855, %v1856
        %1858 = vset.pattern.permute.xlu0 8
        %1859 = vperm.xlu0 %1858, %v1662
        %v1860 = vpop.permute.xlu0 %1859
        %v1862 = vperm.slane %v1857, 0
        %v1863 = vmul.f32 %v1860, %v1862
        %v1864 = vadd.f32 %v1852, %v1863
        %v1865 = vrot.slane %v1664, 1
        %v1867 = vmul.f32 %v1300, %v1865
        %v1868 = vrot.slane %v1664, 2
        %v1870 = vmul.f32 %v1305, %v1868
        %v1871 = vadd.f32 %v1867, %v1870
        %v1872 = vrot.slane %v1664, 3
        %v1874 = vmul.f32 %v1314, %v1872
        %v1875 = vadd.f32 %v1871, %v1874
        %1876 = vset.pattern.permute.xlu0 9
        %1877 = vperm.xlu0 %1876, %v1662
        %v1878 = vpop.permute.xlu0 %1877
        %v1880 = vperm.slane %v1875, 0
        %v1881 = vmul.f32 %v1878, %v1880
        %v1882 = vadd.f32 %v1864, %v1881
        %v1883 = vmul.f32 %v1328, %v1865
        %v1884 = vmul.f32 %v1333, %v1868
        %v1885 = vadd.f32 %v1883, %v1884
        %v1886 = vmul.f32 %v1339, %v1872
        %v1887 = vadd.f32 %v1885, %v1886
        %1888 = vset.pattern.permute.xlu0 10
        %1889 = vperm.xlu0 %1888, %v1662
        %v1890 = vpop.permute.xlu0 %1889
        %v1892 = vperm.slane %v1887, 0
        %v1893 = vmul.f32 %v1890, %v1892
        %v1894 = vadd.f32 %v1882, %v1893
        %v1895 = vmul.f32 %v1352, %v1865
        %v1896 = vmul.f32 %v1357, %v1868
        %v1897 = vadd.f32 %v1895, %v1896
        %v1898 = vmul.f32 %v1363, %v1872
        %v1899 = vadd.f32 %v1897, %v1898
        %1900 = vset.pattern.permute.xlu0 11
        %1901 = vperm.xlu0 %1900, %v1662
        %v1902 = vpop.permute.xlu0 %1901
        %v1904 = vperm.slane %v1899, 0
        %v1905 = vmul.f32 %v1902, %v1904
        %v1906 = vadd.f32 %v1894, %v1905
        %v1907 = vadd.f32 %v1742, %v1906
        %v1908 = vmax.f32 %v1907, 0.0
        %v1909 = vld [vmem:[#allocation4 + $0x50] sm:$0xff]
        %v1910 = vld [vmem:[#allocation4 + $0x60] sm:$0xff]
        %v1911 = vld [vmem:[#allocation4 + $0x70] sm:$0xff]
        %v1912 = vld [vmem:[#allocation4 + $0x80] sm:$0xff]
        %v1913 = vld [vmem:[#allocation4 + $0x90] sm:$0xff]
        %v1914 = vld [vmem:[#allocation4 + $0xa0] sm:$0xff]
        %v1915 = vld [vmem:[#allocation4 + $0xb0] sm:$0xff]
        %v1916 = vld [vmem:[#allocation4 + $0xc0] sm:$0xff]
        %v1917 = vld [vmem:[#allocation4 + $0xd0] ss:$0 sm:$0xff]
        %v1919 = vsel %vm547, %v1908, 0
        %1921 = vmatpush.msra.mxu0 0.0
        %1922 = vmatpush.msra.mxu0 0.0
        %1923 = vmatpush.msra.mxu0 0.0
        %1924 = vmatpush.msra.mxu0 0.0
        %1925 = vmatpush.msra.mxu0 0.0
        %1926 = vmatpush.msra.mxu0 0.0
        %1927 = vmatpush.msra.mxu0 0.0
        %1928 = vmatpush.msra.mxu0 0.0
        %1929 = vmatpush.msra.mxu0 %v1916
        %1930 = vmatpush.msra.mxu0 %v1915
        %1931 = vmatpush.msra.mxu0 %v1914
        %1932 = vmatpush.msra.mxu0 %v1913
        %1933 = vmatpush.msra.mxu0 %v1912
        %1934 = vmatpush.msra.mxu0 %v1911
        %1935 = vmatpush.msra.mxu0 %v1910
        %1936 = vmatpush.msra.mxu0 %v1909
        %1937 = vmatmul.f32.gmra.mxu0 %v1919
        %v1938 = vpop.f32.mrf.mxu0
        %v1939 = vadd.f32 %v1917, %v1938
        %1940 = vdwg.mxu0
        %v1941 = vmax.f32 %v1939, 0.0
        %v1942 = vld [vmem:[#allocation4 + $0xe0] sm:$0xff]
        %v1943 = vld [vmem:[#allocation4 + $0xe8] sm:$0xff]
        %v1944 = vld [vmem:[#allocation4 + $0xf0] sm:$0xff]
        %v1945 = vld [vmem:[#allocation4 + $0xf8] sm:$0xff]
        %v1946 = vld [vmem:[#allocation4 + $0x100] sm:$0xff]
        %v1947 = vld [vmem:[#allocation4 + $0x108] sm:$0xff]
        %v1948 = vld [vmem:[#allocation4 + $0x110] sm:$0xff]
        %v1949 = vld [vmem:[#allocation4 + $0x118] sm:$0xff]
        %v1950 = vld [vmem:[#allocation4 + $0x120] sm:$0xff]
        %v1951 = vld [vmem:[#allocation4 + $0x128] sm:$0xff]
        %v1952 = vld [vmem:[#allocation4 + $0x130] sm:$0xff]
        %v1953 = vld [vmem:[#allocation4 + $0x138] sm:$0xff]
        %v1954 = vld [vmem:[#allocation4 + $0x140] sm:$0xff]
        %v1955 = vld [vmem:[#allocation4 + $0x148] sm:$0xff]
        %v1956 = vld [vmem:[#allocation4 + $0x150] sm:$0xff]
        %v1957 = vld [vmem:[#allocation4 + $0x158] sm:$0xff]
        %v1958 = vld [vmem:[#allocation4 + $0x160] sm:$0xff]
        %v1959 = vld [vmem:[#allocation4 + $0x168] sm:$0xff]
        %v1960 = vld [vmem:[#allocation4 + $0x170] sm:$0xff]
        %v1961 = vld [vmem:[#allocation4 + $0x178] sm:$0xff]
        %v1962 = vld [vmem:[#allocation4 + $0x180] sm:$0xff]
        %v1963 = vld [vmem:[#allocation4 + $0x188] sm:$0xff]
        %v1964 = vld [vmem:[#allocation4 + $0x190] sm:$0xff]
        %v1965 = vld [vmem:[#allocation4 + $0x198] sm:$0xff]
        %v1966 = vld [vmem:[#allocation4 + $0x1a0] sm:$0xff]
        %v1967 = vld [vmem:[#allocation4 + $0x1a8] sm:$0xff]
        %v1968 = vld [vmem:[#allocation4 + $0x1b0] sm:$0xff]
        %v1969 = vld [vmem:[#allocation4 + $0x1b8] sm:$0xff]
        %v1970 = vld [vmem:[#allocation4 + $0x1c0] sm:$0xff]
        %v1971 = vld [vmem:[#allocation4 + $0x1c8] sm:$0xff]
        %v1972 = vld [vmem:[#allocation4 + $0x1d0] sm:$0xff]
        %v1973 = vld [vmem:[#allocation4 + $0x1d8] sm:$0xff]
        %s1974 = scalar_lea.vmem [#allocation4], 480
        %v1975 = vld [vmem:[%s1974] ss:$8 sm:$0x3]
        %v1977 = vperm.slane %v1975, 0
        %v1978 = vperm.slane %v1975, 1
        %1981 = vmatpush.msra.mxu0 %v1972
        %1982 = vmatpush.msra.mxu0 %v1970
        %1983 = vmatpush.msra.mxu0 %v1968
        %1984 = vmatpush.msra.mxu0 %v1966
        %1985 = vmatpush.msra.mxu0 %v1964
        %1986 = vmatpush.msra.mxu0 %v1962
        %1987 = vmatpush.msra.mxu0 %v1960
        %1988 = vmatpush.msra.mxu0 %v1958
        %1989 = vmatpush.msra.mxu0 %v1956
        %1990 = vmatpush.msra.mxu0 %v1954
        %1991 = vmatpush.msra.mxu0 %v1952
        %1992 = vmatpush.msra.mxu0 %v1950
        %1993 = vmatpush.msra.mxu0 %v1948
        %1994 = vmatpush.msra.mxu0 %v1946
        %1995 = vmatpush.msra.mxu0 %v1944
        %1996 = vmatpush.msra.mxu0 %v1942
        %1997 = vmatmul.f32.gmra.mxu0 %v1941
        %v1998 = vpop.f32.mrf.mxu0
        %v1999 = vadd.f32 %v1977, %v1998
        %2000 = vdwg.mxu0
        %2001 = vmatpush.msra.mxu0 %v1973
        %2002 = vmatpush.msra.mxu0 %v1971
        %2003 = vmatpush.msra.mxu0 %v1969
        %2004 = vmatpush.msra.mxu0 %v1967
        %2005 = vmatpush.msra.mxu0 %v1965
        %2006 = vmatpush.msra.mxu0 %v1963
        %2007 = vmatpush.msra.mxu0 %v1961
        %2008 = vmatpush.msra.mxu0 %v1959
        %2009 = vmatpush.msra.mxu0 %v1957
        %2010 = vmatpush.msra.mxu0 %v1955
        %2011 = vmatpush.msra.mxu0 %v1953
        %2012 = vmatpush.msra.mxu0 %v1951
        %2013 = vmatpush.msra.mxu0 %v1949
        %2014 = vmatpush.msra.mxu0 %v1947
        %2015 = vmatpush.msra.mxu0 %v1945
        %2016 = vmatpush.msra.mxu0 %v1943
        %2017 = vmatmul.f32.gmra.mxu0 %v1941
        %v2018 = vpop.f32.mrf.mxu0
        %v2019 = vadd.f32 %v1978, %v2018
        %2020 = vdwg.mxu0
        %v2021 = vmax.f32 %v1999, 0.0
        %v2022 = vmax.f32 %v2019, 0.0
        %v2023 = vld [vmem:[#allocation4 + $0x1f0] sm:$0xff]
        %v2024 = vld [vmem:[#allocation4 + $0x200] sm:$0xff]
        %v2025 = vld [vmem:[#allocation4 + $0x210] sm:$0xff]
        %v2026 = vld [vmem:[#allocation4 + $0x220] sm:$0xff]
        %v2027 = vld [vmem:[#allocation4 + $0x230] sm:$0xff]
        %v2028 = vld [vmem:[#allocation4 + $0x240] sm:$0xff]
        %v2029 = vld [vmem:[#allocation4 + $0x250] sm:$0xff]
        %v2030 = vld [vmem:[#allocation4 + $0x260] sm:$0xff]
        %v2031 = vld [vmem:[#allocation4 + $0x270] sm:$0xff]
        %v2032 = vld [vmem:[#allocation4 + $0x280] sm:$0xff]
        %v2033 = vld [vmem:[#allocation4 + $0x290] sm:$0xff]
        %v2034 = vld [vmem:[#allocation4 + $0x2a0] sm:$0xff]
        %v2035 = vld [vmem:[#allocation4 + $0x2b0] sm:$0xff]
        %v2036 = vld [vmem:[#allocation4 + $0x2c0] sm:$0xff]
        %v2037 = vld [vmem:[#allocation4 + $0x2d0] sm:$0xff]
        %v2038 = vld [vmem:[#allocation4 + $0x2e0] sm:$0xff]
        %v2039 = vld [vmem:[#allocation4 + $0x2f0] sm:$0xff]
        %v2040 = vld [vmem:[#allocation4 + $0x300] sm:$0xff]
        %v2041 = vld [vmem:[#allocation4 + $0x310] sm:$0xff]
        %v2042 = vld [vmem:[#allocation4 + $0x320] sm:$0xff]
        %v2043 = vld [vmem:[#allocation4 + $0x330] sm:$0xff]
        %v2044 = vld [vmem:[#allocation4 + $0x340] sm:$0xff]
        %v2045 = vld [vmem:[#allocation4 + $0x350] sm:$0xff]
        %v2046 = vld [vmem:[#allocation4 + $0x360] sm:$0xff]
        %v2047 = vld [vmem:[#allocation4 + $0x370] sm:$0xff]
        %v2048 = vld [vmem:[#allocation4 + $0x380] sm:$0xff]
        %v2049 = vld [vmem:[#allocation4 + $0x390] sm:$0xff]
        %v2050 = vld [vmem:[#allocation4 + $0x3a0] sm:$0xff]
        %v2051 = vld [vmem:[#allocation4 + $0x3b0] sm:$0xff]
        %v2052 = vld [vmem:[#allocation4 + $0x3c0] sm:$0xff]
        %v2053 = vld [vmem:[#allocation4 + $0x3d0] sm:$0xff]
        %v2054 = vld [vmem:[#allocation4 + $0x3e0] sm:$0xff]
        %v2055 = vld [vmem:[#allocation4 + $0x3f0] ss:$0 sm:$0xff]
        %2056 = vmatpush.msra.mxu0 %v2038
        %2057 = vmatpush.msra.mxu0 %v2037
        %2058 = vmatpush.msra.mxu0 %v2036
        %2059 = vmatpush.msra.mxu0 %v2035
        %2060 = vmatpush.msra.mxu0 %v2034
        %2061 = vmatpush.msra.mxu0 %v2033
        %2062 = vmatpush.msra.mxu0 %v2032
        %2063 = vmatpush.msra.mxu0 %v2031
        %2064 = vmatpush.msra.mxu0 %v2030
        %2065 = vmatpush.msra.mxu0 %v2029
        %2066 = vmatpush.msra.mxu0 %v2028
        %2067 = vmatpush.msra.mxu0 %v2027
        %2068 = vmatpush.msra.mxu0 %v2026
        %2069 = vmatpush.msra.mxu0 %v2025
        %2070 = vmatpush.msra.mxu0 %v2024
        %2071 = vmatpush.msra.mxu0 %v2023
        %2072 = vmatmul.f32.gmra.mxu0 %v2021
        %v2073 = vpop.f32.mrf.mxu0
        %v2074 = vadd.f32 %v2055, %v2073
        %2075 = vdwg.mxu0
        %2076 = vmatpush.msra.mxu0 %v2054
        %2077 = vmatpush.msra.mxu0 %v2053
        %2078 = vmatpush.msra.mxu0 %v2052
        %2079 = vmatpush.msra.mxu0 %v2051
        %2080 = vmatpush.msra.mxu0 %v2050
        %2081 = vmatpush.msra.mxu0 %v2049
        %2082 = vmatpush.msra.mxu0 %v2048
        %2083 = vmatpush.msra.mxu0 %v2047
        %2084 = vmatpush.msra.mxu0 %v2046
        %2085 = vmatpush.msra.mxu0 %v2045
        %2086 = vmatpush.msra.mxu0 %v2044
        %2087 = vmatpush.msra.mxu0 %v2043
        %2088 = vmatpush.msra.mxu0 %v2042
        %2089 = vmatpush.msra.mxu0 %v2041
        %2090 = vmatpush.msra.mxu0 %v2040
        %2091 = vmatpush.msra.mxu0 %v2039
        %2092 = vmatmul.f32.gmra.mxu0 %v2022
        %v2093 = vpop.f32.mrf.mxu0
        %v2094 = vadd.f32 %v2074, %v2093
        %2095 = vdwg.mxu0
        %v2096 = vmax.f32 %v2094, 0.0
        %v2097 = vld [vmem:[#allocation4 + $0x400] sm:$0xff]
        %v2098 = vld [vmem:[#allocation4 + $0x410] sm:$0xff]
        %v2099 = vld [vmem:[#allocation4 + $0x420] sm:$0xff]
        %v2100 = vld [vmem:[#allocation4 + $0x430] sm:$0xff]
        %v2101 = vld [vmem:[#allocation4 + $0x440] sm:$0xff]
        %v2102 = vld [vmem:[#allocation4 + $0x450] sm:$0xff]
        %v2103 = vld [vmem:[#allocation4 + $0x460] sm:$0xff]
        %v2104 = vld [vmem:[#allocation4 + $0x470] sm:$0xff]
        %v2105 = vld [vmem:[#allocation4 + $0x480] sm:$0xff]
        %v2106 = vld [vmem:[#allocation4 + $0x490] sm:$0xff]
        %v2107 = vld [vmem:[#allocation4 + $0x4a0] sm:$0xff]
        %v2108 = vld [vmem:[#allocation4 + $0x4b0] sm:$0xff]
        %v2109 = vld [vmem:[#allocation4 + $0x4c0] sm:$0xff]
        %v2110 = vld [vmem:[#allocation4 + $0x4d0] sm:$0xff]
        %v2111 = vld [vmem:[#allocation4 + $0x4e0] sm:$0xff]
        %v2112 = vld [vmem:[#allocation4 + $0x4f0] sm:$0xff]
        %v2113 = vld [vmem:[#allocation4 + $0x500] ss:$0 sm:$0xff]
        %2114 = vmatpush.msra.mxu0 %v2112
        %2115 = vmatpush.msra.mxu0 %v2111
        %2116 = vmatpush.msra.mxu0 %v2110
        %2117 = vmatpush.msra.mxu0 %v2109
        %2118 = vmatpush.msra.mxu0 %v2108
        %2119 = vmatpush.msra.mxu0 %v2107
        %2120 = vmatpush.msra.mxu0 %v2106
        %2121 = vmatpush.msra.mxu0 %v2105
        %2122 = vmatpush.msra.mxu0 %v2104
        %2123 = vmatpush.msra.mxu0 %v2103
        %2124 = vmatpush.msra.mxu0 %v2102
        %2125 = vmatpush.msra.mxu0 %v2101
        %2126 = vmatpush.msra.mxu0 %v2100
        %2127 = vmatpush.msra.mxu0 %v2099
        %2128 = vmatpush.msra.mxu0 %v2098
        %2129 = vmatpush.msra.mxu0 %v2097
        %2130 = vmatmul.f32.gmra.mxu0 %v2096
        %v2131 = vpop.f32.mrf.mxu0
        %v2132 = vadd.f32 %v2113, %v2131
        %2133 = vdwg.mxu0
        %v2134 = vxor.u32 %v2132, 2147483648
        %v2135 = vmul.f32 %v2134, 1.442695
        %v2136 = vpow.pop %v2135
        %v2137 = vadd.f32 %v2136, 1.0
        %v2138 = vrcp.pop %v2137
        %v2139 = vmul.f32 %v2137, %v2138
        %v2140 = vsub.f32 1.0, %v2139
        %v2141 = vmul.f32 %v2138, %v2140
        %v2142 = vadd.f32 %v2138, %v2141
        %vm2143 = vweird.f32 %v2137
        %vm2144 = vweird.f32 %v2138
        %vm2145 = vmor %vm2143, %vm2144
        %v2146 = vsel %vm2145, %v2138, %v2142
        %v2147 = vand.u32 2147483647, %v2137
        %vm2148 = vcmp.eq.f32.partialorder %v2147, 8.507059e+37
        %v2149 = vand.u32 %v2137, 2147483648
        %v2150 = vor.u32 1.1754944e-38, %v2149
        %v2151 = vsel %vm2148, %v2150, %v2146
        %v2152 = vmul.f32 1.0, %v2151
        %2153 = vst [vmem:[%s364] sm:$0xff] %v2152
        %p2154 = scmp.lt.s32.totalorder %s21, 1
        %s2155 = scalar_select %p2154, %s21, 1
        %s2156 = smul.addr %s2155, 8
        %s2157 = scalar_lea.vmem %s6, %s2156
        %p2158 = scmp.lt.s32.totalorder %s21, 1
        %s2159 = scalar_select %p2158, %s21, 1
        %s2160 = scalar_lea.vmem %s7, %s2159
        // Predicated region
        $region53: #{forward.1} parent=43 // pred_check
          %p2161 = pneg %p185
        $region54: #{forward.1} parent=43 // pred_check_branch
          %2163 = sbr.rel (%p2161) target = $region56
        $region55: #{forward.1} parent=43 // pred_region
          _
        $region56: #{forward.1} parent=43 // pred_fallthru
          _
        // Predicated region
        $region57: #{forward.1} parent=43 // pred_check
          %p2164 = pneg %p211
        $region58: #{forward.1} parent=43 // pred_check_branch
          %2166 = sbr.rel (%p2164) target = $region60
        $region59: #{forward.1} parent=43 // pred_region
          _
        $region60: #{forward.1} parent=43 // pred_fallthru
          _
      $region44: #{forward.1} parent=5 // pred_fallthru
        _
      %p2167 = scmp.le.s32.totalorder 2, %s16
      // Predicated region
      $region61: #{forward.1} parent=5 // pred_check
        %p2168 = pneg %p2167
      $region62: #{forward.1} parent=5 // pred_check_branch
        %2170 = sbr.rel (%p2168) target = $region64
      $region63: #{forward.1} parent=5 // pred_region
        %s2171 = ssub.s32 %s16, 2
        // Predicated region
        $region65: #{forward.1} parent=63 // pred_check
          %p2172 = pneg %p191
        $region66: #{forward.1} parent=63 // pred_check_branch
          %2174 = sbr.rel (%p2172) target = $region68
        $region67: #{forward.1} parent=63 // pred_region
          %p2175 = scmp.lt.s32.totalorder %s22, 1
          %s2176 = scalar_select %p2175, %s22, 1
          %s2177 = smul.addr %s2176, 8
          %s2178 = scalar_lea.vmem %s6, %s2177
        $region68: #{forward.1} parent=63 // pred_fallthru
          _
        // Predicated region
        $region69: #{forward.1} parent=63 // pred_check
          %p2179 = pneg %p217
        $region70: #{forward.1} parent=63 // pred_check_branch
          %2181 = sbr.rel (%p2179) target = $region72
        $region71: #{forward.1} parent=63 // pred_region
          %p2182 = scmp.lt.s32.totalorder %s22, 1
          %s2183 = scalar_select %p2182, %s22, 1
          %s2184 = scalar_lea.vmem %s7, %s2183
        $region72: #{forward.1} parent=63 // pred_fallthru
          _
      $region64: #{forward.1} parent=5 // pred_fallthru
        _
    $region6: #{forward.1} parent=1 // loop_footer
      %s20 = sadd.s32 1, %s16
    $region7: #{forward.1} parent=1 // loop_footer_branch
      %15 = sbr.rel target = $region3
    $region8: #{forward.1} parent=1 // loop_exit
      _
    %2185 = vsyncpa [#allocation3], 1
    %s2186 = scalar_lea.sflag [#allocation3], 1
    %2187 = vsyncpa %s2186, 1
    %2188 = vsyncpa [#allocation5], 1

</llo_original>
